<compile_context>
chip_gen: v7x
topology: tpu7x:2x2x1
jax: 0.10.0
libtpu: 0.0.40
codegen_flags: <defaults>
</compile_context>

<pallas_src>
import functools
import math

import jax
import jax.numpy as jnp
import numpy as np
from jax import lax
from jax.experimental import pallas as pl
from jax.experimental.pallas import tpu as pltpu


# Strength-reduce div/mod by power-of-two constants at trace time (bitwise ops
# on int32 vregs are always supported by the VPU).
def _mod(a, m: int):
    return a & (m - 1) if (m & (m - 1)) == 0 else a % m


def _div(a, m: int):
    return a >> (m.bit_length() - 1) if (m & (m - 1)) == 0 else a // m


# ----------------------------------------------------------------------------
# Pallas kernel
# ----------------------------------------------------------------------------
def resblock_kernel(x_ref, w1_ref, b1_ref, w2_ref, b2_ref,
                    g_ref, be_ref, w3_ref, b3_ref, o_ref,
                    *, n, h, w, eps, neg_slope, mxu_dtype):
    f32 = jnp.float32
    hw = h * w
    L = n * hw

    # ---- per-lane pixel coordinates; masks built in-kernel (no mask DMA) ----
    lane = lax.broadcasted_iota(jnp.int32, (1, L), 1)     # lane = b*HW + y*W + x
    pix = _mod(lane, hw)
    hh = _div(pix, w)
    ww = _mod(pix, w)

    offsets = [(dy, dx) for dy in (-1, 0, 1) for dx in (-1, 0, 1)]

    def tap_mask(dy, dx):
        conds = []
        if dy < 0:
            conds.append(hh >= -dy)
        if dy > 0:
            conds.append(hh < h - dy)
        if dx < 0:
            conds.append(ww >= -dx)
        if dx > 0:
            conds.append(ww < w - dx)
        m = conds[0]
        for c in conds[1:]:
            m = jnp.logical_and(m, c)
        return m.astype(f32)                               # (1, L)

    # Hoisted once, shared by both 3x3 convs (8 masks; center tap needs none).
    masks = {o: tap_mask(*o) for o in offsets if o != (0, 0)}

    # Hoist bias / affine reads (read once, reuse).
    b1 = b1_ref[...]
    b2 = b2_ref[...]
    b3 = b3_ref[...]
    gamma = g_ref[...]
    beta = be_ref[...]

    def conv3x3(inp_f32, w_ref, bias):
        # inp: (COUT, L) f32.  9 accumulated matmuls; no im2col slab.
        inp = inp_f32.astype(mxu_dtype)
        acc = jnp.dot(w_ref[4], inp, preferred_element_type=f32)     # center
        for k, (dy, dx) in enumerate(offsets):
            if (dy, dx) == (0, 0):
                continue
            shift = (-(dy * w + dx)) % L                  # jnp.roll convention
            tap = pltpu.roll(inp, shift, 1)               # XLU lane rotate
            # Mask is per-lane -> applying it to the f32 dot output is exact
            # and keeps the elementwise multiply in f32 (v5e-friendly).
            acc = acc + masks[(dy, dx)] * jnp.dot(
                w_ref[k], tap, preferred_element_type=f32)
        return acc + bias

    # ---- 1x1 bottle conv over the whole stacked batch ----
    y1 = jnp.dot(w1_ref[...], x_ref[...], preferred_element_type=f32) + b1

    # ---- first 3x3 "same" conv ----
    c1 = conv3x3(y1, w2_ref, b2)

    # ---- BatchNorm2d (training-mode batch stats over N*H*W), two-pass ----
    # Cross-lane reductions on the MXU (dot with a ones column); the XLU slots
    # are the contended resource here, the MXU has huge slack at COUT=8.
    ones_col = jnp.ones((L, 1), f32)
    inv_cnt = 1.0 / float(L)
    mean = jnp.dot(c1, ones_col, preferred_element_type=f32) * inv_cnt   # (COUT,1)
    d = c1 - mean
    var = jnp.dot(d * d, ones_col, preferred_element_type=f32) * inv_cnt # biased
    scale = gamma * lax.rsqrt(var + eps)                                 # EUP
    z = d * scale + beta
    z = jnp.where(z >= 0, z, neg_slope * z)                              # LeakyReLU

    # ---- second 3x3 conv, residual with bottle-conv output, 1/sqrt(2) ----
    y2 = conv3x3(z, w3_ref, b3)

    # Single lane-dense store of the whole (COUT, N*HW) slab (L % 128 == 0).
    o_ref[...] = ((y2 + y1) * (1.0 / math.sqrt(2.0))).astype(o_ref.dtype)


# ----------------------------------------------------------------------------
# Wrapper
# ----------------------------------------------------------------------------
def resblock_pallas(x_nchw, params, *, mxu_dtype=jnp.bfloat16):
    (w1, b1, w2, b2, gamma, beta, w3, b3) = params
    N, CIN, H, W = x_nchw.shape
    COUT = w1.shape[-1]
    HW = H * W
    L = N * HW

    # NCHW -> (CIN, N*HW): channels in sublanes, batch*spatial lane-dense.
    # MXU operands (x + conv weights) cast to mxu_dtype (bf16 halves DMA/VMEM);
    # accumulation and all VPU math stay f32 inside the kernel.
    x_cl = jnp.transpose(x_nchw, (1, 0, 2, 3)).reshape(CIN, L).astype(mxu_dtype)

    # Weight layouts (HWIO inputs): (9, out_ch, in_ch) per-tap matrices.
    w1k = w1.reshape(CIN, COUT).T.astype(mxu_dtype)                       # (COUT, CIN)
    w2k = jnp.transpose(w2.reshape(9, COUT, COUT), (0, 2, 1)).astype(mxu_dtype)
    w3k = jnp.transpose(w3.reshape(9, COUT, COUT), (0, 2, 1)).astype(mxu_dtype)
    col = lambda v: v.reshape(-1, 1).astype(jnp.float32)                  # (COUT, 1)

    kernel = functools.partial(
        resblock_kernel, n=N, h=H, w=W, eps=1e-5, neg_slope=0.2,
        mxu_dtype=mxu_dtype)

    grid_spec = pltpu.PrefetchScalarGridSpec(
        num_scalar_prefetch=0,
        grid=(1,),
        in_specs=[
            pl.BlockSpec((CIN, L), lambda i: (0, 0)),              # x (stacked)
            pl.BlockSpec((COUT, CIN), lambda i: (0, 0)),           # w1
            pl.BlockSpec((COUT, 1), lambda i: (0, 0)),             # b1
            pl.BlockSpec((9, COUT, COUT), lambda i: (0, 0, 0)),    # w2 per-tap
            pl.BlockSpec((COUT, 1), lambda i: (0, 0)),             # b2
            pl.BlockSpec((COUT, 1), lambda i: (0, 0)),             # gamma
            pl.BlockSpec((COUT, 1), lambda i: (0, 0)),             # beta
            pl.BlockSpec((9, COUT, COUT), lambda i: (0, 0, 0)),    # w3 per-tap
            pl.BlockSpec((COUT, 1), lambda i: (0, 0)),             # b3
        ],
        out_specs=pl.BlockSpec((COUT, L), lambda i: (0, 0)),       # lane-dense
    )

    itemsize = jnp.dtype(mxu_dtype).itemsize
    # flops: 1x1 conv + 2 * 3x3 conv + 2 BN reduction matmuls (roughly).
    flops = 2 * L * COUT * (CIN + 2 * 9 * COUT) + 4 * L * COUT
    bytes_accessed = (CIN * L * itemsize                       # x
                      + (CIN * COUT + 2 * 9 * COUT * COUT) * itemsize
                      + 5 * COUT * 4                           # biases/affine
                      + COUT * L * 4)                          # output
    cost = pl.CostEstimate(flops=flops, transcendentals=COUT,
                           bytes_accessed=bytes_accessed)

    # Resident footprint: x block + ~a dozen live (COUT, L) f32 slabs + weights.
    resident = L * (CIN * itemsize + 12 * COUT * 4) + 2 * 9 * COUT * COUT * itemsize
    vmem_limit = int(min(max(6 * resident, 16 * 1024 * 1024), 64 * 1024 * 1024))

    out = pl.pallas_call(
        kernel,
        out_shape=jax.ShapeDtypeStruct((COUT, L), jnp.float32),
        grid_spec=grid_spec,
        compiler_params=pltpu.CompilerParams(
            dimension_semantics=("arbitrary",),
            vmem_limit_bytes=vmem_limit),
        cost_estimate=cost,
    )(x_cl, w1k, col(b1), w2k, col(b2), col(gamma), col(beta), w3k, col(b3))

    # (COUT, N*HW) -> (N, COUT, H, W); cheap wrapper-side layout plumbing.
    return jnp.transpose(out.reshape(COUT, N, H, W), (1, 0, 2, 3))


# ----------------------------------------------------------------------------
# Pure-JAX reference (same math, via lax convs) for correctness checking
# ----------------------------------------------------------------------------
def resblock_ref(x_nchw, params):
    (w1, b1, w2, b2, gamma, beta, w3, b3) = params
    x = jnp.transpose(x_nchw, (0, 2, 3, 1))                      # NHWC
    dn = ('NHWC', 'HWIO', 'NHWC')

    def conv(x, w, b, pad):
        return lax.conv_general_dilated(
            x, w, (1, 1), pad, dimension_numbers=dn) + b

    y1 = conv(x, w1, b1, 'VALID')
    c1 = conv(y1, w2, b2, 'SAME')
    mean = jnp.mean(c1, axis=(0, 1, 2))
    var = jnp.var(c1, axis=(0, 1, 2))
    z = (c1 - mean) * lax.rsqrt(var + 1e-5) * gamma + beta
    z = jnp.where(z >= 0, z, 0.2 * z)
    y2 = conv(z, w3, b3, 'SAME')
    out = (y2 + y1) / math.sqrt(2.0)
    return jnp.transpose(out, (0, 3, 1, 2))


# ----------------------------------------------------------------------------
# Main
# ----------------------------------------------------------------------------
if __name__ == "__main__":
    N, CIN, COUT, H, W = 2, 4, 8, 16, 16

    key = jax.random.PRNGKey(0)
    kx, k1, k2, k3, k4, k5, k6, k7, k8 = jax.random.split(key, 9)

    x = jax.random.normal(kx, (N, CIN, H, W), jnp.float32)

    # Deterministic synthetic parameters (HWIO conv weight layout).
    w1 = jax.random.normal(k1, (1, 1, CIN, COUT), jnp.float32) / math.sqrt(CIN)
    b1 = 0.1 * jax.random.normal(k2, (COUT,), jnp.float32)
    w2 = jax.random.normal(k3, (3, 3, COUT, COUT), jnp.float32) / math.sqrt(9 * COUT)
    b2 = 0.1 * jax.random.normal(k4, (COUT,), jnp.float32)
    gamma = 1.0 + 0.1 * jax.random.normal(k5, (COUT,), jnp.float32)
    beta = 0.1 * jax.random.normal(k6, (COUT,), jnp.float32)
    w3 = jax.random.normal(k7, (3, 3, COUT, COUT), jnp.float32) / math.sqrt(9 * COUT)
    b3 = 0.1 * jax.random.normal(k8, (COUT,), jnp.float32)
    params = (w1, b1, w2, b2, gamma, beta, w3, b3)

    ref = jax.block_until_ready(resblock_ref(x, params))

    # 1) all-f32 path: tight tolerance catches layout/ordering bugs.
    out_f32 = jax.block_until_ready(
        resblock_pallas(x, params, mxu_dtype=jnp.float32))
    assert out_f32.shape == (N, COUT, H, W), out_f32.shape
    np.testing.assert_allclose(np.asarray(out_f32), np.asarray(ref),
                               atol=1e-3, rtol=1e-3)

    # 2) bf16 MXU operands (f32 accumulation): the shipped fast path on
    #    v5e/v6e/v7x.  Tolerance sized for bf16 operand rounding compounding
    #    through two chained 3x3 convs + BatchNorm.
    out_bf16 = jax.block_until_ready(
        resblock_pallas(x, params, mxu_dtype=jnp.bfloat16))
    assert out_bf16.shape == (N, COUT, H, W), out_bf16.shape
    np.testing.assert_allclose(np.asarray(out_bf16), np.asarray(ref),
                               atol=8e-2, rtol=8e-2)

    print("KERNEL_OK")
</pallas_src>

<mosaic_0001>
module attributes {stable_mosaic.version = 11 : i64} {
  func.func @resblock_kernel(%arg0: i32, %arg1: memref<4x512xf32, #tpu.memory_space<vmem>>, %arg2: memref<8x4xf32, #tpu.memory_space<vmem>>, %arg3: memref<8x1xf32, #tpu.memory_space<vmem>>, %arg4: memref<9x8x8xf32, #tpu.memory_space<vmem>>, %arg5: memref<8x1xf32, #tpu.memory_space<vmem>>, %arg6: memref<8x1xf32, #tpu.memory_space<vmem>>, %arg7: memref<8x1xf32, #tpu.memory_space<vmem>>, %arg8: memref<9x8x8xf32, #tpu.memory_space<vmem>>, %arg9: memref<8x1xf32, #tpu.memory_space<vmem>>, %arg10: memref<8x512xf32, #tpu.memory_space<vmem>>) attributes {dimension_semantics = [#tpu.dimension_semantics<arbitrary>], iteration_bounds = array<i64: 1>, scalar_prefetch = 0 : i64, scratch_operands = 0 : i64, tpu.core_type = #tpu.core_type<tc>, window_params = [{pipeline_mode = #tpu.pipeline_mode<synchronous>, transform_indices = @transform_0, window_bounds = array<i64: 4, 512>}, {pipeline_mode = #tpu.pipeline_mode<synchronous>, transform_indices = @transform_1, window_bounds = array<i64: 8, 4>}, {pipeline_mode = #tpu.pipeline_mode<synchronous>, transform_indices = @transform_2, window_bounds = array<i64: 8, 1>}, {pipeline_mode = #tpu.pipeline_mode<synchronous>, transform_indices = @transform_3, window_bounds = array<i64: 9, 8, 8>}, {pipeline_mode = #tpu.pipeline_mode<synchronous>, transform_indices = @transform_4, window_bounds = array<i64: 8, 1>}, {pipeline_mode = #tpu.pipeline_mode<synchronous>, transform_indices = @transform_5, window_bounds = array<i64: 8, 1>}, {pipeline_mode = #tpu.pipeline_mode<synchronous>, transform_indices = @transform_6, window_bounds = array<i64: 8, 1>}, {pipeline_mode = #tpu.pipeline_mode<synchronous>, transform_indices = @transform_7, window_bounds = array<i64: 9, 8, 8>}, {pipeline_mode = #tpu.pipeline_mode<synchronous>, transform_indices = @transform_8, window_bounds = array<i64: 8, 1>}, {pipeline_mode = #tpu.pipeline_mode<synchronous>, transform_indices = @transform_9, window_bounds = array<i64: 8, 512>}]} {
    %0 = tpu.iota {dimensions = array<i32: 1>} : vector<1x512xi32>
    %c255_i32 = arith.constant 255 : i32
    %1 = vector.broadcast %c255_i32 : i32 to vector<1x512xi32>
    %2 = arith.andi %0, %1 : vector<1x512xi32>
    %c4_i32 = arith.constant 4 : i32
    %3 = vector.broadcast %c4_i32 : i32 to vector<1x512xi32>
    %4 = arith.shrsi %2, %3 : vector<1x512xi32>
    %c15_i32 = arith.constant 15 : i32
    %5 = vector.broadcast %c15_i32 : i32 to vector<1x512xi32>
    %6 = arith.andi %2, %5 : vector<1x512xi32>
    %c1_i32 = arith.constant 1 : i32
    %7 = vector.broadcast %c1_i32 : i32 to vector<1x512xi32>
    %8 = arith.cmpi sge, %4, %7 : vector<1x512xi32>
    %c1_i32_0 = arith.constant 1 : i32
    %9 = vector.broadcast %c1_i32_0 : i32 to vector<1x512xi32>
    %10 = arith.cmpi sge, %6, %9 : vector<1x512xi32>
    %11 = arith.andi %8, %10 : vector<1x512xi1>
    %12 = arith.extui %11 : vector<1x512xi1> to vector<1x512xi32>
    %13 = arith.sitofp %12 : vector<1x512xi32> to vector<1x512xf32>
    %c1_i32_1 = arith.constant 1 : i32
    %14 = vector.broadcast %c1_i32_1 : i32 to vector<1x512xi32>
    %15 = arith.cmpi sge, %4, %14 : vector<1x512xi32>
    %16 = arith.extui %15 : vector<1x512xi1> to vector<1x512xi32>
    %17 = arith.sitofp %16 : vector<1x512xi32> to vector<1x512xf32>
    %c1_i32_2 = arith.constant 1 : i32
    %18 = vector.broadcast %c1_i32_2 : i32 to vector<1x512xi32>
    %19 = arith.cmpi sge, %4, %18 : vector<1x512xi32>
    %c15_i32_3 = arith.constant 15 : i32
    %20 = vector.broadcast %c15_i32_3 : i32 to vector<1x512xi32>
    %21 = arith.cmpi slt, %6, %20 : vector<1x512xi32>
    %22 = arith.andi %19, %21 : vector<1x512xi1>
    %23 = arith.extui %22 : vector<1x512xi1> to vector<1x512xi32>
    %24 = arith.sitofp %23 : vector<1x512xi32> to vector<1x512xf32>
    %c1_i32_4 = arith.constant 1 : i32
    %25 = vector.broadcast %c1_i32_4 : i32 to vector<1x512xi32>
    %26 = arith.cmpi sge, %6, %25 : vector<1x512xi32>
    %27 = arith.extui %26 : vector<1x512xi1> to vector<1x512xi32>
    %28 = arith.sitofp %27 : vector<1x512xi32> to vector<1x512xf32>
    %c15_i32_5 = arith.constant 15 : i32
    %29 = vector.broadcast %c15_i32_5 : i32 to vector<1x512xi32>
    %30 = arith.cmpi slt, %6, %29 : vector<1x512xi32>
    %31 = arith.extui %30 : vector<1x512xi1> to vector<1x512xi32>
    %32 = arith.sitofp %31 : vector<1x512xi32> to vector<1x512xf32>
    %c15_i32_6 = arith.constant 15 : i32
    %33 = vector.broadcast %c15_i32_6 : i32 to vector<1x512xi32>
    %34 = arith.cmpi slt, %4, %33 : vector<1x512xi32>
    %c1_i32_7 = arith.constant 1 : i32
    %35 = vector.broadcast %c1_i32_7 : i32 to vector<1x512xi32>
    %36 = arith.cmpi sge, %6, %35 : vector<1x512xi32>
    %37 = arith.andi %34, %36 : vector<1x512xi1>
    %38 = arith.extui %37 : vector<1x512xi1> to vector<1x512xi32>
    %39 = arith.sitofp %38 : vector<1x512xi32> to vector<1x512xf32>
    %c15_i32_8 = arith.constant 15 : i32
    %40 = vector.broadcast %c15_i32_8 : i32 to vector<1x512xi32>
    %41 = arith.cmpi slt, %4, %40 : vector<1x512xi32>
    %42 = arith.extui %41 : vector<1x512xi1> to vector<1x512xi32>
    %43 = arith.sitofp %42 : vector<1x512xi32> to vector<1x512xf32>
    %c15_i32_9 = arith.constant 15 : i32
    %44 = vector.broadcast %c15_i32_9 : i32 to vector<1x512xi32>
    %45 = arith.cmpi slt, %4, %44 : vector<1x512xi32>
    %c15_i32_10 = arith.constant 15 : i32
    %46 = vector.broadcast %c15_i32_10 : i32 to vector<1x512xi32>
    %47 = arith.cmpi slt, %6, %46 : vector<1x512xi32>
    %48 = arith.andi %45, %47 : vector<1x512xi1>
    %49 = arith.extui %48 : vector<1x512xi1> to vector<1x512xi32>
    %50 = arith.sitofp %49 : vector<1x512xi32> to vector<1x512xf32>
    %c0 = arith.constant 0 : index
    %c0_11 = arith.constant 0 : index
    %51 = vector.load %arg3[%c0, %c0_11] : memref<8x1xf32, #tpu.memory_space<vmem>>, vector<8x1xf32>
    %c0_12 = arith.constant 0 : index
    %c0_13 = arith.constant 0 : index
    %52 = vector.load %arg5[%c0_12, %c0_13] : memref<8x1xf32, #tpu.memory_space<vmem>>, vector<8x1xf32>
    %c0_14 = arith.constant 0 : index
    %c0_15 = arith.constant 0 : index
    %53 = vector.load %arg9[%c0_14, %c0_15] : memref<8x1xf32, #tpu.memory_space<vmem>>, vector<8x1xf32>
    %c0_16 = arith.constant 0 : index
    %c0_17 = arith.constant 0 : index
    %54 = vector.load %arg6[%c0_16, %c0_17] : memref<8x1xf32, #tpu.memory_space<vmem>>, vector<8x1xf32>
    %c0_18 = arith.constant 0 : index
    %c0_19 = arith.constant 0 : index
    %55 = vector.load %arg7[%c0_18, %c0_19] : memref<8x1xf32, #tpu.memory_space<vmem>>, vector<8x1xf32>
    %c0_20 = arith.constant 0 : index
    %c0_21 = arith.constant 0 : index
    %56 = vector.load %arg2[%c0_20, %c0_21] : memref<8x4xf32, #tpu.memory_space<vmem>>, vector<8x4xf32>
    %c0_22 = arith.constant 0 : index
    %c0_23 = arith.constant 0 : index
    %57 = vector.load %arg1[%c0_22, %c0_23] : memref<4x512xf32, #tpu.memory_space<vmem>>, vector<4x512xf32>
    %cst = arith.constant dense<0.000000e+00> : vector<8x512xf32>
    %58 = tpu.matmul %56, %57, %cst {dimension_numbers = #tpu.dot_dimension_numbers<[1], [0], [0], [1], [0, 0, 1, 1], [], []>} : vector<8x4xf32>, vector<4x512xf32>, vector<8x512xf32> -> vector<8x512xf32>
    %59 = vector.broadcast %51 : vector<8x1xf32> to vector<8x512xf32>
    %60 = arith.addf %58, %59 : vector<8x512xf32>
    %c4 = arith.constant 4 : index
    %c0_24 = arith.constant 0 : index
    %c0_25 = arith.constant 0 : index
    %61 = vector.load %arg4[%c4, %c0_24, %c0_25] : memref<9x8x8xf32, #tpu.memory_space<vmem>>, vector<1x8x8xf32>
    %62 = vector.shape_cast %61 : vector<1x8x8xf32> to vector<8x8xf32>
    %cst_26 = arith.constant dense<0.000000e+00> : vector<8x512xf32>
    %63 = tpu.matmul %62, %60, %cst_26 {dimension_numbers = #tpu.dot_dimension_numbers<[1], [0], [0], [1], [0, 0, 1, 1], [], []>} : vector<8x8xf32>, vector<8x512xf32>, vector<8x512xf32> -> vector<8x512xf32>
    %c17_i32 = arith.constant 17 : i32
    %64 = tpu.dynamic_rotate %60 by %c17_i32 dim 1 : vector<8x512xf32>, i32 -> vector<8x512xf32>
    %c0_27 = arith.constant 0 : index
    %c0_28 = arith.constant 0 : index
    %c0_29 = arith.constant 0 : index
    %65 = vector.load %arg4[%c0_27, %c0_28, %c0_29] : memref<9x8x8xf32, #tpu.memory_space<vmem>>, vector<1x8x8xf32>
    %66 = vector.shape_cast %65 : vector<1x8x8xf32> to vector<8x8xf32>
    %cst_30 = arith.constant dense<0.000000e+00> : vector<8x512xf32>
    %67 = tpu.matmul %66, %64, %cst_30 {dimension_numbers = #tpu.dot_dimension_numbers<[1], [0], [0], [1], [0, 0, 1, 1], [], []>} : vector<8x8xf32>, vector<8x512xf32>, vector<8x512xf32> -> vector<8x512xf32>
    %68 = vector.broadcast %13 : vector<1x512xf32> to vector<8x512xf32>
    %69 = arith.mulf %68, %67 : vector<8x512xf32>
    %70 = arith.addf %63, %69 : vector<8x512xf32>
    %c16_i32 = arith.constant 16 : i32
    %71 = tpu.dynamic_rotate %60 by %c16_i32 dim 1 : vector<8x512xf32>, i32 -> vector<8x512xf32>
    %c1 = arith.constant 1 : index
    %c0_31 = arith.constant 0 : index
    %c0_32 = arith.constant 0 : index
    %72 = vector.load %arg4[%c1, %c0_31, %c0_32] : memref<9x8x8xf32, #tpu.memory_space<vmem>>, vector<1x8x8xf32>
    %73 = vector.shape_cast %72 : vector<1x8x8xf32> to vector<8x8xf32>
    %cst_33 = arith.constant dense<0.000000e+00> : vector<8x512xf32>
    %74 = tpu.matmul %73, %71, %cst_33 {dimension_numbers = #tpu.dot_dimension_numbers<[1], [0], [0], [1], [0, 0, 1, 1], [], []>} : vector<8x8xf32>, vector<8x512xf32>, vector<8x512xf32> -> vector<8x512xf32>
    %75 = vector.broadcast %17 : vector<1x512xf32> to vector<8x512xf32>
    %76 = arith.mulf %75, %74 : vector<8x512xf32>
    %77 = arith.addf %70, %76 : vector<8x512xf32>
    %c15_i32_34 = arith.constant 15 : i32
    %78 = tpu.dynamic_rotate %60 by %c15_i32_34 dim 1 : vector<8x512xf32>, i32 -> vector<8x512xf32>
    %c2 = arith.constant 2 : index
    %c0_35 = arith.constant 0 : index
    %c0_36 = arith.constant 0 : index
    %79 = vector.load %arg4[%c2, %c0_35, %c0_36] : memref<9x8x8xf32, #tpu.memory_space<vmem>>, vector<1x8x8xf32>
    %80 = vector.shape_cast %79 : vector<1x8x8xf32> to vector<8x8xf32>
    %cst_37 = arith.constant dense<0.000000e+00> : vector<8x512xf32>
    %81 = tpu.matmul %80, %78, %cst_37 {dimension_numbers = #tpu.dot_dimension_numbers<[1], [0], [0], [1], [0, 0, 1, 1], [], []>} : vector<8x8xf32>, vector<8x512xf32>, vector<8x512xf32> -> vector<8x512xf32>
    %82 = vector.broadcast %24 : vector<1x512xf32> to vector<8x512xf32>
    %83 = arith.mulf %82, %81 : vector<8x512xf32>
    %84 = arith.addf %77, %83 : vector<8x512xf32>
    %c1_i32_38 = arith.constant 1 : i32
    %85 = tpu.dynamic_rotate %60 by %c1_i32_38 dim 1 : vector<8x512xf32>, i32 -> vector<8x512xf32>
    %c3 = arith.constant 3 : index
    %c0_39 = arith.constant 0 : index
    %c0_40 = arith.constant 0 : index
    %86 = vector.load %arg4[%c3, %c0_39, %c0_40] : memref<9x8x8xf32, #tpu.memory_space<vmem>>, vector<1x8x8xf32>
    %87 = vector.shape_cast %86 : vector<1x8x8xf32> to vector<8x8xf32>
    %cst_41 = arith.constant dense<0.000000e+00> : vector<8x512xf32>
    %88 = tpu.matmul %87, %85, %cst_41 {dimension_numbers = #tpu.dot_dimension_numbers<[1], [0], [0], [1], [0, 0, 1, 1], [], []>} : vector<8x8xf32>, vector<8x512xf32>, vector<8x512xf32> -> vector<8x512xf32>
    %89 = vector.broadcast %28 : vector<1x512xf32> to vector<8x512xf32>
    %90 = arith.mulf %89, %88 : vector<8x512xf32>
    %91 = arith.addf %84, %90 : vector<8x512xf32>
    %c511_i32 = arith.constant 511 : i32
    %92 = tpu.dynamic_rotate %60 by %c511_i32 dim 1 : vector<8x512xf32>, i32 -> vector<8x512xf32>
    %c5 = arith.constant 5 : index
    %c0_42 = arith.constant 0 : index
    %c0_43 = arith.constant 0 : index
    %93 = vector.load %arg4[%c5, %c0_42, %c0_43] : memref<9x8x8xf32, #tpu.memory_space<vmem>>, vector<1x8x8xf32>
    %94 = vector.shape_cast %93 : vector<1x8x8xf32> to vector<8x8xf32>
    %cst_44 = arith.constant dense<0.000000e+00> : vector<8x512xf32>
    %95 = tpu.matmul %94, %92, %cst_44 {dimension_numbers = #tpu.dot_dimension_numbers<[1], [0], [0], [1], [0, 0, 1, 1], [], []>} : vector<8x8xf32>, vector<8x512xf32>, vector<8x512xf32> -> vector<8x512xf32>
    %96 = vector.broadcast %32 : vector<1x512xf32> to vector<8x512xf32>
    %97 = arith.mulf %96, %95 : vector<8x512xf32>
    %98 = arith.addf %91, %97 : vector<8x512xf32>
    %c497_i32 = arith.constant 497 : i32
    %99 = tpu.dynamic_rotate %60 by %c497_i32 dim 1 : vector<8x512xf32>, i32 -> vector<8x512xf32>
    %c6 = arith.constant 6 : index
    %c0_45 = arith.constant 0 : index
    %c0_46 = arith.constant 0 : index
    %100 = vector.load %arg4[%c6, %c0_45, %c0_46] : memref<9x8x8xf32, #tpu.memory_space<vmem>>, vector<1x8x8xf32>
    %101 = vector.shape_cast %100 : vector<1x8x8xf32> to vector<8x8xf32>
    %cst_47 = arith.constant dense<0.000000e+00> : vector<8x512xf32>
    %102 = tpu.matmul %101, %99, %cst_47 {dimension_numbers = #tpu.dot_dimension_numbers<[1], [0], [0], [1], [0, 0, 1, 1], [], []>} : vector<8x8xf32>, vector<8x512xf32>, vector<8x512xf32> -> vector<8x512xf32>
    %103 = vector.broadcast %39 : vector<1x512xf32> to vector<8x512xf32>
    %104 = arith.mulf %103, %102 : vector<8x512xf32>
    %105 = arith.addf %98, %104 : vector<8x512xf32>
    %c496_i32 = arith.constant 496 : i32
    %106 = tpu.dynamic_rotate %60 by %c496_i32 dim 1 : vector<8x512xf32>, i32 -> vector<8x512xf32>
    %c7 = arith.constant 7 : index
    %c0_48 = arith.constant 0 : index
    %c0_49 = arith.constant 0 : index
    %107 = vector.load %arg4[%c7, %c0_48, %c0_49] : memref<9x8x8xf32, #tpu.memory_space<vmem>>, vector<1x8x8xf32>
    %108 = vector.shape_cast %107 : vector<1x8x8xf32> to vector<8x8xf32>
    %cst_50 = arith.constant dense<0.000000e+00> : vector<8x512xf32>
    %109 = tpu.matmul %108, %106, %cst_50 {dimension_numbers = #tpu.dot_dimension_numbers<[1], [0], [0], [1], [0, 0, 1, 1], [], []>} : vector<8x8xf32>, vector<8x512xf32>, vector<8x512xf32> -> vector<8x512xf32>
    %110 = vector.broadcast %43 : vector<1x512xf32> to vector<8x512xf32>
    %111 = arith.mulf %110, %109 : vector<8x512xf32>
    %112 = arith.addf %105, %111 : vector<8x512xf32>
    %c495_i32 = arith.constant 495 : i32
    %113 = tpu.dynamic_rotate %60 by %c495_i32 dim 1 : vector<8x512xf32>, i32 -> vector<8x512xf32>
    %c8 = arith.constant 8 : index
    %c0_51 = arith.constant 0 : index
    %c0_52 = arith.constant 0 : index
    %114 = vector.load %arg4[%c8, %c0_51, %c0_52] : memref<9x8x8xf32, #tpu.memory_space<vmem>>, vector<1x8x8xf32>
    %115 = vector.shape_cast %114 : vector<1x8x8xf32> to vector<8x8xf32>
    %cst_53 = arith.constant dense<0.000000e+00> : vector<8x512xf32>
    %116 = tpu.matmul %115, %113, %cst_53 {dimension_numbers = #tpu.dot_dimension_numbers<[1], [0], [0], [1], [0, 0, 1, 1], [], []>} : vector<8x8xf32>, vector<8x512xf32>, vector<8x512xf32> -> vector<8x512xf32>
    %117 = vector.broadcast %50 : vector<1x512xf32> to vector<8x512xf32>
    %118 = arith.mulf %117, %116 : vector<8x512xf32>
    %119 = arith.addf %112, %118 : vector<8x512xf32>
    %120 = vector.broadcast %52 : vector<8x1xf32> to vector<8x512xf32>
    %121 = arith.addf %119, %120 : vector<8x512xf32>
    %cst_54 = arith.constant 1.000000e+00 : f32
    %122 = vector.broadcast %cst_54 : f32 to vector<512x1xf32>
    %cst_55 = arith.constant dense<0.000000e+00> : vector<8x1xf32>
    %123 = tpu.matmul %121, %122, %cst_55 {dimension_numbers = #tpu.dot_dimension_numbers<[1], [0], [0], [1], [0, 0, 1, 1], [], []>} : vector<8x512xf32>, vector<512x1xf32>, vector<8x1xf32> -> vector<8x1xf32>
    %cst_56 = arith.constant 0.001953125 : f32
    %124 = vector.broadcast %cst_56 : f32 to vector<8x1xf32>
    %125 = arith.mulf %123, %124 : vector<8x1xf32>
    %126 = vector.broadcast %125 : vector<8x1xf32> to vector<8x512xf32>
    %127 = arith.subf %121, %126 : vector<8x512xf32>
    %128 = arith.mulf %127, %127 : vector<8x512xf32>
    %cst_57 = arith.constant dense<0.000000e+00> : vector<8x1xf32>
    %129 = tpu.matmul %128, %122, %cst_57 {dimension_numbers = #tpu.dot_dimension_numbers<[1], [0], [0], [1], [0, 0, 1, 1], [], []>} : vector<8x512xf32>, vector<512x1xf32>, vector<8x1xf32> -> vector<8x1xf32>
    %cst_58 = arith.constant 0.001953125 : f32
    %130 = vector.broadcast %cst_58 : f32 to vector<8x1xf32>
    %131 = arith.mulf %129, %130 : vector<8x1xf32>
    %cst_59 = arith.constant 9.99999974E-6 : f32
    %132 = vector.broadcast %cst_59 : f32 to vector<8x1xf32>
    %133 = arith.addf %131, %132 : vector<8x1xf32>
    %134 = math.rsqrt %133 : vector<8x1xf32>
    %135 = arith.mulf %54, %134 : vector<8x1xf32>
    %136 = vector.broadcast %135 : vector<8x1xf32> to vector<8x512xf32>
    %137 = arith.mulf %127, %136 : vector<8x512xf32>
    %138 = vector.broadcast %55 : vector<8x1xf32> to vector<8x512xf32>
    %139 = arith.addf %137, %138 : vector<8x512xf32>
    %cst_60 = arith.constant 0.000000e+00 : f32
    %140 = vector.broadcast %cst_60 : f32 to vector<8x512xf32>
    %141 = arith.cmpf oge, %139, %140 : vector<8x512xf32>
    %cst_61 = arith.constant 2.000000e-01 : f32
    %142 = vector.broadcast %cst_61 : f32 to vector<8x512xf32>
    %143 = arith.mulf %142, %139 : vector<8x512xf32>
    %144 = arith.select %141, %139, %143 : vector<8x512xi1>, vector<8x512xf32>
    %c4_62 = arith.constant 4 : index
    %c0_63 = arith.constant 0 : index
    %c0_64 = arith.constant 0 : index
    %145 = vector.load %arg8[%c4_62, %c0_63, %c0_64] : memref<9x8x8xf32, #tpu.memory_space<vmem>>, vector<1x8x8xf32>
    %146 = vector.shape_cast %145 : vector<1x8x8xf32> to vector<8x8xf32>
    %cst_65 = arith.constant dense<0.000000e+00> : vector<8x512xf32>
    %147 = tpu.matmul %146, %144, %cst_65 {dimension_numbers = #tpu.dot_dimension_numbers<[1], [0], [0], [1], [0, 0, 1, 1], [], []>} : vector<8x8xf32>, vector<8x512xf32>, vector<8x512xf32> -> vector<8x512xf32>
    %c17_i32_66 = arith.constant 17 : i32
    %148 = tpu.dynamic_rotate %144 by %c17_i32_66 dim 1 : vector<8x512xf32>, i32 -> vector<8x512xf32>
    %c0_67 = arith.constant 0 : index
    %c0_68 = arith.constant 0 : index
    %c0_69 = arith.constant 0 : index
    %149 = vector.load %arg8[%c0_67, %c0_68, %c0_69] : memref<9x8x8xf32, #tpu.memory_space<vmem>>, vector<1x8x8xf32>
    %150 = vector.shape_cast %149 : vector<1x8x8xf32> to vector<8x8xf32>
    %cst_70 = arith.constant dense<0.000000e+00> : vector<8x512xf32>
    %151 = tpu.matmul %150, %148, %cst_70 {dimension_numbers = #tpu.dot_dimension_numbers<[1], [0], [0], [1], [0, 0, 1, 1], [], []>} : vector<8x8xf32>, vector<8x512xf32>, vector<8x512xf32> -> vector<8x512xf32>
    %152 = vector.broadcast %13 : vector<1x512xf32> to vector<8x512xf32>
    %153 = arith.mulf %152, %151 : vector<8x512xf32>
    %154 = arith.addf %147, %153 : vector<8x512xf32>
    %c16_i32_71 = arith.constant 16 : i32
    %155 = tpu.dynamic_rotate %144 by %c16_i32_71 dim 1 : vector<8x512xf32>, i32 -> vector<8x512xf32>
    %c1_72 = arith.constant 1 : index
    %c0_73 = arith.constant 0 : index
    %c0_74 = arith.constant 0 : index
    %156 = vector.load %arg8[%c1_72, %c0_73, %c0_74] : memref<9x8x8xf32, #tpu.memory_space<vmem>>, vector<1x8x8xf32>
    %157 = vector.shape_cast %156 : vector<1x8x8xf32> to vector<8x8xf32>
    %cst_75 = arith.constant dense<0.000000e+00> : vector<8x512xf32>
    %158 = tpu.matmul %157, %155, %cst_75 {dimension_numbers = #tpu.dot_dimension_numbers<[1], [0], [0], [1], [0, 0, 1, 1], [], []>} : vector<8x8xf32>, vector<8x512xf32>, vector<8x512xf32> -> vector<8x512xf32>
    %159 = vector.broadcast %17 : vector<1x512xf32> to vector<8x512xf32>
    %160 = arith.mulf %159, %158 : vector<8x512xf32>
    %161 = arith.addf %154, %160 : vector<8x512xf32>
    %c15_i32_76 = arith.constant 15 : i32
    %162 = tpu.dynamic_rotate %144 by %c15_i32_76 dim 1 : vector<8x512xf32>, i32 -> vector<8x512xf32>
    %c2_77 = arith.constant 2 : index
    %c0_78 = arith.constant 0 : index
    %c0_79 = arith.constant 0 : index
    %163 = vector.load %arg8[%c2_77, %c0_78, %c0_79] : memref<9x8x8xf32, #tpu.memory_space<vmem>>, vector<1x8x8xf32>
    %164 = vector.shape_cast %163 : vector<1x8x8xf32> to vector<8x8xf32>
    %cst_80 = arith.constant dense<0.000000e+00> : vector<8x512xf32>
    %165 = tpu.matmul %164, %162, %cst_80 {dimension_numbers = #tpu.dot_dimension_numbers<[1], [0], [0], [1], [0, 0, 1, 1], [], []>} : vector<8x8xf32>, vector<8x512xf32>, vector<8x512xf32> -> vector<8x512xf32>
    %166 = vector.broadcast %24 : vector<1x512xf32> to vector<8x512xf32>
    %167 = arith.mulf %166, %165 : vector<8x512xf32>
    %168 = arith.addf %161, %167 : vector<8x512xf32>
    %c1_i32_81 = arith.constant 1 : i32
    %169 = tpu.dynamic_rotate %144 by %c1_i32_81 dim 1 : vector<8x512xf32>, i32 -> vector<8x512xf32>
    %c3_82 = arith.constant 3 : index
    %c0_83 = arith.constant 0 : index
    %c0_84 = arith.constant 0 : index
    %170 = vector.load %arg8[%c3_82, %c0_83, %c0_84] : memref<9x8x8xf32, #tpu.memory_space<vmem>>, vector<1x8x8xf32>
    %171 = vector.shape_cast %170 : vector<1x8x8xf32> to vector<8x8xf32>
    %cst_85 = arith.constant dense<0.000000e+00> : vector<8x512xf32>
    %172 = tpu.matmul %171, %169, %cst_85 {dimension_numbers = #tpu.dot_dimension_numbers<[1], [0], [0], [1], [0, 0, 1, 1], [], []>} : vector<8x8xf32>, vector<8x512xf32>, vector<8x512xf32> -> vector<8x512xf32>
    %173 = vector.broadcast %28 : vector<1x512xf32> to vector<8x512xf32>
    %174 = arith.mulf %173, %172 : vector<8x512xf32>
    %175 = arith.addf %168, %174 : vector<8x512xf32>
    %c511_i32_86 = arith.constant 511 : i32
    %176 = tpu.dynamic_rotate %144 by %c511_i32_86 dim 1 : vector<8x512xf32>, i32 -> vector<8x512xf32>
    %c5_87 = arith.constant 5 : index
    %c0_88 = arith.constant 0 : index
    %c0_89 = arith.constant 0 : index
    %177 = vector.load %arg8[%c5_87, %c0_88, %c0_89] : memref<9x8x8xf32, #tpu.memory_space<vmem>>, vector<1x8x8xf32>
    %178 = vector.shape_cast %177 : vector<1x8x8xf32> to vector<8x8xf32>
    %cst_90 = arith.constant dense<0.000000e+00> : vector<8x512xf32>
    %179 = tpu.matmul %178, %176, %cst_90 {dimension_numbers = #tpu.dot_dimension_numbers<[1], [0], [0], [1], [0, 0, 1, 1], [], []>} : vector<8x8xf32>, vector<8x512xf32>, vector<8x512xf32> -> vector<8x512xf32>
    %180 = vector.broadcast %32 : vector<1x512xf32> to vector<8x512xf32>
    %181 = arith.mulf %180, %179 : vector<8x512xf32>
    %182 = arith.addf %175, %181 : vector<8x512xf32>
    %c497_i32_91 = arith.constant 497 : i32
    %183 = tpu.dynamic_rotate %144 by %c497_i32_91 dim 1 : vector<8x512xf32>, i32 -> vector<8x512xf32>
    %c6_92 = arith.constant 6 : index
    %c0_93 = arith.constant 0 : index
    %c0_94 = arith.constant 0 : index
    %184 = vector.load %arg8[%c6_92, %c0_93, %c0_94] : memref<9x8x8xf32, #tpu.memory_space<vmem>>, vector<1x8x8xf32>
    %185 = vector.shape_cast %184 : vector<1x8x8xf32> to vector<8x8xf32>
    %cst_95 = arith.constant dense<0.000000e+00> : vector<8x512xf32>
    %186 = tpu.matmul %185, %183, %cst_95 {dimension_numbers = #tpu.dot_dimension_numbers<[1], [0], [0], [1], [0, 0, 1, 1], [], []>} : vector<8x8xf32>, vector<8x512xf32>, vector<8x512xf32> -> vector<8x512xf32>
    %187 = vector.broadcast %39 : vector<1x512xf32> to vector<8x512xf32>
    %188 = arith.mulf %187, %186 : vector<8x512xf32>
    %189 = arith.addf %182, %188 : vector<8x512xf32>
    %c496_i32_96 = arith.constant 496 : i32
    %190 = tpu.dynamic_rotate %144 by %c496_i32_96 dim 1 : vector<8x512xf32>, i32 -> vector<8x512xf32>
    %c7_97 = arith.constant 7 : index
    %c0_98 = arith.constant 0 : index
    %c0_99 = arith.constant 0 : index
    %191 = vector.load %arg8[%c7_97, %c0_98, %c0_99] : memref<9x8x8xf32, #tpu.memory_space<vmem>>, vector<1x8x8xf32>
    %192 = vector.shape_cast %191 : vector<1x8x8xf32> to vector<8x8xf32>
    %cst_100 = arith.constant dense<0.000000e+00> : vector<8x512xf32>
    %193 = tpu.matmul %192, %190, %cst_100 {dimension_numbers = #tpu.dot_dimension_numbers<[1], [0], [0], [1], [0, 0, 1, 1], [], []>} : vector<8x8xf32>, vector<8x512xf32>, vector<8x512xf32> -> vector<8x512xf32>
    %194 = vector.broadcast %43 : vector<1x512xf32> to vector<8x512xf32>
    %195 = arith.mulf %194, %193 : vector<8x512xf32>
    %196 = arith.addf %189, %195 : vector<8x512xf32>
    %c495_i32_101 = arith.constant 495 : i32
    %197 = tpu.dynamic_rotate %144 by %c495_i32_101 dim 1 : vector<8x512xf32>, i32 -> vector<8x512xf32>
    %c8_102 = arith.constant 8 : index
    %c0_103 = arith.constant 0 : index
    %c0_104 = arith.constant 0 : index
    %198 = vector.load %arg8[%c8_102, %c0_103, %c0_104] : memref<9x8x8xf32, #tpu.memory_space<vmem>>, vector<1x8x8xf32>
    %199 = vector.shape_cast %198 : vector<1x8x8xf32> to vector<8x8xf32>
    %cst_105 = arith.constant dense<0.000000e+00> : vector<8x512xf32>
    %200 = tpu.matmul %199, %197, %cst_105 {dimension_numbers = #tpu.dot_dimension_numbers<[1], [0], [0], [1], [0, 0, 1, 1], [], []>} : vector<8x8xf32>, vector<8x512xf32>, vector<8x512xf32> -> vector<8x512xf32>
    %201 = vector.broadcast %50 : vector<1x512xf32> to vector<8x512xf32>
    %202 = arith.mulf %201, %200 : vector<8x512xf32>
    %203 = arith.addf %196, %202 : vector<8x512xf32>
    %204 = vector.broadcast %53 : vector<8x1xf32> to vector<8x512xf32>
    %205 = arith.addf %203, %204 : vector<8x512xf32>
    %206 = arith.addf %205, %60 : vector<8x512xf32>
    %cst_106 = arith.constant 0.707106769 : f32
    %207 = vector.broadcast %cst_106 : f32 to vector<8x512xf32>
    %208 = arith.mulf %206, %207 : vector<8x512xf32>
    %c0_107 = arith.constant 0 : index
    %c0_108 = arith.constant 0 : index
    %209 = vector.load %arg10[%c0_107, %c0_108] : memref<8x512xf32, #tpu.memory_space<vmem>>, vector<8x512xf32>
    tpu.vector_store %arg10[%c0_107, %c0_108], %208 {strides = array<i32>} : memref<8x512xf32, #tpu.memory_space<vmem>>, vector<8x512xf32>,
    return
  }
  func.func @transform_0(%arg0: i32) -> (i32, i32) {
    %c0_i32 = arith.constant 0 : i32
    %c0_i32_0 = arith.constant 0 : i32
    %c0_i32_1 = arith.constant 0 : i32
    return %c0_i32, %c0_i32_0 : i32, i32
  }
  func.func @transform_1(%arg0: i32) -> (i32, i32) {
    %c0_i32 = arith.constant 0 : i32
    %c0_i32_0 = arith.constant 0 : i32
    %c0_i32_1 = arith.constant 0 : i32
    return %c0_i32, %c0_i32_0 : i32, i32
  }
  func.func @transform_2(%arg0: i32) -> (i32, i32) {
    %c0_i32 = arith.constant 0 : i32
    %c0_i32_0 = arith.constant 0 : i32
    %c0_i32_1 = arith.constant 0 : i32
    return %c0_i32, %c0_i32_0 : i32, i32
  }
  func.func @transform_3(%arg0: i32) -> (i32, i32, i32) {
    %c0_i32 = arith.constant 0 : i32
    %c0_i32_0 = arith.constant 0 : i32
    %c0_i32_1 = arith.constant 0 : i32
    %c0_i32_2 = arith.constant 0 : i32
    return %c0_i32, %c0_i32_0, %c0_i32_1 : i32, i32, i32
  }
  func.func @transform_4(%arg0: i32) -> (i32, i32) {
    %c0_i32 = arith.constant 0 : i32
    %c0_i32_0 = arith.constant 0 : i32
    %c0_i32_1 = arith.constant 0 : i32
    return %c0_i32, %c0_i32_0 : i32, i32
  }
  func.func @transform_5(%arg0: i32) -> (i32, i32) {
    %c0_i32 = arith.constant 0 : i32
    %c0_i32_0 = arith.constant 0 : i32
    %c0_i32_1 = arith.constant 0 : i32
    return %c0_i32, %c0_i32_0 : i32, i32
  }
  func.func @transform_6(%arg0: i32) -> (i32, i32) {
    %c0_i32 = arith.constant 0 : i32
    %c0_i32_0 = arith.constant 0 : i32
    %c0_i32_1 = arith.constant 0 : i32
    return %c0_i32, %c0_i32_0 : i32, i32
  }
  func.func @transform_7(%arg0: i32) -> (i32, i32, i32) {
    %c0_i32 = arith.constant 0 : i32
    %c0_i32_0 = arith.constant 0 : i32
    %c0_i32_1 = arith.constant 0 : i32
    %c0_i32_2 = arith.constant 0 : i32
    return %c0_i32, %c0_i32_0, %c0_i32_1 : i32, i32, i32
  }
  func.func @transform_8(%arg0: i32) -> (i32, i32) {
    %c0_i32 = arith.constant 0 : i32
    %c0_i32_0 = arith.constant 0 : i32
    %c0_i32_1 = arith.constant 0 : i32
    return %c0_i32, %c0_i32_0 : i32, i32
  }
  func.func @transform_9(%arg0: i32) -> (i32, i32) {
    %c0_i32 = arith.constant 0 : i32
    %c0_i32_0 = arith.constant 0 : i32
    %c0_i32_1 = arith.constant 0 : i32
    return %c0_i32, %c0_i32_0 : i32, i32
  }
}

</mosaic_0001>

<llo_original>
// kernel: tpu_custom_call.1
$region0: #{tpu_custom_call.1}
  #allocation0 [shape = 'u32[]', space=smem, size = 0x4, offset = 0x4, fixed_abs, tag = 'smem constant byte address 0x4 - core index']
  #allocation1 [shape = 'u32[144,128]{1,0:T(1,128)}', space=vmem, size = 0x12000, scoped, tag = 'internal scratch']
  %s0 = inlined_call_operand.vmem [shape: f32[4,512], index: 0, kind: input, shape index: {}]
  %s1 = inlined_call_operand.vmem [shape: f32[8,4], index: 1, kind: input, shape index: {}]
  %s2 = inlined_call_operand.vmem [shape: f32[8,1], index: 2, kind: input, shape index: {}]
  %s3 = inlined_call_operand.vmem [shape: f32[9,8,8], index: 3, kind: input, shape index: {}]
  %s4 = inlined_call_operand.vmem [shape: f32[8,1], index: 4, kind: input, shape index: {}]
  %s5 = inlined_call_operand.vmem [shape: f32[8,1], index: 5, kind: input, shape index: {}]
  %s6 = inlined_call_operand.vmem [shape: f32[8,1], index: 6, kind: input, shape index: {}]
  %s7 = inlined_call_operand.vmem [shape: f32[9,8,8], index: 7, kind: input, shape index: {}]
  %s8 = inlined_call_operand.vmem [shape: f32[8,1], index: 8, kind: input, shape index: {}]
  %s9 = inlined_call_operand.hbm [shape: f32[8,512], index: 9, kind: output, shape index: {}]
  %s10 = sld [smem:[#allocation0]]
  $region46: #{tpu_custom_call.1} parent=0
    _
  %s12 = ssub.s32 1, %s10
  %s13 = scalar_select 0, %s12, %s10
  $region1: #{tpu_custom_call.1} parent=0
    #allocation2 [shape = 'u8[16384]{0}', space=vmem, size = 0x4000, scoped, tag = 'output window, operand 0, single buffered']
    #allocation3 [shape = 's32[1]{0}', space=sflag, size = 0x4, scoped, tag = 'scoped memory for tpu_custom_call.1']
    %14 = vsyncpa [#allocation3], 0
    // Predicated region
    $region2: #{tpu_custom_call.1} parent=1 // pred_check
      _
    $region3: #{tpu_custom_call.1} parent=1 // pred_check_branch
      %16 = sbr.rel (0) target = $region5
    $region4: #{tpu_custom_call.1} parent=1 // pred_region
      _
    $region5: #{tpu_custom_call.1} parent=1 // pred_fallthru
      _
    // Predicated region
    $region6: #{tpu_custom_call.1} parent=1 // pred_check
      _
    $region7: #{tpu_custom_call.1} parent=1 // pred_check_branch
      %18 = sbr.rel (0) target = $region9
    $region8: #{tpu_custom_call.1} parent=1 // pred_region
      _
    $region9: #{tpu_custom_call.1} parent=1 // pred_fallthru
      _
    // Predicated region
    $region10: #{tpu_custom_call.1} parent=1 // pred_check
      _
    $region11: #{tpu_custom_call.1} parent=1 // pred_check_branch
      %20 = sbr.rel (0) target = $region13
    $region12: #{tpu_custom_call.1} parent=1 // pred_region
      _
    $region13: #{tpu_custom_call.1} parent=1 // pred_fallthru
      _
    // Predicated region
    $region14: #{tpu_custom_call.1} parent=1 // pred_check
      _
    $region15: #{tpu_custom_call.1} parent=1 // pred_check_branch
      %22 = sbr.rel (0) target = $region17
    $region16: #{tpu_custom_call.1} parent=1 // pred_region
      _
    $region17: #{tpu_custom_call.1} parent=1 // pred_fallthru
      _
    // Predicated region
    $region18: #{tpu_custom_call.1} parent=1 // pred_check
      _
    $region19: #{tpu_custom_call.1} parent=1 // pred_check_branch
      %24 = sbr.rel (0) target = $region21
    $region20: #{tpu_custom_call.1} parent=1 // pred_region
      _
    $region21: #{tpu_custom_call.1} parent=1 // pred_fallthru
      _
    // Predicated region
    $region22: #{tpu_custom_call.1} parent=1 // pred_check
      _
    $region23: #{tpu_custom_call.1} parent=1 // pred_check_branch
      %26 = sbr.rel (0) target = $region25
    $region24: #{tpu_custom_call.1} parent=1 // pred_region
      _
    $region25: #{tpu_custom_call.1} parent=1 // pred_fallthru
      _
    // Predicated region
    $region26: #{tpu_custom_call.1} parent=1 // pred_check
      _
    $region27: #{tpu_custom_call.1} parent=1 // pred_check_branch
      %28 = sbr.rel (0) target = $region29
    $region28: #{tpu_custom_call.1} parent=1 // pred_region
      _
    $region29: #{tpu_custom_call.1} parent=1 // pred_fallthru
      _
    // Predicated region
    $region30: #{tpu_custom_call.1} parent=1 // pred_check
      _
    $region31: #{tpu_custom_call.1} parent=1 // pred_check_branch
      %30 = sbr.rel (0) target = $region33
    $region32: #{tpu_custom_call.1} parent=1 // pred_region
      _
    $region33: #{tpu_custom_call.1} parent=1 // pred_fallthru
      _
    // Predicated region
    $region34: #{tpu_custom_call.1} parent=1 // pred_check
      _
    $region35: #{tpu_custom_call.1} parent=1 // pred_check_branch
      %32 = sbr.rel (0) target = $region37
    $region36: #{tpu_custom_call.1} parent=1 // pred_region
      _
    $region37: #{tpu_custom_call.1} parent=1 // pred_fallthru
      _
    %v33 = vlaneseq
    %v34 = vand.u32 %v33, 127
    %v35 = vadd.s32 %v34, 128
    %v36 = vadd.s32 %v34, 256
    %v37 = vadd.s32 %v34, 384
    %v38 = vand.u32 %v34, 255
    %v39 = vand.u32 %v35, 255
    %v40 = vand.u32 %v36, 255
    %v41 = vand.u32 %v37, 255
    %v42 = vshra.s32 %v38, 4
    %v43 = vshra.s32 %v39, 4
    %v44 = vshra.s32 %v40, 4
    %v45 = vshra.s32 %v41, 4
    %v46 = vand.u32 %v38, 15
    %v47 = vand.u32 %v39, 15
    %v48 = vand.u32 %v40, 15
    %v49 = vand.u32 %v41, 15
    %vm50 = vcmp.ge.s32.totalorder %v42, 1
    %vm51 = vcmp.ge.s32.totalorder %v43, 1
    %vm52 = vcmp.ge.s32.totalorder %v44, 1
    %vm53 = vcmp.ge.s32.totalorder %v45, 1
    %vm54 = vcmp.ge.s32.totalorder %v46, 1
    %vm55 = vcmp.ge.s32.totalorder %v47, 1
    %vm56 = vcmp.ge.s32.totalorder %v48, 1
    %vm57 = vcmp.ge.s32.totalorder %v49, 1
    %vm58 = vmand %vm50, %vm54
    %vm59 = vmand %vm51, %vm55
    %vm60 = vmand %vm52, %vm56
    %vm61 = vmand %vm53, %vm57
    %v62 = vsel %vm58, 1, 0
    %v63 = vsel %vm59, 1, 0
    %v64 = vsel %vm60, 1, 0
    %v65 = vsel %vm61, 1, 0
    %v66 = vcvt.s32.f32 %v62
    %v67 = vcvt.s32.f32 %v63
    %v68 = vcvt.s32.f32 %v64
    %v69 = vcvt.s32.f32 %v65
    %v70 = vsel %vm50, 1, 0
    %v71 = vsel %vm51, 1, 0
    %v72 = vsel %vm52, 1, 0
    %v73 = vsel %vm53, 1, 0
    %v74 = vcvt.s32.f32 %v70
    %v75 = vcvt.s32.f32 %v71
    %v76 = vcvt.s32.f32 %v72
    %v77 = vcvt.s32.f32 %v73
    %vm78 = vcmp.lt.s32.totalorder %v46, 15
    %vm79 = vcmp.lt.s32.totalorder %v47, 15
    %vm80 = vcmp.lt.s32.totalorder %v48, 15
    %vm81 = vcmp.lt.s32.totalorder %v49, 15
    %vm82 = vmand %vm50, %vm78
    %vm83 = vmand %vm51, %vm79
    %vm84 = vmand %vm52, %vm80
    %vm85 = vmand %vm53, %vm81
    %v86 = vsel %vm82, 1, 0
    %v87 = vsel %vm83, 1, 0
    %v88 = vsel %vm84, 1, 0
    %v89 = vsel %vm85, 1, 0
    %v90 = vcvt.s32.f32 %v86
    %v91 = vcvt.s32.f32 %v87
    %v92 = vcvt.s32.f32 %v88
    %v93 = vcvt.s32.f32 %v89
    %v94 = vsel %vm54, 1, 0
    %v95 = vsel %vm55, 1, 0
    %v96 = vsel %vm56, 1, 0
    %v97 = vsel %vm57, 1, 0
    %v98 = vcvt.s32.f32 %v94
    %v99 = vcvt.s32.f32 %v95
    %v100 = vcvt.s32.f32 %v96
    %v101 = vcvt.s32.f32 %v97
    %v102 = vsel %vm78, 1, 0
    %v103 = vsel %vm79, 1, 0
    %v104 = vsel %vm80, 1, 0
    %v105 = vsel %vm81, 1, 0
    %v106 = vcvt.s32.f32 %v102
    %v107 = vcvt.s32.f32 %v103
    %v108 = vcvt.s32.f32 %v104
    %v109 = vcvt.s32.f32 %v105
    %vm110 = vcmp.lt.s32.totalorder %v42, 15
    %vm111 = vcmp.lt.s32.totalorder %v43, 15
    %vm112 = vcmp.lt.s32.totalorder %v44, 15
    %vm113 = vcmp.lt.s32.totalorder %v45, 15
    %vm114 = vmand %vm110, %vm54
    %vm115 = vmand %vm111, %vm55
    %vm116 = vmand %vm112, %vm56
    %vm117 = vmand %vm113, %vm57
    %v118 = vsel %vm114, 1, 0
    %v119 = vsel %vm115, 1, 0
    %v120 = vsel %vm116, 1, 0
    %v121 = vsel %vm117, 1, 0
    %v122 = vcvt.s32.f32 %v118
    %v123 = vcvt.s32.f32 %v119
    %v124 = vcvt.s32.f32 %v120
    %v125 = vcvt.s32.f32 %v121
    %v126 = vsel %vm110, 1, 0
    %v127 = vsel %vm111, 1, 0
    %v128 = vsel %vm112, 1, 0
    %v129 = vsel %vm113, 1, 0
    %v130 = vcvt.s32.f32 %v126
    %v131 = vcvt.s32.f32 %v127
    %v132 = vcvt.s32.f32 %v128
    %v133 = vcvt.s32.f32 %v129
    %vm134 = vmand %vm110, %vm78
    %vm135 = vmand %vm111, %vm79
    %vm136 = vmand %vm112, %vm80
    %vm137 = vmand %vm113, %vm81
    %v138 = vsel %vm134, 1, 0
    %v139 = vsel %vm135, 1, 0
    %v140 = vsel %vm136, 1, 0
    %v141 = vsel %vm137, 1, 0
    %v142 = vcvt.s32.f32 %v138
    %v143 = vcvt.s32.f32 %v139
    %v144 = vcvt.s32.f32 %v140
    %v145 = vcvt.s32.f32 %v141
    %v146 = vld [vmem:[%s2] sm:$0xff]
    %v147 = vld [vmem:[%s4] sm:$0xff]
    %v148 = vld [vmem:[%s8] sm:$0xff]
    %v149 = vld [vmem:[%s5] sm:$0xff]
    %v150 = vld [vmem:[%s6] sm:$0xff]
    %v151 = vld [vmem:[%s1] sm:$0xff]
    %v152 = vld [vmem:[%s0] sm:$0xff]
    %v153 = vld [vmem:[%s0 + $0x8] sm:$0xff]
    %155 = vset.pattern.permute.xlu0 0
    %156 = vperm.xlu0 %155, %v146
    %v157 = vpop.permute.xlu0 %156
    %v161 = vcombine.high %v152, %v152
    %v162 = vcombine.high %v153, %v153
    %vm163 = vcmask 31744
    %v165 = vsel %vm163, %v151, 0
    %vm167 = vcmask 1043456
    %v168 = vsel %vm167, %v152, 0
    %v170 = vsel %vm167, %v161, 0
    %v172 = vsel %vm167, %v153, 0
    %v174 = vsel %vm167, %v162, 0
    %176 = vmatprep.subr.mxu0 %v170
    %177 = vmatpush1.msra.mxu0 %v168
    %178 = vmatprep.subr.mxu0 0.0
    %179 = vmatpush1.msra.mxu0 0.0
    %180 = vmatprep.subr.mxu0 0.0
    %181 = vmatpush1.msra.mxu0 0.0
    %182 = vmatprep.subr.mxu0 0.0
    %183 = vmatpush1.msra.mxu0 0.0
    %184 = vmatprep.subr.mxu0 0.0
    %185 = vmatpush1.msra.mxu0 0.0
    %186 = vmatprep.subr.mxu0 0.0
    %187 = vmatpush1.msra.mxu0 0.0
    %188 = vmatprep.subr.mxu0 0.0
    %189 = vmatpush1.msra.mxu0 0.0
    %190 = vmatprep.subr.mxu0 0.0
    %191 = vmatpush1.msra.mxu0 0.0
    %192 = vmatprep.subr.mxu0 0.0
    %193 = vmatpush1.msra.mxu0 0.0
    %194 = vmatprep.subr.mxu0 0.0
    %195 = vmatpush1.msra.mxu0 0.0
    %196 = vmatprep.subr.mxu0 0.0
    %197 = vmatpush1.msra.mxu0 0.0
    %198 = vmatprep.subr.mxu0 0.0
    %199 = vmatpush1.msra.mxu0 0.0
    %200 = vmatprep.subr.mxu0 0.0
    %201 = vmatpush1.msra.mxu0 0.0
    %202 = vmatprep.subr.mxu0 0.0
    %203 = vmatpush1.msra.mxu0 0.0
    %204 = vmatprep.subr.mxu0 0.0
    %205 = vmatpush1.msra.mxu0 0.0
    %206 = vmatprep.subr.mxu0 0.0
    %207 = vmatpush1.msra.mxu0 0.0
    %208 = vmatprep.subr.mxu0 0.0
    %209 = vmatpush1.msra.mxu0 0.0
    %210 = vmatprep.subr.mxu0 0.0
    %211 = vmatpush1.msra.mxu0 0.0
    %212 = vmatprep.subr.mxu0 0.0
    %213 = vmatpush1.msra.mxu0 0.0
    %214 = vmatprep.subr.mxu0 0.0
    %215 = vmatpush1.msra.mxu0 0.0
    %216 = vmatprep.subr.mxu0 0.0
    %217 = vmatpush1.msra.mxu0 0.0
    %218 = vmatprep.subr.mxu0 0.0
    %219 = vmatpush1.msra.mxu0 0.0
    %220 = vmatprep.subr.mxu0 0.0
    %221 = vmatpush1.msra.mxu0 0.0
    %222 = vmatprep.subr.mxu0 0.0
    %223 = vmatpush1.msra.mxu0 0.0
    %224 = vmatprep.subr.mxu0 0.0
    %225 = vmatpush1.msra.mxu0 0.0
    %226 = vmatprep.subr.mxu0 0.0
    %227 = vmatpush1.msra.mxu0 0.0
    %228 = vmatprep.subr.mxu0 0.0
    %229 = vmatpush1.msra.mxu0 0.0
    %230 = vmatprep.subr.mxu0 0.0
    %231 = vmatpush1.msra.mxu0 0.0
    %232 = vmatprep.subr.mxu0 0.0
    %233 = vmatpush1.msra.mxu0 0.0
    %234 = vmatprep.subr.mxu0 0.0
    %235 = vmatpush1.msra.mxu0 0.0
    %236 = vmatprep.subr.mxu0 0.0
    %237 = vmatpush1.msra.mxu0 0.0
    %238 = vmatprep.subr.mxu0 0.0
    %239 = vmatpush1.msra.mxu0 0.0
    %240 = vmatprep.mubr.f32.mxu0 0.0
    %241 = vmatmul.mubr.f32.gmra.mrb[0].mxu0 %v165
    %v242 = vpop.f32.mrb[0].mxu0
    %v243 = vadd.f32 %v157, %v242
    %v244 = vpop.f32.mrb[0].mxu0
    %v245 = vadd.f32 %v157, %v244
    %246 = vdwg.mxu0
    %247 = vmatprep.subr.mxu0 %v174
    %248 = vmatpush1.msra.mxu0 %v172
    %249 = vmatprep.subr.mxu0 0.0
    %250 = vmatpush1.msra.mxu0 0.0
    %251 = vmatprep.subr.mxu0 0.0
    %252 = vmatpush1.msra.mxu0 0.0
    %253 = vmatprep.subr.mxu0 0.0
    %254 = vmatpush1.msra.mxu0 0.0
    %255 = vmatprep.subr.mxu0 0.0
    %256 = vmatpush1.msra.mxu0 0.0
    %257 = vmatprep.subr.mxu0 0.0
    %258 = vmatpush1.msra.mxu0 0.0
    %259 = vmatprep.subr.mxu0 0.0
    %260 = vmatpush1.msra.mxu0 0.0
    %261 = vmatprep.subr.mxu0 0.0
    %262 = vmatpush1.msra.mxu0 0.0
    %263 = vmatprep.subr.mxu0 0.0
    %264 = vmatpush1.msra.mxu0 0.0
    %265 = vmatprep.subr.mxu0 0.0
    %266 = vmatpush1.msra.mxu0 0.0
    %267 = vmatprep.subr.mxu0 0.0
    %268 = vmatpush1.msra.mxu0 0.0
    %269 = vmatprep.subr.mxu0 0.0
    %270 = vmatpush1.msra.mxu0 0.0
    %271 = vmatprep.subr.mxu0 0.0
    %272 = vmatpush1.msra.mxu0 0.0
    %273 = vmatprep.subr.mxu0 0.0
    %274 = vmatpush1.msra.mxu0 0.0
    %275 = vmatprep.subr.mxu0 0.0
    %276 = vmatpush1.msra.mxu0 0.0
    %277 = vmatprep.subr.mxu0 0.0
    %278 = vmatpush1.msra.mxu0 0.0
    %279 = vmatprep.subr.mxu0 0.0
    %280 = vmatpush1.msra.mxu0 0.0
    %281 = vmatprep.subr.mxu0 0.0
    %282 = vmatpush1.msra.mxu0 0.0
    %283 = vmatprep.subr.mxu0 0.0
    %284 = vmatpush1.msra.mxu0 0.0
    %285 = vmatprep.subr.mxu0 0.0
    %286 = vmatpush1.msra.mxu0 0.0
    %287 = vmatprep.subr.mxu0 0.0
    %288 = vmatpush1.msra.mxu0 0.0
    %289 = vmatprep.subr.mxu0 0.0
    %290 = vmatpush1.msra.mxu0 0.0
    %291 = vmatprep.subr.mxu0 0.0
    %292 = vmatpush1.msra.mxu0 0.0
    %293 = vmatprep.subr.mxu0 0.0
    %294 = vmatpush1.msra.mxu0 0.0
    %295 = vmatprep.subr.mxu0 0.0
    %296 = vmatpush1.msra.mxu0 0.0
    %297 = vmatprep.subr.mxu0 0.0
    %298 = vmatpush1.msra.mxu0 0.0
    %299 = vmatprep.subr.mxu0 0.0
    %300 = vmatpush1.msra.mxu0 0.0
    %301 = vmatprep.subr.mxu0 0.0
    %302 = vmatpush1.msra.mxu0 0.0
    %303 = vmatprep.subr.mxu0 0.0
    %304 = vmatpush1.msra.mxu0 0.0
    %305 = vmatprep.subr.mxu0 0.0
    %306 = vmatpush1.msra.mxu0 0.0
    %307 = vmatprep.subr.mxu0 0.0
    %308 = vmatpush1.msra.mxu0 0.0
    %309 = vmatprep.subr.mxu0 0.0
    %310 = vmatpush1.msra.mxu0 0.0
    %311 = vmatprep.mubr.f32.mxu0 0.0
    %312 = vmatmul.mubr.f32.gmra.mrb[0].mxu0 %v165
    %v313 = vpop.f32.mrb[0].mxu0
    %v314 = vadd.f32 %v157, %v313
    %v315 = vpop.f32.mrb[0].mxu0
    %v316 = vadd.f32 %v157, %v315
    %317 = vdwg.mxu0
    %s318 = scalar_lea.vmem %s3, 32
    %v319 = vld [vmem:[%s318] sm:$0xff]
    %320 = vrot.lane.b32.xlu0 %v243, 17
    %v321 = vpop.permute.xlu0 %320
    %322 = vrot.lane.b32.xlu0 %v245, 17
    %v323 = vpop.permute.xlu0 %322
    %324 = vrot.lane.b32.xlu0 %v314, 17
    %v325 = vpop.permute.xlu0 %324
    %326 = vrot.lane.b32.xlu0 %v316, 17
    %v327 = vpop.permute.xlu0 %326
    %vm328 = vcmp.lt.s32.totalorder %v34, 17
    %v329 = vsel %vm328, %v325, %v327
    %v330 = vsel %vm328, %v323, %v325
    %v331 = vsel %vm328, %v321, %v323
    %v332 = vsel %vm328, %v327, %v321
    %v333 = vld [vmem:[%s3] sm:$0xff]
    %vm334 = vcmask 64512
    %v336 = vsel %vm334, %v333, 0
    %338 = vmatprep.subr.mxu0 %v331
    %339 = vmatpush1.msra.mxu0 %v332
    %340 = vmatprep.subr.mxu0 0.0
    %341 = vmatpush1.msra.mxu0 0.0
    %342 = vmatprep.subr.mxu0 0.0
    %343 = vmatpush1.msra.mxu0 0.0
    %344 = vmatprep.subr.mxu0 0.0
    %345 = vmatpush1.msra.mxu0 0.0
    %346 = vmatprep.subr.mxu0 0.0
    %347 = vmatpush1.msra.mxu0 0.0
    %348 = vmatprep.subr.mxu0 0.0
    %349 = vmatpush1.msra.mxu0 0.0
    %350 = vmatprep.subr.mxu0 0.0
    %351 = vmatpush1.msra.mxu0 0.0
    %352 = vmatprep.subr.mxu0 0.0
    %353 = vmatpush1.msra.mxu0 0.0
    %354 = vmatprep.subr.mxu0 0.0
    %355 = vmatpush1.msra.mxu0 0.0
    %356 = vmatprep.subr.mxu0 0.0
    %357 = vmatpush1.msra.mxu0 0.0
    %358 = vmatprep.subr.mxu0 0.0
    %359 = vmatpush1.msra.mxu0 0.0
    %360 = vmatprep.subr.mxu0 0.0
    %361 = vmatpush1.msra.mxu0 0.0
    %362 = vmatprep.subr.mxu0 0.0
    %363 = vmatpush1.msra.mxu0 0.0
    %364 = vmatprep.subr.mxu0 0.0
    %365 = vmatpush1.msra.mxu0 0.0
    %366 = vmatprep.subr.mxu0 0.0
    %367 = vmatpush1.msra.mxu0 0.0
    %368 = vmatprep.subr.mxu0 0.0
    %369 = vmatpush1.msra.mxu0 0.0
    %370 = vmatprep.subr.mxu0 0.0
    %371 = vmatpush1.msra.mxu0 0.0
    %372 = vmatprep.subr.mxu0 0.0
    %373 = vmatpush1.msra.mxu0 0.0
    %374 = vmatprep.subr.mxu0 0.0
    %375 = vmatpush1.msra.mxu0 0.0
    %376 = vmatprep.subr.mxu0 0.0
    %377 = vmatpush1.msra.mxu0 0.0
    %378 = vmatprep.subr.mxu0 0.0
    %379 = vmatpush1.msra.mxu0 0.0
    %380 = vmatprep.subr.mxu0 0.0
    %381 = vmatpush1.msra.mxu0 0.0
    %382 = vmatprep.subr.mxu0 0.0
    %383 = vmatpush1.msra.mxu0 0.0
    %384 = vmatprep.subr.mxu0 0.0
    %385 = vmatpush1.msra.mxu0 0.0
    %386 = vmatprep.subr.mxu0 0.0
    %387 = vmatpush1.msra.mxu0 0.0
    %388 = vmatprep.subr.mxu0 0.0
    %389 = vmatpush1.msra.mxu0 0.0
    %390 = vmatprep.subr.mxu0 0.0
    %391 = vmatpush1.msra.mxu0 0.0
    %392 = vmatprep.subr.mxu0 0.0
    %393 = vmatpush1.msra.mxu0 0.0
    %394 = vmatprep.subr.mxu0 0.0
    %395 = vmatpush1.msra.mxu0 0.0
    %396 = vmatprep.subr.mxu0 0.0
    %397 = vmatpush1.msra.mxu0 0.0
    %398 = vmatprep.subr.mxu0 0.0
    %399 = vmatpush1.msra.mxu0 0.0
    %400 = vmatprep.subr.mxu0 0.0
    %401 = vmatpush1.msra.mxu0 0.0
    %402 = vmatprep.mubr.f32.mxu0 0.0
    %403 = vmatmul.mubr.f32.gmra.mrb[0].mxu0 %v336
    %v404 = vpop.f32.mrb[0].mxu0
    %v405 = vadd.f32 0.0, %v404
    %v406 = vpop.f32.mrb[0].mxu0
    %v407 = vadd.f32 0.0, %v406
    %408 = vdwg.mxu0
    %409 = vmatprep.subr.mxu0 %v329
    %410 = vmatpush1.msra.mxu0 %v330
    %411 = vmatprep.subr.mxu0 0.0
    %412 = vmatpush1.msra.mxu0 0.0
    %413 = vmatprep.subr.mxu0 0.0
    %414 = vmatpush1.msra.mxu0 0.0
    %415 = vmatprep.subr.mxu0 0.0
    %416 = vmatpush1.msra.mxu0 0.0
    %417 = vmatprep.subr.mxu0 0.0
    %418 = vmatpush1.msra.mxu0 0.0
    %419 = vmatprep.subr.mxu0 0.0
    %420 = vmatpush1.msra.mxu0 0.0
    %421 = vmatprep.subr.mxu0 0.0
    %422 = vmatpush1.msra.mxu0 0.0
    %423 = vmatprep.subr.mxu0 0.0
    %424 = vmatpush1.msra.mxu0 0.0
    %425 = vmatprep.subr.mxu0 0.0
    %426 = vmatpush1.msra.mxu0 0.0
    %427 = vmatprep.subr.mxu0 0.0
    %428 = vmatpush1.msra.mxu0 0.0
    %429 = vmatprep.subr.mxu0 0.0
    %430 = vmatpush1.msra.mxu0 0.0
    %431 = vmatprep.subr.mxu0 0.0
    %432 = vmatpush1.msra.mxu0 0.0
    %433 = vmatprep.subr.mxu0 0.0
    %434 = vmatpush1.msra.mxu0 0.0
    %435 = vmatprep.subr.mxu0 0.0
    %436 = vmatpush1.msra.mxu0 0.0
    %437 = vmatprep.subr.mxu0 0.0
    %438 = vmatpush1.msra.mxu0 0.0
    %439 = vmatprep.subr.mxu0 0.0
    %440 = vmatpush1.msra.mxu0 0.0
    %441 = vmatprep.subr.mxu0 0.0
    %442 = vmatpush1.msra.mxu0 0.0
    %443 = vmatprep.subr.mxu0 0.0
    %444 = vmatpush1.msra.mxu0 0.0
    %445 = vmatprep.subr.mxu0 0.0
    %446 = vmatpush1.msra.mxu0 0.0
    %447 = vmatprep.subr.mxu0 0.0
    %448 = vmatpush1.msra.mxu0 0.0
    %449 = vmatprep.subr.mxu0 0.0
    %450 = vmatpush1.msra.mxu0 0.0
    %451 = vmatprep.subr.mxu0 0.0
    %452 = vmatpush1.msra.mxu0 0.0
    %453 = vmatprep.subr.mxu0 0.0
    %454 = vmatpush1.msra.mxu0 0.0
    %455 = vmatprep.subr.mxu0 0.0
    %456 = vmatpush1.msra.mxu0 0.0
    %457 = vmatprep.subr.mxu0 0.0
    %458 = vmatpush1.msra.mxu0 0.0
    %459 = vmatprep.subr.mxu0 0.0
    %460 = vmatpush1.msra.mxu0 0.0
    %461 = vmatprep.subr.mxu0 0.0
    %462 = vmatpush1.msra.mxu0 0.0
    %463 = vmatprep.subr.mxu0 0.0
    %464 = vmatpush1.msra.mxu0 0.0
    %465 = vmatprep.subr.mxu0 0.0
    %466 = vmatpush1.msra.mxu0 0.0
    %467 = vmatprep.subr.mxu0 0.0
    %468 = vmatpush1.msra.mxu0 0.0
    %469 = vmatprep.subr.mxu0 0.0
    %470 = vmatpush1.msra.mxu0 0.0
    %471 = vmatprep.subr.mxu0 0.0
    %472 = vmatpush1.msra.mxu0 0.0
    %473 = vmatprep.mubr.f32.mxu0 0.0
    %474 = vmatmul.mubr.f32.gmra.mrb[0].mxu0 %v336
    %v475 = vpop.f32.mrb[0].mxu0
    %v476 = vadd.f32 0.0, %v475
    %v477 = vpop.f32.mrb[0].mxu0
    %v478 = vadd.f32 0.0, %v477
    %479 = vdwg.mxu0
    %v480 = vmul.f32 %v66, %v405
    %v481 = vmul.f32 %v67, %v407
    %v482 = vmul.f32 %v68, %v476
    %v483 = vmul.f32 %v69, %v478
    %v485 = vsel %vm334, %v319, 0
    %487 = vmatprep.subr.mxu0 %v245
    %488 = vmatpush1.msra.mxu0 %v243
    %489 = vmatprep.subr.mxu0 0.0
    %490 = vmatpush1.msra.mxu0 0.0
    %491 = vmatprep.subr.mxu0 0.0
    %492 = vmatpush1.msra.mxu0 0.0
    %493 = vmatprep.subr.mxu0 0.0
    %494 = vmatpush1.msra.mxu0 0.0
    %495 = vmatprep.subr.mxu0 0.0
    %496 = vmatpush1.msra.mxu0 0.0
    %497 = vmatprep.subr.mxu0 0.0
    %498 = vmatpush1.msra.mxu0 0.0
    %499 = vmatprep.subr.mxu0 0.0
    %500 = vmatpush1.msra.mxu0 0.0
    %501 = vmatprep.subr.mxu0 0.0
    %502 = vmatpush1.msra.mxu0 0.0
    %503 = vmatprep.subr.mxu0 0.0
    %504 = vmatpush1.msra.mxu0 0.0
    %505 = vmatprep.subr.mxu0 0.0
    %506 = vmatpush1.msra.mxu0 0.0
    %507 = vmatprep.subr.mxu0 0.0
    %508 = vmatpush1.msra.mxu0 0.0
    %509 = vmatprep.subr.mxu0 0.0
    %510 = vmatpush1.msra.mxu0 0.0
    %511 = vmatprep.subr.mxu0 0.0
    %512 = vmatpush1.msra.mxu0 0.0
    %513 = vmatprep.subr.mxu0 0.0
    %514 = vmatpush1.msra.mxu0 0.0
    %515 = vmatprep.subr.mxu0 0.0
    %516 = vmatpush1.msra.mxu0 0.0
    %517 = vmatprep.subr.mxu0 0.0
    %518 = vmatpush1.msra.mxu0 0.0
    %519 = vmatprep.subr.mxu0 0.0
    %520 = vmatpush1.msra.mxu0 0.0
    %521 = vmatprep.subr.mxu0 0.0
    %522 = vmatpush1.msra.mxu0 0.0
    %523 = vmatprep.subr.mxu0 0.0
    %524 = vmatpush1.msra.mxu0 0.0
    %525 = vmatprep.subr.mxu0 0.0
    %526 = vmatpush1.msra.mxu0 0.0
    %527 = vmatprep.subr.mxu0 0.0
    %528 = vmatpush1.msra.mxu0 0.0
    %529 = vmatprep.subr.mxu0 0.0
    %530 = vmatpush1.msra.mxu0 0.0
    %531 = vmatprep.subr.mxu0 0.0
    %532 = vmatpush1.msra.mxu0 0.0
    %533 = vmatprep.subr.mxu0 0.0
    %534 = vmatpush1.msra.mxu0 0.0
    %535 = vmatprep.subr.mxu0 0.0
    %536 = vmatpush1.msra.mxu0 0.0
    %537 = vmatprep.subr.mxu0 0.0
    %538 = vmatpush1.msra.mxu0 0.0
    %539 = vmatprep.subr.mxu0 0.0
    %540 = vmatpush1.msra.mxu0 0.0
    %541 = vmatprep.subr.mxu0 0.0
    %542 = vmatpush1.msra.mxu0 0.0
    %543 = vmatprep.subr.mxu0 0.0
    %544 = vmatpush1.msra.mxu0 0.0
    %545 = vmatprep.subr.mxu0 0.0
    %546 = vmatpush1.msra.mxu0 0.0
    %547 = vmatprep.subr.mxu0 0.0
    %548 = vmatpush1.msra.mxu0 0.0
    %549 = vmatprep.subr.mxu0 0.0
    %550 = vmatpush1.msra.mxu0 0.0
    %551 = vmatprep.mubr.f32.mxu0 0.0
    %552 = vmatmul.mubr.f32.gmra.mrb[0].mxu0 %v485
    %v553 = vpop.f32.mrb[0].mxu0
    %v554 = vadd.f32 %v480, %v553
    %v555 = vpop.f32.mrb[0].mxu0
    %v556 = vadd.f32 %v481, %v555
    %557 = vdwg.mxu0
    %558 = vmatprep.subr.mxu0 %v316
    %559 = vmatpush1.msra.mxu0 %v314
    %560 = vmatprep.subr.mxu0 0.0
    %561 = vmatpush1.msra.mxu0 0.0
    %562 = vmatprep.subr.mxu0 0.0
    %563 = vmatpush1.msra.mxu0 0.0
    %564 = vmatprep.subr.mxu0 0.0
    %565 = vmatpush1.msra.mxu0 0.0
    %566 = vmatprep.subr.mxu0 0.0
    %567 = vmatpush1.msra.mxu0 0.0
    %568 = vmatprep.subr.mxu0 0.0
    %569 = vmatpush1.msra.mxu0 0.0
    %570 = vmatprep.subr.mxu0 0.0
    %571 = vmatpush1.msra.mxu0 0.0
    %572 = vmatprep.subr.mxu0 0.0
    %573 = vmatpush1.msra.mxu0 0.0
    %574 = vmatprep.subr.mxu0 0.0
    %575 = vmatpush1.msra.mxu0 0.0
    %576 = vmatprep.subr.mxu0 0.0
    %577 = vmatpush1.msra.mxu0 0.0
    %578 = vmatprep.subr.mxu0 0.0
    %579 = vmatpush1.msra.mxu0 0.0
    %580 = vmatprep.subr.mxu0 0.0
    %581 = vmatpush1.msra.mxu0 0.0
    %582 = vmatprep.subr.mxu0 0.0
    %583 = vmatpush1.msra.mxu0 0.0
    %584 = vmatprep.subr.mxu0 0.0
    %585 = vmatpush1.msra.mxu0 0.0
    %586 = vmatprep.subr.mxu0 0.0
    %587 = vmatpush1.msra.mxu0 0.0
    %588 = vmatprep.subr.mxu0 0.0
    %589 = vmatpush1.msra.mxu0 0.0
    %590 = vmatprep.subr.mxu0 0.0
    %591 = vmatpush1.msra.mxu0 0.0
    %592 = vmatprep.subr.mxu0 0.0
    %593 = vmatpush1.msra.mxu0 0.0
    %594 = vmatprep.subr.mxu0 0.0
    %595 = vmatpush1.msra.mxu0 0.0
    %596 = vmatprep.subr.mxu0 0.0
    %597 = vmatpush1.msra.mxu0 0.0
    %598 = vmatprep.subr.mxu0 0.0
    %599 = vmatpush1.msra.mxu0 0.0
    %600 = vmatprep.subr.mxu0 0.0
    %601 = vmatpush1.msra.mxu0 0.0
    %602 = vmatprep.subr.mxu0 0.0
    %603 = vmatpush1.msra.mxu0 0.0
    %604 = vmatprep.subr.mxu0 0.0
    %605 = vmatpush1.msra.mxu0 0.0
    %606 = vmatprep.subr.mxu0 0.0
    %607 = vmatpush1.msra.mxu0 0.0
    %608 = vmatprep.subr.mxu0 0.0
    %609 = vmatpush1.msra.mxu0 0.0
    %610 = vmatprep.subr.mxu0 0.0
    %611 = vmatpush1.msra.mxu0 0.0
    %612 = vmatprep.subr.mxu0 0.0
    %613 = vmatpush1.msra.mxu0 0.0
    %614 = vmatprep.subr.mxu0 0.0
    %615 = vmatpush1.msra.mxu0 0.0
    %616 = vmatprep.subr.mxu0 0.0
    %617 = vmatpush1.msra.mxu0 0.0
    %618 = vmatprep.subr.mxu0 0.0
    %619 = vmatpush1.msra.mxu0 0.0
    %620 = vmatprep.subr.mxu0 0.0
    %621 = vmatpush1.msra.mxu0 0.0
    %622 = vmatprep.mubr.f32.mxu0 0.0
    %623 = vmatmul.mubr.f32.gmra.mrb[0].mxu0 %v485
    %v624 = vpop.f32.mrb[0].mxu0
    %v625 = vadd.f32 %v482, %v624
    %v626 = vpop.f32.mrb[0].mxu0
    %v627 = vadd.f32 %v483, %v626
    %628 = vdwg.mxu0
    %629 = vrot.lane.b32.xlu0 %v243, 16
    %v630 = vpop.permute.xlu0 %629
    %631 = vrot.lane.b32.xlu0 %v245, 16
    %v632 = vpop.permute.xlu0 %631
    %633 = vrot.lane.b32.xlu0 %v314, 16
    %v634 = vpop.permute.xlu0 %633
    %635 = vrot.lane.b32.xlu0 %v316, 16
    %v636 = vpop.permute.xlu0 %635
    %vm637 = vcmp.lt.s32.totalorder %v34, 16
    %v638 = vsel %vm637, %v634, %v636
    %v639 = vsel %vm637, %v632, %v634
    %v640 = vsel %vm637, %v630, %v632
    %v641 = vsel %vm637, %v636, %v630
    %s642 = scalar_lea.vmem %s3, 8
    %v643 = vld [vmem:[%s642] sm:$0xff]
    %v645 = vsel %vm334, %v643, 0
    %647 = vmatprep.subr.mxu0 %v640
    %648 = vmatpush1.msra.mxu0 %v641
    %649 = vmatprep.subr.mxu0 0.0
    %650 = vmatpush1.msra.mxu0 0.0
    %651 = vmatprep.subr.mxu0 0.0
    %652 = vmatpush1.msra.mxu0 0.0
    %653 = vmatprep.subr.mxu0 0.0
    %654 = vmatpush1.msra.mxu0 0.0
    %655 = vmatprep.subr.mxu0 0.0
    %656 = vmatpush1.msra.mxu0 0.0
    %657 = vmatprep.subr.mxu0 0.0
    %658 = vmatpush1.msra.mxu0 0.0
    %659 = vmatprep.subr.mxu0 0.0
    %660 = vmatpush1.msra.mxu0 0.0
    %661 = vmatprep.subr.mxu0 0.0
    %662 = vmatpush1.msra.mxu0 0.0
    %663 = vmatprep.subr.mxu0 0.0
    %664 = vmatpush1.msra.mxu0 0.0
    %665 = vmatprep.subr.mxu0 0.0
    %666 = vmatpush1.msra.mxu0 0.0
    %667 = vmatprep.subr.mxu0 0.0
    %668 = vmatpush1.msra.mxu0 0.0
    %669 = vmatprep.subr.mxu0 0.0
    %670 = vmatpush1.msra.mxu0 0.0
    %671 = vmatprep.subr.mxu0 0.0
    %672 = vmatpush1.msra.mxu0 0.0
    %673 = vmatprep.subr.mxu0 0.0
    %674 = vmatpush1.msra.mxu0 0.0
    %675 = vmatprep.subr.mxu0 0.0
    %676 = vmatpush1.msra.mxu0 0.0
    %677 = vmatprep.subr.mxu0 0.0
    %678 = vmatpush1.msra.mxu0 0.0
    %679 = vmatprep.subr.mxu0 0.0
    %680 = vmatpush1.msra.mxu0 0.0
    %681 = vmatprep.subr.mxu0 0.0
    %682 = vmatpush1.msra.mxu0 0.0
    %683 = vmatprep.subr.mxu0 0.0
    %684 = vmatpush1.msra.mxu0 0.0
    %685 = vmatprep.subr.mxu0 0.0
    %686 = vmatpush1.msra.mxu0 0.0
    %687 = vmatprep.subr.mxu0 0.0
    %688 = vmatpush1.msra.mxu0 0.0
    %689 = vmatprep.subr.mxu0 0.0
    %690 = vmatpush1.msra.mxu0 0.0
    %691 = vmatprep.subr.mxu0 0.0
    %692 = vmatpush1.msra.mxu0 0.0
    %693 = vmatprep.subr.mxu0 0.0
    %694 = vmatpush1.msra.mxu0 0.0
    %695 = vmatprep.subr.mxu0 0.0
    %696 = vmatpush1.msra.mxu0 0.0
    %697 = vmatprep.subr.mxu0 0.0
    %698 = vmatpush1.msra.mxu0 0.0
    %699 = vmatprep.subr.mxu0 0.0
    %700 = vmatpush1.msra.mxu0 0.0
    %701 = vmatprep.subr.mxu0 0.0
    %702 = vmatpush1.msra.mxu0 0.0
    %703 = vmatprep.subr.mxu0 0.0
    %704 = vmatpush1.msra.mxu0 0.0
    %705 = vmatprep.subr.mxu0 0.0
    %706 = vmatpush1.msra.mxu0 0.0
    %707 = vmatprep.subr.mxu0 0.0
    %708 = vmatpush1.msra.mxu0 0.0
    %709 = vmatprep.subr.mxu0 0.0
    %710 = vmatpush1.msra.mxu0 0.0
    %711 = vmatprep.mubr.f32.mxu0 0.0
    %712 = vmatmul.mubr.f32.gmra.mrb[0].mxu0 %v645
    %v713 = vpop.f32.mrb[0].mxu0
    %v714 = vadd.f32 0.0, %v713
    %v715 = vpop.f32.mrb[0].mxu0
    %v716 = vadd.f32 0.0, %v715
    %717 = vdwg.mxu0
    %718 = vmatprep.subr.mxu0 %v638
    %719 = vmatpush1.msra.mxu0 %v639
    %720 = vmatprep.subr.mxu0 0.0
    %721 = vmatpush1.msra.mxu0 0.0
    %722 = vmatprep.subr.mxu0 0.0
    %723 = vmatpush1.msra.mxu0 0.0
    %724 = vmatprep.subr.mxu0 0.0
    %725 = vmatpush1.msra.mxu0 0.0
    %726 = vmatprep.subr.mxu0 0.0
    %727 = vmatpush1.msra.mxu0 0.0
    %728 = vmatprep.subr.mxu0 0.0
    %729 = vmatpush1.msra.mxu0 0.0
    %730 = vmatprep.subr.mxu0 0.0
    %731 = vmatpush1.msra.mxu0 0.0
    %732 = vmatprep.subr.mxu0 0.0
    %733 = vmatpush1.msra.mxu0 0.0
    %734 = vmatprep.subr.mxu0 0.0
    %735 = vmatpush1.msra.mxu0 0.0
    %736 = vmatprep.subr.mxu0 0.0
    %737 = vmatpush1.msra.mxu0 0.0
    %738 = vmatprep.subr.mxu0 0.0
    %739 = vmatpush1.msra.mxu0 0.0
    %740 = vmatprep.subr.mxu0 0.0
    %741 = vmatpush1.msra.mxu0 0.0
    %742 = vmatprep.subr.mxu0 0.0
    %743 = vmatpush1.msra.mxu0 0.0
    %744 = vmatprep.subr.mxu0 0.0
    %745 = vmatpush1.msra.mxu0 0.0
    %746 = vmatprep.subr.mxu0 0.0
    %747 = vmatpush1.msra.mxu0 0.0
    %748 = vmatprep.subr.mxu0 0.0
    %749 = vmatpush1.msra.mxu0 0.0
    %750 = vmatprep.subr.mxu0 0.0
    %751 = vmatpush1.msra.mxu0 0.0
    %752 = vmatprep.subr.mxu0 0.0
    %753 = vmatpush1.msra.mxu0 0.0
    %754 = vmatprep.subr.mxu0 0.0
    %755 = vmatpush1.msra.mxu0 0.0
    %756 = vmatprep.subr.mxu0 0.0
    %757 = vmatpush1.msra.mxu0 0.0
    %758 = vmatprep.subr.mxu0 0.0
    %759 = vmatpush1.msra.mxu0 0.0
    %760 = vmatprep.subr.mxu0 0.0
    %761 = vmatpush1.msra.mxu0 0.0
    %762 = vmatprep.subr.mxu0 0.0
    %763 = vmatpush1.msra.mxu0 0.0
    %764 = vmatprep.subr.mxu0 0.0
    %765 = vmatpush1.msra.mxu0 0.0
    %766 = vmatprep.subr.mxu0 0.0
    %767 = vmatpush1.msra.mxu0 0.0
    %768 = vmatprep.subr.mxu0 0.0
    %769 = vmatpush1.msra.mxu0 0.0
    %770 = vmatprep.subr.mxu0 0.0
    %771 = vmatpush1.msra.mxu0 0.0
    %772 = vmatprep.subr.mxu0 0.0
    %773 = vmatpush1.msra.mxu0 0.0
    %774 = vmatprep.subr.mxu0 0.0
    %775 = vmatpush1.msra.mxu0 0.0
    %776 = vmatprep.subr.mxu0 0.0
    %777 = vmatpush1.msra.mxu0 0.0
    %778 = vmatprep.subr.mxu0 0.0
    %779 = vmatpush1.msra.mxu0 0.0
    %780 = vmatprep.subr.mxu0 0.0
    %781 = vmatpush1.msra.mxu0 0.0
    %782 = vmatprep.mubr.f32.mxu0 0.0
    %783 = vmatmul.mubr.f32.gmra.mrb[0].mxu0 %v645
    %v784 = vpop.f32.mrb[0].mxu0
    %v785 = vadd.f32 0.0, %v784
    %v786 = vpop.f32.mrb[0].mxu0
    %v787 = vadd.f32 0.0, %v786
    %788 = vdwg.mxu0
    %v789 = vmul.f32 %v74, %v714
    %v790 = vmul.f32 %v75, %v716
    %v791 = vmul.f32 %v76, %v785
    %v792 = vmul.f32 %v77, %v787
    %v793 = vadd.f32 %v554, %v789
    %v794 = vadd.f32 %v556, %v790
    %v795 = vadd.f32 %v625, %v791
    %v796 = vadd.f32 %v627, %v792
    %797 = vrot.lane.b32.xlu0 %v243, 15
    %v798 = vpop.permute.xlu0 %797
    %799 = vrot.lane.b32.xlu0 %v245, 15
    %v800 = vpop.permute.xlu0 %799
    %801 = vrot.lane.b32.xlu0 %v314, 15
    %v802 = vpop.permute.xlu0 %801
    %803 = vrot.lane.b32.xlu0 %v316, 15
    %v804 = vpop.permute.xlu0 %803
    %vm805 = vcmp.lt.s32.totalorder %v34, 15
    %v806 = vsel %vm805, %v802, %v804
    %v807 = vsel %vm805, %v800, %v802
    %v808 = vsel %vm805, %v798, %v800
    %v809 = vsel %vm805, %v804, %v798
    %s810 = scalar_lea.vmem %s3, 16
    %v811 = vld [vmem:[%s810] sm:$0xff]
    %v813 = vsel %vm334, %v811, 0
    %815 = vmatprep.subr.mxu0 %v808
    %816 = vmatpush1.msra.mxu0 %v809
    %817 = vmatprep.subr.mxu0 0.0
    %818 = vmatpush1.msra.mxu0 0.0
    %819 = vmatprep.subr.mxu0 0.0
    %820 = vmatpush1.msra.mxu0 0.0
    %821 = vmatprep.subr.mxu0 0.0
    %822 = vmatpush1.msra.mxu0 0.0
    %823 = vmatprep.subr.mxu0 0.0
    %824 = vmatpush1.msra.mxu0 0.0
    %825 = vmatprep.subr.mxu0 0.0
    %826 = vmatpush1.msra.mxu0 0.0
    %827 = vmatprep.subr.mxu0 0.0
    %828 = vmatpush1.msra.mxu0 0.0
    %829 = vmatprep.subr.mxu0 0.0
    %830 = vmatpush1.msra.mxu0 0.0
    %831 = vmatprep.subr.mxu0 0.0
    %832 = vmatpush1.msra.mxu0 0.0
    %833 = vmatprep.subr.mxu0 0.0
    %834 = vmatpush1.msra.mxu0 0.0
    %835 = vmatprep.subr.mxu0 0.0
    %836 = vmatpush1.msra.mxu0 0.0
    %837 = vmatprep.subr.mxu0 0.0
    %838 = vmatpush1.msra.mxu0 0.0
    %839 = vmatprep.subr.mxu0 0.0
    %840 = vmatpush1.msra.mxu0 0.0
    %841 = vmatprep.subr.mxu0 0.0
    %842 = vmatpush1.msra.mxu0 0.0
    %843 = vmatprep.subr.mxu0 0.0
    %844 = vmatpush1.msra.mxu0 0.0
    %845 = vmatprep.subr.mxu0 0.0
    %846 = vmatpush1.msra.mxu0 0.0
    %847 = vmatprep.subr.mxu0 0.0
    %848 = vmatpush1.msra.mxu0 0.0
    %849 = vmatprep.subr.mxu0 0.0
    %850 = vmatpush1.msra.mxu0 0.0
    %851 = vmatprep.subr.mxu0 0.0
    %852 = vmatpush1.msra.mxu0 0.0
    %853 = vmatprep.subr.mxu0 0.0
    %854 = vmatpush1.msra.mxu0 0.0
    %855 = vmatprep.subr.mxu0 0.0
    %856 = vmatpush1.msra.mxu0 0.0
    %857 = vmatprep.subr.mxu0 0.0
    %858 = vmatpush1.msra.mxu0 0.0
    %859 = vmatprep.subr.mxu0 0.0
    %860 = vmatpush1.msra.mxu0 0.0
    %861 = vmatprep.subr.mxu0 0.0
    %862 = vmatpush1.msra.mxu0 0.0
    %863 = vmatprep.subr.mxu0 0.0
    %864 = vmatpush1.msra.mxu0 0.0
    %865 = vmatprep.subr.mxu0 0.0
    %866 = vmatpush1.msra.mxu0 0.0
    %867 = vmatprep.subr.mxu0 0.0
    %868 = vmatpush1.msra.mxu0 0.0
    %869 = vmatprep.subr.mxu0 0.0
    %870 = vmatpush1.msra.mxu0 0.0
    %871 = vmatprep.subr.mxu0 0.0
    %872 = vmatpush1.msra.mxu0 0.0
    %873 = vmatprep.subr.mxu0 0.0
    %874 = vmatpush1.msra.mxu0 0.0
    %875 = vmatprep.subr.mxu0 0.0
    %876 = vmatpush1.msra.mxu0 0.0
    %877 = vmatprep.subr.mxu0 0.0
    %878 = vmatpush1.msra.mxu0 0.0
    %879 = vmatprep.mubr.f32.mxu0 0.0
    %880 = vmatmul.mubr.f32.gmra.mrb[0].mxu0 %v813
    %v881 = vpop.f32.mrb[0].mxu0
    %v882 = vadd.f32 0.0, %v881
    %v883 = vpop.f32.mrb[0].mxu0
    %v884 = vadd.f32 0.0, %v883
    %885 = vdwg.mxu0
    %886 = vmatprep.subr.mxu0 %v806
    %887 = vmatpush1.msra.mxu0 %v807
    %888 = vmatprep.subr.mxu0 0.0
    %889 = vmatpush1.msra.mxu0 0.0
    %890 = vmatprep.subr.mxu0 0.0
    %891 = vmatpush1.msra.mxu0 0.0
    %892 = vmatprep.subr.mxu0 0.0
    %893 = vmatpush1.msra.mxu0 0.0
    %894 = vmatprep.subr.mxu0 0.0
    %895 = vmatpush1.msra.mxu0 0.0
    %896 = vmatprep.subr.mxu0 0.0
    %897 = vmatpush1.msra.mxu0 0.0
    %898 = vmatprep.subr.mxu0 0.0
    %899 = vmatpush1.msra.mxu0 0.0
    %900 = vmatprep.subr.mxu0 0.0
    %901 = vmatpush1.msra.mxu0 0.0
    %902 = vmatprep.subr.mxu0 0.0
    %903 = vmatpush1.msra.mxu0 0.0
    %904 = vmatprep.subr.mxu0 0.0
    %905 = vmatpush1.msra.mxu0 0.0
    %906 = vmatprep.subr.mxu0 0.0
    %907 = vmatpush1.msra.mxu0 0.0
    %908 = vmatprep.subr.mxu0 0.0
    %909 = vmatpush1.msra.mxu0 0.0
    %910 = vmatprep.subr.mxu0 0.0
    %911 = vmatpush1.msra.mxu0 0.0
    %912 = vmatprep.subr.mxu0 0.0
    %913 = vmatpush1.msra.mxu0 0.0
    %914 = vmatprep.subr.mxu0 0.0
    %915 = vmatpush1.msra.mxu0 0.0
    %916 = vmatprep.subr.mxu0 0.0
    %917 = vmatpush1.msra.mxu0 0.0
    %918 = vmatprep.subr.mxu0 0.0
    %919 = vmatpush1.msra.mxu0 0.0
    %920 = vmatprep.subr.mxu0 0.0
    %921 = vmatpush1.msra.mxu0 0.0
    %922 = vmatprep.subr.mxu0 0.0
    %923 = vmatpush1.msra.mxu0 0.0
    %924 = vmatprep.subr.mxu0 0.0
    %925 = vmatpush1.msra.mxu0 0.0
    %926 = vmatprep.subr.mxu0 0.0
    %927 = vmatpush1.msra.mxu0 0.0
    %928 = vmatprep.subr.mxu0 0.0
    %929 = vmatpush1.msra.mxu0 0.0
    %930 = vmatprep.subr.mxu0 0.0
    %931 = vmatpush1.msra.mxu0 0.0
    %932 = vmatprep.subr.mxu0 0.0
    %933 = vmatpush1.msra.mxu0 0.0
    %934 = vmatprep.subr.mxu0 0.0
    %935 = vmatpush1.msra.mxu0 0.0
    %936 = vmatprep.subr.mxu0 0.0
    %937 = vmatpush1.msra.mxu0 0.0
    %938 = vmatprep.subr.mxu0 0.0
    %939 = vmatpush1.msra.mxu0 0.0
    %940 = vmatprep.subr.mxu0 0.0
    %941 = vmatpush1.msra.mxu0 0.0
    %942 = vmatprep.subr.mxu0 0.0
    %943 = vmatpush1.msra.mxu0 0.0
    %944 = vmatprep.subr.mxu0 0.0
    %945 = vmatpush1.msra.mxu0 0.0
    %946 = vmatprep.subr.mxu0 0.0
    %947 = vmatpush1.msra.mxu0 0.0
    %948 = vmatprep.subr.mxu0 0.0
    %949 = vmatpush1.msra.mxu0 0.0
    %950 = vmatprep.mubr.f32.mxu0 0.0
    %951 = vmatmul.mubr.f32.gmra.mrb[0].mxu0 %v813
    %v952 = vpop.f32.mrb[0].mxu0
    %v953 = vadd.f32 0.0, %v952
    %v954 = vpop.f32.mrb[0].mxu0
    %v955 = vadd.f32 0.0, %v954
    %956 = vdwg.mxu0
    %v957 = vmul.f32 %v90, %v882
    %v958 = vmul.f32 %v91, %v884
    %v959 = vmul.f32 %v92, %v953
    %v960 = vmul.f32 %v93, %v955
    %v961 = vadd.f32 %v793, %v957
    %v962 = vadd.f32 %v794, %v958
    %v963 = vadd.f32 %v795, %v959
    %v964 = vadd.f32 %v796, %v960
    %965 = vrot.lane.b32.xlu0 %v243, 1
    %v966 = vpop.permute.xlu0 %965
    %967 = vrot.lane.b32.xlu0 %v245, 1
    %v968 = vpop.permute.xlu0 %967
    %969 = vrot.lane.b32.xlu0 %v314, 1
    %v970 = vpop.permute.xlu0 %969
    %971 = vrot.lane.b32.xlu0 %v316, 1
    %v972 = vpop.permute.xlu0 %971
    %vm973 = vcmp.lt.s32.totalorder %v34, 1
    %v974 = vsel %vm973, %v970, %v972
    %v975 = vsel %vm973, %v968, %v970
    %v976 = vsel %vm973, %v966, %v968
    %v977 = vsel %vm973, %v972, %v966
    %s978 = scalar_lea.vmem %s3, 24
    %v979 = vld [vmem:[%s978] sm:$0xff]
    %v981 = vsel %vm334, %v979, 0
    %983 = vmatprep.subr.mxu0 %v976
    %984 = vmatpush1.msra.mxu0 %v977
    %985 = vmatprep.subr.mxu0 0.0
    %986 = vmatpush1.msra.mxu0 0.0
    %987 = vmatprep.subr.mxu0 0.0
    %988 = vmatpush1.msra.mxu0 0.0
    %989 = vmatprep.subr.mxu0 0.0
    %990 = vmatpush1.msra.mxu0 0.0
    %991 = vmatprep.subr.mxu0 0.0
    %992 = vmatpush1.msra.mxu0 0.0
    %993 = vmatprep.subr.mxu0 0.0
    %994 = vmatpush1.msra.mxu0 0.0
    %995 = vmatprep.subr.mxu0 0.0
    %996 = vmatpush1.msra.mxu0 0.0
    %997 = vmatprep.subr.mxu0 0.0
    %998 = vmatpush1.msra.mxu0 0.0
    %999 = vmatprep.subr.mxu0 0.0
    %1000 = vmatpush1.msra.mxu0 0.0
    %1001 = vmatprep.subr.mxu0 0.0
    %1002 = vmatpush1.msra.mxu0 0.0
    %1003 = vmatprep.subr.mxu0 0.0
    %1004 = vmatpush1.msra.mxu0 0.0
    %1005 = vmatprep.subr.mxu0 0.0
    %1006 = vmatpush1.msra.mxu0 0.0
    %1007 = vmatprep.subr.mxu0 0.0
    %1008 = vmatpush1.msra.mxu0 0.0
    %1009 = vmatprep.subr.mxu0 0.0
    %1010 = vmatpush1.msra.mxu0 0.0
    %1011 = vmatprep.subr.mxu0 0.0
    %1012 = vmatpush1.msra.mxu0 0.0
    %1013 = vmatprep.subr.mxu0 0.0
    %1014 = vmatpush1.msra.mxu0 0.0
    %1015 = vmatprep.subr.mxu0 0.0
    %1016 = vmatpush1.msra.mxu0 0.0
    %1017 = vmatprep.subr.mxu0 0.0
    %1018 = vmatpush1.msra.mxu0 0.0
    %1019 = vmatprep.subr.mxu0 0.0
    %1020 = vmatpush1.msra.mxu0 0.0
    %1021 = vmatprep.subr.mxu0 0.0
    %1022 = vmatpush1.msra.mxu0 0.0
    %1023 = vmatprep.subr.mxu0 0.0
    %1024 = vmatpush1.msra.mxu0 0.0
    %1025 = vmatprep.subr.mxu0 0.0
    %1026 = vmatpush1.msra.mxu0 0.0
    %1027 = vmatprep.subr.mxu0 0.0
    %1028 = vmatpush1.msra.mxu0 0.0
    %1029 = vmatprep.subr.mxu0 0.0
    %1030 = vmatpush1.msra.mxu0 0.0
    %1031 = vmatprep.subr.mxu0 0.0
    %1032 = vmatpush1.msra.mxu0 0.0
    %1033 = vmatprep.subr.mxu0 0.0
    %1034 = vmatpush1.msra.mxu0 0.0
    %1035 = vmatprep.subr.mxu0 0.0
    %1036 = vmatpush1.msra.mxu0 0.0
    %1037 = vmatprep.subr.mxu0 0.0
    %1038 = vmatpush1.msra.mxu0 0.0
    %1039 = vmatprep.subr.mxu0 0.0
    %1040 = vmatpush1.msra.mxu0 0.0
    %1041 = vmatprep.subr.mxu0 0.0
    %1042 = vmatpush1.msra.mxu0 0.0
    %1043 = vmatprep.subr.mxu0 0.0
    %1044 = vmatpush1.msra.mxu0 0.0
    %1045 = vmatprep.subr.mxu0 0.0
    %1046 = vmatpush1.msra.mxu0 0.0
    %1047 = vmatprep.mubr.f32.mxu0 0.0
    %1048 = vmatmul.mubr.f32.gmra.mrb[0].mxu0 %v981
    %v1049 = vpop.f32.mrb[0].mxu0
    %v1050 = vadd.f32 0.0, %v1049
    %v1051 = vpop.f32.mrb[0].mxu0
    %v1052 = vadd.f32 0.0, %v1051
    %1053 = vdwg.mxu0
    %1054 = vmatprep.subr.mxu0 %v974
    %1055 = vmatpush1.msra.mxu0 %v975
    %1056 = vmatprep.subr.mxu0 0.0
    %1057 = vmatpush1.msra.mxu0 0.0
    %1058 = vmatprep.subr.mxu0 0.0
    %1059 = vmatpush1.msra.mxu0 0.0
    %1060 = vmatprep.subr.mxu0 0.0
    %1061 = vmatpush1.msra.mxu0 0.0
    %1062 = vmatprep.subr.mxu0 0.0
    %1063 = vmatpush1.msra.mxu0 0.0
    %1064 = vmatprep.subr.mxu0 0.0
    %1065 = vmatpush1.msra.mxu0 0.0
    %1066 = vmatprep.subr.mxu0 0.0
    %1067 = vmatpush1.msra.mxu0 0.0
    %1068 = vmatprep.subr.mxu0 0.0
    %1069 = vmatpush1.msra.mxu0 0.0
    %1070 = vmatprep.subr.mxu0 0.0
    %1071 = vmatpush1.msra.mxu0 0.0
    %1072 = vmatprep.subr.mxu0 0.0
    %1073 = vmatpush1.msra.mxu0 0.0
    %1074 = vmatprep.subr.mxu0 0.0
    %1075 = vmatpush1.msra.mxu0 0.0
    %1076 = vmatprep.subr.mxu0 0.0
    %1077 = vmatpush1.msra.mxu0 0.0
    %1078 = vmatprep.subr.mxu0 0.0
    %1079 = vmatpush1.msra.mxu0 0.0
    %1080 = vmatprep.subr.mxu0 0.0
    %1081 = vmatpush1.msra.mxu0 0.0
    %1082 = vmatprep.subr.mxu0 0.0
    %1083 = vmatpush1.msra.mxu0 0.0
    %1084 = vmatprep.subr.mxu0 0.0
    %1085 = vmatpush1.msra.mxu0 0.0
    %1086 = vmatprep.subr.mxu0 0.0
    %1087 = vmatpush1.msra.mxu0 0.0
    %1088 = vmatprep.subr.mxu0 0.0
    %1089 = vmatpush1.msra.mxu0 0.0
    %1090 = vmatprep.subr.mxu0 0.0
    %1091 = vmatpush1.msra.mxu0 0.0
    %1092 = vmatprep.subr.mxu0 0.0
    %1093 = vmatpush1.msra.mxu0 0.0
    %1094 = vmatprep.subr.mxu0 0.0
    %1095 = vmatpush1.msra.mxu0 0.0
    %1096 = vmatprep.subr.mxu0 0.0
    %1097 = vmatpush1.msra.mxu0 0.0
    %1098 = vmatprep.subr.mxu0 0.0
    %1099 = vmatpush1.msra.mxu0 0.0
    %1100 = vmatprep.subr.mxu0 0.0
    %1101 = vmatpush1.msra.mxu0 0.0
    %1102 = vmatprep.subr.mxu0 0.0
    %1103 = vmatpush1.msra.mxu0 0.0
    %1104 = vmatprep.subr.mxu0 0.0
    %1105 = vmatpush1.msra.mxu0 0.0
    %1106 = vmatprep.subr.mxu0 0.0
    %1107 = vmatpush1.msra.mxu0 0.0
    %1108 = vmatprep.subr.mxu0 0.0
    %1109 = vmatpush1.msra.mxu0 0.0
    %1110 = vmatprep.subr.mxu0 0.0
    %1111 = vmatpush1.msra.mxu0 0.0
    %1112 = vmatprep.subr.mxu0 0.0
    %1113 = vmatpush1.msra.mxu0 0.0
    %1114 = vmatprep.subr.mxu0 0.0
    %1115 = vmatpush1.msra.mxu0 0.0
    %1116 = vmatprep.subr.mxu0 0.0
    %1117 = vmatpush1.msra.mxu0 0.0
    %1118 = vmatprep.mubr.f32.mxu0 0.0
    %1119 = vmatmul.mubr.f32.gmra.mrb[0].mxu0 %v981
    %v1120 = vpop.f32.mrb[0].mxu0
    %v1121 = vadd.f32 0.0, %v1120
    %v1122 = vpop.f32.mrb[0].mxu0
    %v1123 = vadd.f32 0.0, %v1122
    %1124 = vdwg.mxu0
    %v1125 = vmul.f32 %v98, %v1050
    %v1126 = vmul.f32 %v99, %v1052
    %v1127 = vmul.f32 %v100, %v1121
    %v1128 = vmul.f32 %v101, %v1123
    %v1129 = vadd.f32 %v961, %v1125
    %v1130 = vadd.f32 %v962, %v1126
    %v1131 = vadd.f32 %v963, %v1127
    %v1132 = vadd.f32 %v964, %v1128
    %1133 = vrot.lane.b32.xlu0 %v243, 127
    %v1134 = vpop.permute.xlu0 %1133
    %1135 = vrot.lane.b32.xlu0 %v245, 127
    %v1136 = vpop.permute.xlu0 %1135
    %1137 = vrot.lane.b32.xlu0 %v314, 127
    %v1138 = vpop.permute.xlu0 %1137
    %1139 = vrot.lane.b32.xlu0 %v316, 127
    %v1140 = vpop.permute.xlu0 %1139
    %vm1141 = vcmp.lt.s32.totalorder %v34, 127
    %v1142 = vsel %vm1141, %v1138, %v1140
    %v1143 = vsel %vm1141, %v1136, %v1138
    %v1144 = vsel %vm1141, %v1134, %v1136
    %v1145 = vsel %vm1141, %v1140, %v1134
    %s1146 = scalar_lea.vmem %s3, 40
    %v1147 = vld [vmem:[%s1146] sm:$0xff]
    %v1149 = vsel %vm334, %v1147, 0
    %1151 = vmatprep.subr.mxu0 %v1143
    %1152 = vmatpush1.msra.mxu0 %v1144
    %1153 = vmatprep.subr.mxu0 0.0
    %1154 = vmatpush1.msra.mxu0 0.0
    %1155 = vmatprep.subr.mxu0 0.0
    %1156 = vmatpush1.msra.mxu0 0.0
    %1157 = vmatprep.subr.mxu0 0.0
    %1158 = vmatpush1.msra.mxu0 0.0
    %1159 = vmatprep.subr.mxu0 0.0
    %1160 = vmatpush1.msra.mxu0 0.0
    %1161 = vmatprep.subr.mxu0 0.0
    %1162 = vmatpush1.msra.mxu0 0.0
    %1163 = vmatprep.subr.mxu0 0.0
    %1164 = vmatpush1.msra.mxu0 0.0
    %1165 = vmatprep.subr.mxu0 0.0
    %1166 = vmatpush1.msra.mxu0 0.0
    %1167 = vmatprep.subr.mxu0 0.0
    %1168 = vmatpush1.msra.mxu0 0.0
    %1169 = vmatprep.subr.mxu0 0.0
    %1170 = vmatpush1.msra.mxu0 0.0
    %1171 = vmatprep.subr.mxu0 0.0
    %1172 = vmatpush1.msra.mxu0 0.0
    %1173 = vmatprep.subr.mxu0 0.0
    %1174 = vmatpush1.msra.mxu0 0.0
    %1175 = vmatprep.subr.mxu0 0.0
    %1176 = vmatpush1.msra.mxu0 0.0
    %1177 = vmatprep.subr.mxu0 0.0
    %1178 = vmatpush1.msra.mxu0 0.0
    %1179 = vmatprep.subr.mxu0 0.0
    %1180 = vmatpush1.msra.mxu0 0.0
    %1181 = vmatprep.subr.mxu0 0.0
    %1182 = vmatpush1.msra.mxu0 0.0
    %1183 = vmatprep.subr.mxu0 0.0
    %1184 = vmatpush1.msra.mxu0 0.0
    %1185 = vmatprep.subr.mxu0 0.0
    %1186 = vmatpush1.msra.mxu0 0.0
    %1187 = vmatprep.subr.mxu0 0.0
    %1188 = vmatpush1.msra.mxu0 0.0
    %1189 = vmatprep.subr.mxu0 0.0
    %1190 = vmatpush1.msra.mxu0 0.0
    %1191 = vmatprep.subr.mxu0 0.0
    %1192 = vmatpush1.msra.mxu0 0.0
    %1193 = vmatprep.subr.mxu0 0.0
    %1194 = vmatpush1.msra.mxu0 0.0
    %1195 = vmatprep.subr.mxu0 0.0
    %1196 = vmatpush1.msra.mxu0 0.0
    %1197 = vmatprep.subr.mxu0 0.0
    %1198 = vmatpush1.msra.mxu0 0.0
    %1199 = vmatprep.subr.mxu0 0.0
    %1200 = vmatpush1.msra.mxu0 0.0
    %1201 = vmatprep.subr.mxu0 0.0
    %1202 = vmatpush1.msra.mxu0 0.0
    %1203 = vmatprep.subr.mxu0 0.0
    %1204 = vmatpush1.msra.mxu0 0.0
    %1205 = vmatprep.subr.mxu0 0.0
    %1206 = vmatpush1.msra.mxu0 0.0
    %1207 = vmatprep.subr.mxu0 0.0
    %1208 = vmatpush1.msra.mxu0 0.0
    %1209 = vmatprep.subr.mxu0 0.0
    %1210 = vmatpush1.msra.mxu0 0.0
    %1211 = vmatprep.subr.mxu0 0.0
    %1212 = vmatpush1.msra.mxu0 0.0
    %1213 = vmatprep.subr.mxu0 0.0
    %1214 = vmatpush1.msra.mxu0 0.0
    %1215 = vmatprep.mubr.f32.mxu0 0.0
    %1216 = vmatmul.mubr.f32.gmra.mrb[0].mxu0 %v1149
    %v1217 = vpop.f32.mrb[0].mxu0
    %v1218 = vadd.f32 0.0, %v1217
    %v1219 = vpop.f32.mrb[0].mxu0
    %v1220 = vadd.f32 0.0, %v1219
    %1221 = vdwg.mxu0
    %1222 = vmatprep.subr.mxu0 %v1145
    %1223 = vmatpush1.msra.mxu0 %v1142
    %1224 = vmatprep.subr.mxu0 0.0
    %1225 = vmatpush1.msra.mxu0 0.0
    %1226 = vmatprep.subr.mxu0 0.0
    %1227 = vmatpush1.msra.mxu0 0.0
    %1228 = vmatprep.subr.mxu0 0.0
    %1229 = vmatpush1.msra.mxu0 0.0
    %1230 = vmatprep.subr.mxu0 0.0
    %1231 = vmatpush1.msra.mxu0 0.0
    %1232 = vmatprep.subr.mxu0 0.0
    %1233 = vmatpush1.msra.mxu0 0.0
    %1234 = vmatprep.subr.mxu0 0.0
    %1235 = vmatpush1.msra.mxu0 0.0
    %1236 = vmatprep.subr.mxu0 0.0
    %1237 = vmatpush1.msra.mxu0 0.0
    %1238 = vmatprep.subr.mxu0 0.0
    %1239 = vmatpush1.msra.mxu0 0.0
    %1240 = vmatprep.subr.mxu0 0.0
    %1241 = vmatpush1.msra.mxu0 0.0
    %1242 = vmatprep.subr.mxu0 0.0
    %1243 = vmatpush1.msra.mxu0 0.0
    %1244 = vmatprep.subr.mxu0 0.0
    %1245 = vmatpush1.msra.mxu0 0.0
    %1246 = vmatprep.subr.mxu0 0.0
    %1247 = vmatpush1.msra.mxu0 0.0
    %1248 = vmatprep.subr.mxu0 0.0
    %1249 = vmatpush1.msra.mxu0 0.0
    %1250 = vmatprep.subr.mxu0 0.0
    %1251 = vmatpush1.msra.mxu0 0.0
    %1252 = vmatprep.subr.mxu0 0.0
    %1253 = vmatpush1.msra.mxu0 0.0
    %1254 = vmatprep.subr.mxu0 0.0
    %1255 = vmatpush1.msra.mxu0 0.0
    %1256 = vmatprep.subr.mxu0 0.0
    %1257 = vmatpush1.msra.mxu0 0.0
    %1258 = vmatprep.subr.mxu0 0.0
    %1259 = vmatpush1.msra.mxu0 0.0
    %1260 = vmatprep.subr.mxu0 0.0
    %1261 = vmatpush1.msra.mxu0 0.0
    %1262 = vmatprep.subr.mxu0 0.0
    %1263 = vmatpush1.msra.mxu0 0.0
    %1264 = vmatprep.subr.mxu0 0.0
    %1265 = vmatpush1.msra.mxu0 0.0
    %1266 = vmatprep.subr.mxu0 0.0
    %1267 = vmatpush1.msra.mxu0 0.0
    %1268 = vmatprep.subr.mxu0 0.0
    %1269 = vmatpush1.msra.mxu0 0.0
    %1270 = vmatprep.subr.mxu0 0.0
    %1271 = vmatpush1.msra.mxu0 0.0
    %1272 = vmatprep.subr.mxu0 0.0
    %1273 = vmatpush1.msra.mxu0 0.0
    %1274 = vmatprep.subr.mxu0 0.0
    %1275 = vmatpush1.msra.mxu0 0.0
    %1276 = vmatprep.subr.mxu0 0.0
    %1277 = vmatpush1.msra.mxu0 0.0
    %1278 = vmatprep.subr.mxu0 0.0
    %1279 = vmatpush1.msra.mxu0 0.0
    %1280 = vmatprep.subr.mxu0 0.0
    %1281 = vmatpush1.msra.mxu0 0.0
    %1282 = vmatprep.subr.mxu0 0.0
    %1283 = vmatpush1.msra.mxu0 0.0
    %1284 = vmatprep.subr.mxu0 0.0
    %1285 = vmatpush1.msra.mxu0 0.0
    %1286 = vmatprep.mubr.f32.mxu0 0.0
    %1287 = vmatmul.mubr.f32.gmra.mrb[0].mxu0 %v1149
    %v1288 = vpop.f32.mrb[0].mxu0
    %v1289 = vadd.f32 0.0, %v1288
    %v1290 = vpop.f32.mrb[0].mxu0
    %v1291 = vadd.f32 0.0, %v1290
    %1292 = vdwg.mxu0
    %v1293 = vmul.f32 %v106, %v1218
    %v1294 = vmul.f32 %v107, %v1220
    %v1295 = vmul.f32 %v108, %v1289
    %v1296 = vmul.f32 %v109, %v1291
    %v1297 = vadd.f32 %v1129, %v1293
    %v1298 = vadd.f32 %v1130, %v1294
    %v1299 = vadd.f32 %v1131, %v1295
    %v1300 = vadd.f32 %v1132, %v1296
    %1301 = vrot.lane.b32.xlu0 %v243, 113
    %v1302 = vpop.permute.xlu0 %1301
    %1303 = vrot.lane.b32.xlu0 %v245, 113
    %v1304 = vpop.permute.xlu0 %1303
    %1305 = vrot.lane.b32.xlu0 %v314, 113
    %v1306 = vpop.permute.xlu0 %1305
    %1307 = vrot.lane.b32.xlu0 %v316, 113
    %v1308 = vpop.permute.xlu0 %1307
    %vm1309 = vcmp.lt.s32.totalorder %v34, 113
    %v1310 = vsel %vm1309, %v1306, %v1308
    %v1311 = vsel %vm1309, %v1304, %v1306
    %v1312 = vsel %vm1309, %v1302, %v1304
    %v1313 = vsel %vm1309, %v1308, %v1302
    %s1314 = scalar_lea.vmem %s3, 48
    %v1315 = vld [vmem:[%s1314] sm:$0xff]
    %v1317 = vsel %vm334, %v1315, 0
    %1319 = vmatprep.subr.mxu0 %v1311
    %1320 = vmatpush1.msra.mxu0 %v1312
    %1321 = vmatprep.subr.mxu0 0.0
    %1322 = vmatpush1.msra.mxu0 0.0
    %1323 = vmatprep.subr.mxu0 0.0
    %1324 = vmatpush1.msra.mxu0 0.0
    %1325 = vmatprep.subr.mxu0 0.0
    %1326 = vmatpush1.msra.mxu0 0.0
    %1327 = vmatprep.subr.mxu0 0.0
    %1328 = vmatpush1.msra.mxu0 0.0
    %1329 = vmatprep.subr.mxu0 0.0
    %1330 = vmatpush1.msra.mxu0 0.0
    %1331 = vmatprep.subr.mxu0 0.0
    %1332 = vmatpush1.msra.mxu0 0.0
    %1333 = vmatprep.subr.mxu0 0.0
    %1334 = vmatpush1.msra.mxu0 0.0
    %1335 = vmatprep.subr.mxu0 0.0
    %1336 = vmatpush1.msra.mxu0 0.0
    %1337 = vmatprep.subr.mxu0 0.0
    %1338 = vmatpush1.msra.mxu0 0.0
    %1339 = vmatprep.subr.mxu0 0.0
    %1340 = vmatpush1.msra.mxu0 0.0
    %1341 = vmatprep.subr.mxu0 0.0
    %1342 = vmatpush1.msra.mxu0 0.0
    %1343 = vmatprep.subr.mxu0 0.0
    %1344 = vmatpush1.msra.mxu0 0.0
    %1345 = vmatprep.subr.mxu0 0.0
    %1346 = vmatpush1.msra.mxu0 0.0
    %1347 = vmatprep.subr.mxu0 0.0
    %1348 = vmatpush1.msra.mxu0 0.0
    %1349 = vmatprep.subr.mxu0 0.0
    %1350 = vmatpush1.msra.mxu0 0.0
    %1351 = vmatprep.subr.mxu0 0.0
    %1352 = vmatpush1.msra.mxu0 0.0
    %1353 = vmatprep.subr.mxu0 0.0
    %1354 = vmatpush1.msra.mxu0 0.0
    %1355 = vmatprep.subr.mxu0 0.0
    %1356 = vmatpush1.msra.mxu0 0.0
    %1357 = vmatprep.subr.mxu0 0.0
    %1358 = vmatpush1.msra.mxu0 0.0
    %1359 = vmatprep.subr.mxu0 0.0
    %1360 = vmatpush1.msra.mxu0 0.0
    %1361 = vmatprep.subr.mxu0 0.0
    %1362 = vmatpush1.msra.mxu0 0.0
    %1363 = vmatprep.subr.mxu0 0.0
    %1364 = vmatpush1.msra.mxu0 0.0
    %1365 = vmatprep.subr.mxu0 0.0
    %1366 = vmatpush1.msra.mxu0 0.0
    %1367 = vmatprep.subr.mxu0 0.0
    %1368 = vmatpush1.msra.mxu0 0.0
    %1369 = vmatprep.subr.mxu0 0.0
    %1370 = vmatpush1.msra.mxu0 0.0
    %1371 = vmatprep.subr.mxu0 0.0
    %1372 = vmatpush1.msra.mxu0 0.0
    %1373 = vmatprep.subr.mxu0 0.0
    %1374 = vmatpush1.msra.mxu0 0.0
    %1375 = vmatprep.subr.mxu0 0.0
    %1376 = vmatpush1.msra.mxu0 0.0
    %1377 = vmatprep.subr.mxu0 0.0
    %1378 = vmatpush1.msra.mxu0 0.0
    %1379 = vmatprep.subr.mxu0 0.0
    %1380 = vmatpush1.msra.mxu0 0.0
    %1381 = vmatprep.subr.mxu0 0.0
    %1382 = vmatpush1.msra.mxu0 0.0
    %1383 = vmatprep.mubr.f32.mxu0 0.0
    %1384 = vmatmul.mubr.f32.gmra.mrb[0].mxu0 %v1317
    %v1385 = vpop.f32.mrb[0].mxu0
    %v1386 = vadd.f32 0.0, %v1385
    %v1387 = vpop.f32.mrb[0].mxu0
    %v1388 = vadd.f32 0.0, %v1387
    %1389 = vdwg.mxu0
    %1390 = vmatprep.subr.mxu0 %v1313
    %1391 = vmatpush1.msra.mxu0 %v1310
    %1392 = vmatprep.subr.mxu0 0.0
    %1393 = vmatpush1.msra.mxu0 0.0
    %1394 = vmatprep.subr.mxu0 0.0
    %1395 = vmatpush1.msra.mxu0 0.0
    %1396 = vmatprep.subr.mxu0 0.0
    %1397 = vmatpush1.msra.mxu0 0.0
    %1398 = vmatprep.subr.mxu0 0.0
    %1399 = vmatpush1.msra.mxu0 0.0
    %1400 = vmatprep.subr.mxu0 0.0
    %1401 = vmatpush1.msra.mxu0 0.0
    %1402 = vmatprep.subr.mxu0 0.0
    %1403 = vmatpush1.msra.mxu0 0.0
    %1404 = vmatprep.subr.mxu0 0.0
    %1405 = vmatpush1.msra.mxu0 0.0
    %1406 = vmatprep.subr.mxu0 0.0
    %1407 = vmatpush1.msra.mxu0 0.0
    %1408 = vmatprep.subr.mxu0 0.0
    %1409 = vmatpush1.msra.mxu0 0.0
    %1410 = vmatprep.subr.mxu0 0.0
    %1411 = vmatpush1.msra.mxu0 0.0
    %1412 = vmatprep.subr.mxu0 0.0
    %1413 = vmatpush1.msra.mxu0 0.0
    %1414 = vmatprep.subr.mxu0 0.0
    %1415 = vmatpush1.msra.mxu0 0.0
    %1416 = vmatprep.subr.mxu0 0.0
    %1417 = vmatpush1.msra.mxu0 0.0
    %1418 = vmatprep.subr.mxu0 0.0
    %1419 = vmatpush1.msra.mxu0 0.0
    %1420 = vmatprep.subr.mxu0 0.0
    %1421 = vmatpush1.msra.mxu0 0.0
    %1422 = vmatprep.subr.mxu0 0.0
    %1423 = vmatpush1.msra.mxu0 0.0
    %1424 = vmatprep.subr.mxu0 0.0
    %1425 = vmatpush1.msra.mxu0 0.0
    %1426 = vmatprep.subr.mxu0 0.0
    %1427 = vmatpush1.msra.mxu0 0.0
    %1428 = vmatprep.subr.mxu0 0.0
    %1429 = vmatpush1.msra.mxu0 0.0
    %1430 = vmatprep.subr.mxu0 0.0
    %1431 = vmatpush1.msra.mxu0 0.0
    %1432 = vmatprep.subr.mxu0 0.0
    %1433 = vmatpush1.msra.mxu0 0.0
    %1434 = vmatprep.subr.mxu0 0.0
    %1435 = vmatpush1.msra.mxu0 0.0
    %1436 = vmatprep.subr.mxu0 0.0
    %1437 = vmatpush1.msra.mxu0 0.0
    %1438 = vmatprep.subr.mxu0 0.0
    %1439 = vmatpush1.msra.mxu0 0.0
    %1440 = vmatprep.subr.mxu0 0.0
    %1441 = vmatpush1.msra.mxu0 0.0
    %1442 = vmatprep.subr.mxu0 0.0
    %1443 = vmatpush1.msra.mxu0 0.0
    %1444 = vmatprep.subr.mxu0 0.0
    %1445 = vmatpush1.msra.mxu0 0.0
    %1446 = vmatprep.subr.mxu0 0.0
    %1447 = vmatpush1.msra.mxu0 0.0
    %1448 = vmatprep.subr.mxu0 0.0
    %1449 = vmatpush1.msra.mxu0 0.0
    %1450 = vmatprep.subr.mxu0 0.0
    %1451 = vmatpush1.msra.mxu0 0.0
    %1452 = vmatprep.subr.mxu0 0.0
    %1453 = vmatpush1.msra.mxu0 0.0
    %1454 = vmatprep.mubr.f32.mxu0 0.0
    %1455 = vmatmul.mubr.f32.gmra.mrb[0].mxu0 %v1317
    %v1456 = vpop.f32.mrb[0].mxu0
    %v1457 = vadd.f32 0.0, %v1456
    %v1458 = vpop.f32.mrb[0].mxu0
    %v1459 = vadd.f32 0.0, %v1458
    %1460 = vdwg.mxu0
    %v1461 = vmul.f32 %v122, %v1386
    %v1462 = vmul.f32 %v123, %v1388
    %v1463 = vmul.f32 %v124, %v1457
    %v1464 = vmul.f32 %v125, %v1459
    %v1465 = vadd.f32 %v1297, %v1461
    %v1466 = vadd.f32 %v1298, %v1462
    %v1467 = vadd.f32 %v1299, %v1463
    %v1468 = vadd.f32 %v1300, %v1464
    %1469 = vrot.lane.b32.xlu0 %v243, 112
    %v1470 = vpop.permute.xlu0 %1469
    %1471 = vrot.lane.b32.xlu0 %v245, 112
    %v1472 = vpop.permute.xlu0 %1471
    %1473 = vrot.lane.b32.xlu0 %v314, 112
    %v1474 = vpop.permute.xlu0 %1473
    %1475 = vrot.lane.b32.xlu0 %v316, 112
    %v1476 = vpop.permute.xlu0 %1475
    %vm1477 = vcmp.lt.s32.totalorder %v34, 112
    %v1478 = vsel %vm1477, %v1474, %v1476
    %v1479 = vsel %vm1477, %v1472, %v1474
    %v1480 = vsel %vm1477, %v1470, %v1472
    %v1481 = vsel %vm1477, %v1476, %v1470
    %s1482 = scalar_lea.vmem %s3, 56
    %v1483 = vld [vmem:[%s1482] sm:$0xff]
    %v1485 = vsel %vm334, %v1483, 0
    %1487 = vmatprep.subr.mxu0 %v1479
    %1488 = vmatpush1.msra.mxu0 %v1480
    %1489 = vmatprep.subr.mxu0 0.0
    %1490 = vmatpush1.msra.mxu0 0.0
    %1491 = vmatprep.subr.mxu0 0.0
    %1492 = vmatpush1.msra.mxu0 0.0
    %1493 = vmatprep.subr.mxu0 0.0
    %1494 = vmatpush1.msra.mxu0 0.0
    %1495 = vmatprep.subr.mxu0 0.0
    %1496 = vmatpush1.msra.mxu0 0.0
    %1497 = vmatprep.subr.mxu0 0.0
    %1498 = vmatpush1.msra.mxu0 0.0
    %1499 = vmatprep.subr.mxu0 0.0
    %1500 = vmatpush1.msra.mxu0 0.0
    %1501 = vmatprep.subr.mxu0 0.0
    %1502 = vmatpush1.msra.mxu0 0.0
    %1503 = vmatprep.subr.mxu0 0.0
    %1504 = vmatpush1.msra.mxu0 0.0
    %1505 = vmatprep.subr.mxu0 0.0
    %1506 = vmatpush1.msra.mxu0 0.0
    %1507 = vmatprep.subr.mxu0 0.0
    %1508 = vmatpush1.msra.mxu0 0.0
    %1509 = vmatprep.subr.mxu0 0.0
    %1510 = vmatpush1.msra.mxu0 0.0
    %1511 = vmatprep.subr.mxu0 0.0
    %1512 = vmatpush1.msra.mxu0 0.0
    %1513 = vmatprep.subr.mxu0 0.0
    %1514 = vmatpush1.msra.mxu0 0.0
    %1515 = vmatprep.subr.mxu0 0.0
    %1516 = vmatpush1.msra.mxu0 0.0
    %1517 = vmatprep.subr.mxu0 0.0
    %1518 = vmatpush1.msra.mxu0 0.0
    %1519 = vmatprep.subr.mxu0 0.0
    %1520 = vmatpush1.msra.mxu0 0.0
    %1521 = vmatprep.subr.mxu0 0.0
    %1522 = vmatpush1.msra.mxu0 0.0
    %1523 = vmatprep.subr.mxu0 0.0
    %1524 = vmatpush1.msra.mxu0 0.0
    %1525 = vmatprep.subr.mxu0 0.0
    %1526 = vmatpush1.msra.mxu0 0.0
    %1527 = vmatprep.subr.mxu0 0.0
    %1528 = vmatpush1.msra.mxu0 0.0
    %1529 = vmatprep.subr.mxu0 0.0
    %1530 = vmatpush1.msra.mxu0 0.0
    %1531 = vmatprep.subr.mxu0 0.0
    %1532 = vmatpush1.msra.mxu0 0.0
    %1533 = vmatprep.subr.mxu0 0.0
    %1534 = vmatpush1.msra.mxu0 0.0
    %1535 = vmatprep.subr.mxu0 0.0
    %1536 = vmatpush1.msra.mxu0 0.0
    %1537 = vmatprep.subr.mxu0 0.0
    %1538 = vmatpush1.msra.mxu0 0.0
    %1539 = vmatprep.subr.mxu0 0.0
    %1540 = vmatpush1.msra.mxu0 0.0
    %1541 = vmatprep.subr.mxu0 0.0
    %1542 = vmatpush1.msra.mxu0 0.0
    %1543 = vmatprep.subr.mxu0 0.0
    %1544 = vmatpush1.msra.mxu0 0.0
    %1545 = vmatprep.subr.mxu0 0.0
    %1546 = vmatpush1.msra.mxu0 0.0
    %1547 = vmatprep.subr.mxu0 0.0
    %1548 = vmatpush1.msra.mxu0 0.0
    %1549 = vmatprep.subr.mxu0 0.0
    %1550 = vmatpush1.msra.mxu0 0.0
    %1551 = vmatprep.mubr.f32.mxu0 0.0
    %1552 = vmatmul.mubr.f32.gmra.mrb[0].mxu0 %v1485
    %v1553 = vpop.f32.mrb[0].mxu0
    %v1554 = vadd.f32 0.0, %v1553
    %v1555 = vpop.f32.mrb[0].mxu0
    %v1556 = vadd.f32 0.0, %v1555
    %1557 = vdwg.mxu0
    %1558 = vmatprep.subr.mxu0 %v1481
    %1559 = vmatpush1.msra.mxu0 %v1478
    %1560 = vmatprep.subr.mxu0 0.0
    %1561 = vmatpush1.msra.mxu0 0.0
    %1562 = vmatprep.subr.mxu0 0.0
    %1563 = vmatpush1.msra.mxu0 0.0
    %1564 = vmatprep.subr.mxu0 0.0
    %1565 = vmatpush1.msra.mxu0 0.0
    %1566 = vmatprep.subr.mxu0 0.0
    %1567 = vmatpush1.msra.mxu0 0.0
    %1568 = vmatprep.subr.mxu0 0.0
    %1569 = vmatpush1.msra.mxu0 0.0
    %1570 = vmatprep.subr.mxu0 0.0
    %1571 = vmatpush1.msra.mxu0 0.0
    %1572 = vmatprep.subr.mxu0 0.0
    %1573 = vmatpush1.msra.mxu0 0.0
    %1574 = vmatprep.subr.mxu0 0.0
    %1575 = vmatpush1.msra.mxu0 0.0
    %1576 = vmatprep.subr.mxu0 0.0
    %1577 = vmatpush1.msra.mxu0 0.0
    %1578 = vmatprep.subr.mxu0 0.0
    %1579 = vmatpush1.msra.mxu0 0.0
    %1580 = vmatprep.subr.mxu0 0.0
    %1581 = vmatpush1.msra.mxu0 0.0
    %1582 = vmatprep.subr.mxu0 0.0
    %1583 = vmatpush1.msra.mxu0 0.0
    %1584 = vmatprep.subr.mxu0 0.0
    %1585 = vmatpush1.msra.mxu0 0.0
    %1586 = vmatprep.subr.mxu0 0.0
    %1587 = vmatpush1.msra.mxu0 0.0
    %1588 = vmatprep.subr.mxu0 0.0
    %1589 = vmatpush1.msra.mxu0 0.0
    %1590 = vmatprep.subr.mxu0 0.0
    %1591 = vmatpush1.msra.mxu0 0.0
    %1592 = vmatprep.subr.mxu0 0.0
    %1593 = vmatpush1.msra.mxu0 0.0
    %1594 = vmatprep.subr.mxu0 0.0
    %1595 = vmatpush1.msra.mxu0 0.0
    %1596 = vmatprep.subr.mxu0 0.0
    %1597 = vmatpush1.msra.mxu0 0.0
    %1598 = vmatprep.subr.mxu0 0.0
    %1599 = vmatpush1.msra.mxu0 0.0
    %1600 = vmatprep.subr.mxu0 0.0
    %1601 = vmatpush1.msra.mxu0 0.0
    %1602 = vmatprep.subr.mxu0 0.0
    %1603 = vmatpush1.msra.mxu0 0.0
    %1604 = vmatprep.subr.mxu0 0.0
    %1605 = vmatpush1.msra.mxu0 0.0
    %1606 = vmatprep.subr.mxu0 0.0
    %1607 = vmatpush1.msra.mxu0 0.0
    %1608 = vmatprep.subr.mxu0 0.0
    %1609 = vmatpush1.msra.mxu0 0.0
    %1610 = vmatprep.subr.mxu0 0.0
    %1611 = vmatpush1.msra.mxu0 0.0
    %1612 = vmatprep.subr.mxu0 0.0
    %1613 = vmatpush1.msra.mxu0 0.0
    %1614 = vmatprep.subr.mxu0 0.0
    %1615 = vmatpush1.msra.mxu0 0.0
    %1616 = vmatprep.subr.mxu0 0.0
    %1617 = vmatpush1.msra.mxu0 0.0
    %1618 = vmatprep.subr.mxu0 0.0
    %1619 = vmatpush1.msra.mxu0 0.0
    %1620 = vmatprep.subr.mxu0 0.0
    %1621 = vmatpush1.msra.mxu0 0.0
    %1622 = vmatprep.mubr.f32.mxu0 0.0
    %1623 = vmatmul.mubr.f32.gmra.mrb[0].mxu0 %v1485
    %v1624 = vpop.f32.mrb[0].mxu0
    %v1625 = vadd.f32 0.0, %v1624
    %v1626 = vpop.f32.mrb[0].mxu0
    %v1627 = vadd.f32 0.0, %v1626
    %1628 = vdwg.mxu0
    %v1629 = vmul.f32 %v130, %v1554
    %v1630 = vmul.f32 %v131, %v1556
    %v1631 = vmul.f32 %v132, %v1625
    %v1632 = vmul.f32 %v133, %v1627
    %v1633 = vadd.f32 %v1465, %v1629
    %v1634 = vadd.f32 %v1466, %v1630
    %v1635 = vadd.f32 %v1467, %v1631
    %v1636 = vadd.f32 %v1468, %v1632
    %1637 = vrot.lane.b32.xlu0 %v243, 111
    %v1638 = vpop.permute.xlu0 %1637
    %1639 = vrot.lane.b32.xlu0 %v245, 111
    %v1640 = vpop.permute.xlu0 %1639
    %1641 = vrot.lane.b32.xlu0 %v314, 111
    %v1642 = vpop.permute.xlu0 %1641
    %1643 = vrot.lane.b32.xlu0 %v316, 111
    %v1644 = vpop.permute.xlu0 %1643
    %vm1645 = vcmp.lt.s32.totalorder %v34, 111
    %v1646 = vsel %vm1645, %v1642, %v1644
    %v1647 = vsel %vm1645, %v1640, %v1642
    %v1648 = vsel %vm1645, %v1638, %v1640
    %v1649 = vsel %vm1645, %v1644, %v1638
    %s1650 = scalar_lea.vmem %s3, 64
    %v1651 = vld [vmem:[%s1650] sm:$0xff]
    %v1653 = vsel %vm334, %v1651, 0
    %1655 = vmatprep.subr.mxu0 %v1647
    %1656 = vmatpush1.msra.mxu0 %v1648
    %1657 = vmatprep.subr.mxu0 0.0
    %1658 = vmatpush1.msra.mxu0 0.0
    %1659 = vmatprep.subr.mxu0 0.0
    %1660 = vmatpush1.msra.mxu0 0.0
    %1661 = vmatprep.subr.mxu0 0.0
    %1662 = vmatpush1.msra.mxu0 0.0
    %1663 = vmatprep.subr.mxu0 0.0
    %1664 = vmatpush1.msra.mxu0 0.0
    %1665 = vmatprep.subr.mxu0 0.0
    %1666 = vmatpush1.msra.mxu0 0.0
    %1667 = vmatprep.subr.mxu0 0.0
    %1668 = vmatpush1.msra.mxu0 0.0
    %1669 = vmatprep.subr.mxu0 0.0
    %1670 = vmatpush1.msra.mxu0 0.0
    %1671 = vmatprep.subr.mxu0 0.0
    %1672 = vmatpush1.msra.mxu0 0.0
    %1673 = vmatprep.subr.mxu0 0.0
    %1674 = vmatpush1.msra.mxu0 0.0
    %1675 = vmatprep.subr.mxu0 0.0
    %1676 = vmatpush1.msra.mxu0 0.0
    %1677 = vmatprep.subr.mxu0 0.0
    %1678 = vmatpush1.msra.mxu0 0.0
    %1679 = vmatprep.subr.mxu0 0.0
    %1680 = vmatpush1.msra.mxu0 0.0
    %1681 = vmatprep.subr.mxu0 0.0
    %1682 = vmatpush1.msra.mxu0 0.0
    %1683 = vmatprep.subr.mxu0 0.0
    %1684 = vmatpush1.msra.mxu0 0.0
    %1685 = vmatprep.subr.mxu0 0.0
    %1686 = vmatpush1.msra.mxu0 0.0
    %1687 = vmatprep.subr.mxu0 0.0
    %1688 = vmatpush1.msra.mxu0 0.0
    %1689 = vmatprep.subr.mxu0 0.0
    %1690 = vmatpush1.msra.mxu0 0.0
    %1691 = vmatprep.subr.mxu0 0.0
    %1692 = vmatpush1.msra.mxu0 0.0
    %1693 = vmatprep.subr.mxu0 0.0
    %1694 = vmatpush1.msra.mxu0 0.0
    %1695 = vmatprep.subr.mxu0 0.0
    %1696 = vmatpush1.msra.mxu0 0.0
    %1697 = vmatprep.subr.mxu0 0.0
    %1698 = vmatpush1.msra.mxu0 0.0
    %1699 = vmatprep.subr.mxu0 0.0
    %1700 = vmatpush1.msra.mxu0 0.0
    %1701 = vmatprep.subr.mxu0 0.0
    %1702 = vmatpush1.msra.mxu0 0.0
    %1703 = vmatprep.subr.mxu0 0.0
    %1704 = vmatpush1.msra.mxu0 0.0
    %1705 = vmatprep.subr.mxu0 0.0
    %1706 = vmatpush1.msra.mxu0 0.0
    %1707 = vmatprep.subr.mxu0 0.0
    %1708 = vmatpush1.msra.mxu0 0.0
    %1709 = vmatprep.subr.mxu0 0.0
    %1710 = vmatpush1.msra.mxu0 0.0
    %1711 = vmatprep.subr.mxu0 0.0
    %1712 = vmatpush1.msra.mxu0 0.0
    %1713 = vmatprep.subr.mxu0 0.0
    %1714 = vmatpush1.msra.mxu0 0.0
    %1715 = vmatprep.subr.mxu0 0.0
    %1716 = vmatpush1.msra.mxu0 0.0
    %1717 = vmatprep.subr.mxu0 0.0
    %1718 = vmatpush1.msra.mxu0 0.0
    %1719 = vmatprep.mubr.f32.mxu0 0.0
    %1720 = vmatmul.mubr.f32.gmra.mrb[0].mxu0 %v1653
    %v1721 = vpop.f32.mrb[0].mxu0
    %v1722 = vadd.f32 0.0, %v1721
    %v1723 = vpop.f32.mrb[0].mxu0
    %v1724 = vadd.f32 0.0, %v1723
    %1725 = vdwg.mxu0
    %1726 = vmatprep.subr.mxu0 %v1649
    %1727 = vmatpush1.msra.mxu0 %v1646
    %1728 = vmatprep.subr.mxu0 0.0
    %1729 = vmatpush1.msra.mxu0 0.0
    %1730 = vmatprep.subr.mxu0 0.0
    %1731 = vmatpush1.msra.mxu0 0.0
    %1732 = vmatprep.subr.mxu0 0.0
    %1733 = vmatpush1.msra.mxu0 0.0
    %1734 = vmatprep.subr.mxu0 0.0
    %1735 = vmatpush1.msra.mxu0 0.0
    %1736 = vmatprep.subr.mxu0 0.0
    %1737 = vmatpush1.msra.mxu0 0.0
    %1738 = vmatprep.subr.mxu0 0.0
    %1739 = vmatpush1.msra.mxu0 0.0
    %1740 = vmatprep.subr.mxu0 0.0
    %1741 = vmatpush1.msra.mxu0 0.0
    %1742 = vmatprep.subr.mxu0 0.0
    %1743 = vmatpush1.msra.mxu0 0.0
    %1744 = vmatprep.subr.mxu0 0.0
    %1745 = vmatpush1.msra.mxu0 0.0
    %1746 = vmatprep.subr.mxu0 0.0
    %1747 = vmatpush1.msra.mxu0 0.0
    %1748 = vmatprep.subr.mxu0 0.0
    %1749 = vmatpush1.msra.mxu0 0.0
    %1750 = vmatprep.subr.mxu0 0.0
    %1751 = vmatpush1.msra.mxu0 0.0
    %1752 = vmatprep.subr.mxu0 0.0
    %1753 = vmatpush1.msra.mxu0 0.0
    %1754 = vmatprep.subr.mxu0 0.0
    %1755 = vmatpush1.msra.mxu0 0.0
    %1756 = vmatprep.subr.mxu0 0.0
    %1757 = vmatpush1.msra.mxu0 0.0
    %1758 = vmatprep.subr.mxu0 0.0
    %1759 = vmatpush1.msra.mxu0 0.0
    %1760 = vmatprep.subr.mxu0 0.0
    %1761 = vmatpush1.msra.mxu0 0.0
    %1762 = vmatprep.subr.mxu0 0.0
    %1763 = vmatpush1.msra.mxu0 0.0
    %1764 = vmatprep.subr.mxu0 0.0
    %1765 = vmatpush1.msra.mxu0 0.0
    %1766 = vmatprep.subr.mxu0 0.0
    %1767 = vmatpush1.msra.mxu0 0.0
    %1768 = vmatprep.subr.mxu0 0.0
    %1769 = vmatpush1.msra.mxu0 0.0
    %1770 = vmatprep.subr.mxu0 0.0
    %1771 = vmatpush1.msra.mxu0 0.0
    %1772 = vmatprep.subr.mxu0 0.0
    %1773 = vmatpush1.msra.mxu0 0.0
    %1774 = vmatprep.subr.mxu0 0.0
    %1775 = vmatpush1.msra.mxu0 0.0
    %1776 = vmatprep.subr.mxu0 0.0
    %1777 = vmatpush1.msra.mxu0 0.0
    %1778 = vmatprep.subr.mxu0 0.0
    %1779 = vmatpush1.msra.mxu0 0.0
    %1780 = vmatprep.subr.mxu0 0.0
    %1781 = vmatpush1.msra.mxu0 0.0
    %1782 = vmatprep.subr.mxu0 0.0
    %1783 = vmatpush1.msra.mxu0 0.0
    %1784 = vmatprep.subr.mxu0 0.0
    %1785 = vmatpush1.msra.mxu0 0.0
    %1786 = vmatprep.subr.mxu0 0.0
    %1787 = vmatpush1.msra.mxu0 0.0
    %1788 = vmatprep.subr.mxu0 0.0
    %1789 = vmatpush1.msra.mxu0 0.0
    %1790 = vmatprep.mubr.f32.mxu0 0.0
    %1791 = vmatmul.mubr.f32.gmra.mrb[0].mxu0 %v1653
    %v1792 = vpop.f32.mrb[0].mxu0
    %v1793 = vadd.f32 0.0, %v1792
    %v1794 = vpop.f32.mrb[0].mxu0
    %v1795 = vadd.f32 0.0, %v1794
    %1796 = vdwg.mxu0
    %v1797 = vmul.f32 %v142, %v1722
    %v1798 = vmul.f32 %v143, %v1724
    %v1799 = vmul.f32 %v144, %v1793
    %v1800 = vmul.f32 %v145, %v1795
    %v1801 = vadd.f32 %v1633, %v1797
    %v1802 = vadd.f32 %v1634, %v1798
    %v1803 = vadd.f32 %v1635, %v1799
    %v1804 = vadd.f32 %v1636, %v1800
    %1806 = vset.pattern.permute.xlu0 0
    %1807 = vperm.xlu0 %1806, %v147
    %v1808 = vpop.permute.xlu0 %1807
    %v1810 = vadd.f32 %v1801, %v1808
    %v1811 = vadd.f32 %v1802, %v1808
    %v1812 = vadd.f32 %v1803, %v1808
    %v1813 = vadd.f32 %v1804, %v1808
    %1814 = vmatprep.subr.mxu0 0.0
    %1815 = vmatpush1.msra.mxu0 1.0
    %1816 = vmatprep.subr.mxu0 0.0
    %1817 = vmatpush1.msra.mxu0 1.0
    %1818 = vmatprep.subr.mxu0 0.0
    %1819 = vmatpush1.msra.mxu0 1.0
    %1820 = vmatprep.subr.mxu0 0.0
    %1821 = vmatpush1.msra.mxu0 1.0
    %1822 = vmatprep.subr.mxu0 0.0
    %1823 = vmatpush1.msra.mxu0 1.0
    %1824 = vmatprep.subr.mxu0 0.0
    %1825 = vmatpush1.msra.mxu0 1.0
    %1826 = vmatprep.subr.mxu0 0.0
    %1827 = vmatpush1.msra.mxu0 1.0
    %1828 = vmatprep.subr.mxu0 0.0
    %1829 = vmatpush1.msra.mxu0 1.0
    %1830 = vmatprep.subr.mxu0 0.0
    %1831 = vmatpush1.msra.mxu0 1.0
    %1832 = vmatprep.subr.mxu0 0.0
    %1833 = vmatpush1.msra.mxu0 1.0
    %1834 = vmatprep.subr.mxu0 0.0
    %1835 = vmatpush1.msra.mxu0 1.0
    %1836 = vmatprep.subr.mxu0 0.0
    %1837 = vmatpush1.msra.mxu0 1.0
    %1838 = vmatprep.subr.mxu0 0.0
    %1839 = vmatpush1.msra.mxu0 1.0
    %1840 = vmatprep.subr.mxu0 0.0
    %1841 = vmatpush1.msra.mxu0 1.0
    %1842 = vmatprep.subr.mxu0 0.0
    %1843 = vmatpush1.msra.mxu0 1.0
    %1844 = vmatprep.subr.mxu0 0.0
    %1845 = vmatpush1.msra.mxu0 1.0
    %1846 = vmatprep.subr.mxu0 0.0
    %1847 = vmatpush1.msra.mxu0 1.0
    %1848 = vmatprep.subr.mxu0 0.0
    %1849 = vmatpush1.msra.mxu0 1.0
    %1850 = vmatprep.subr.mxu0 0.0
    %1851 = vmatpush1.msra.mxu0 1.0
    %1852 = vmatprep.subr.mxu0 0.0
    %1853 = vmatpush1.msra.mxu0 1.0
    %1854 = vmatprep.subr.mxu0 0.0
    %1855 = vmatpush1.msra.mxu0 1.0
    %1856 = vmatprep.subr.mxu0 0.0
    %1857 = vmatpush1.msra.mxu0 1.0
    %1858 = vmatprep.subr.mxu0 0.0
    %1859 = vmatpush1.msra.mxu0 1.0
    %1860 = vmatprep.subr.mxu0 0.0
    %1861 = vmatpush1.msra.mxu0 1.0
    %1862 = vmatprep.subr.mxu0 0.0
    %1863 = vmatpush1.msra.mxu0 1.0
    %1864 = vmatprep.subr.mxu0 0.0
    %1865 = vmatpush1.msra.mxu0 1.0
    %1866 = vmatprep.subr.mxu0 0.0
    %1867 = vmatpush1.msra.mxu0 1.0
    %1868 = vmatprep.subr.mxu0 0.0
    %1869 = vmatpush1.msra.mxu0 1.0
    %1870 = vmatprep.subr.mxu0 0.0
    %1871 = vmatpush1.msra.mxu0 1.0
    %1872 = vmatprep.subr.mxu0 0.0
    %1873 = vmatpush1.msra.mxu0 1.0
    %1874 = vmatprep.subr.mxu0 0.0
    %1875 = vmatpush1.msra.mxu0 1.0
    %1876 = vmatprep.subr.mxu0 0.0
    %1877 = vmatpush1.msra.mxu0 1.0
    %1878 = vmatprep.mubr.f32.mxu0 %v1811
    %1879 = vmatmul.mubr.f32.gmra.mrb[0].mxu0 %v1810
    %v1880 = vpop.f32.mrb[0].mxu0
    %v1881 = vadd.f32 0.0, %v1880
    %v1882 = vpop.f32.mrb[0].mxu0
    %1883 = vdwg.mxu0
    %1884 = vmatprep.subr.mxu0 0.0
    %1885 = vmatpush1.msra.mxu0 1.0
    %1886 = vmatprep.subr.mxu0 0.0
    %1887 = vmatpush1.msra.mxu0 1.0
    %1888 = vmatprep.subr.mxu0 0.0
    %1889 = vmatpush1.msra.mxu0 1.0
    %1890 = vmatprep.subr.mxu0 0.0
    %1891 = vmatpush1.msra.mxu0 1.0
    %1892 = vmatprep.subr.mxu0 0.0
    %1893 = vmatpush1.msra.mxu0 1.0
    %1894 = vmatprep.subr.mxu0 0.0
    %1895 = vmatpush1.msra.mxu0 1.0
    %1896 = vmatprep.subr.mxu0 0.0
    %1897 = vmatpush1.msra.mxu0 1.0
    %1898 = vmatprep.subr.mxu0 0.0
    %1899 = vmatpush1.msra.mxu0 1.0
    %1900 = vmatprep.subr.mxu0 0.0
    %1901 = vmatpush1.msra.mxu0 1.0
    %1902 = vmatprep.subr.mxu0 0.0
    %1903 = vmatpush1.msra.mxu0 1.0
    %1904 = vmatprep.subr.mxu0 0.0
    %1905 = vmatpush1.msra.mxu0 1.0
    %1906 = vmatprep.subr.mxu0 0.0
    %1907 = vmatpush1.msra.mxu0 1.0
    %1908 = vmatprep.subr.mxu0 0.0
    %1909 = vmatpush1.msra.mxu0 1.0
    %1910 = vmatprep.subr.mxu0 0.0
    %1911 = vmatpush1.msra.mxu0 1.0
    %1912 = vmatprep.subr.mxu0 0.0
    %1913 = vmatpush1.msra.mxu0 1.0
    %1914 = vmatprep.subr.mxu0 0.0
    %1915 = vmatpush1.msra.mxu0 1.0
    %1916 = vmatprep.subr.mxu0 0.0
    %1917 = vmatpush1.msra.mxu0 1.0
    %1918 = vmatprep.subr.mxu0 0.0
    %1919 = vmatpush1.msra.mxu0 1.0
    %1920 = vmatprep.subr.mxu0 0.0
    %1921 = vmatpush1.msra.mxu0 1.0
    %1922 = vmatprep.subr.mxu0 0.0
    %1923 = vmatpush1.msra.mxu0 1.0
    %1924 = vmatprep.subr.mxu0 0.0
    %1925 = vmatpush1.msra.mxu0 1.0
    %1926 = vmatprep.subr.mxu0 0.0
    %1927 = vmatpush1.msra.mxu0 1.0
    %1928 = vmatprep.subr.mxu0 0.0
    %1929 = vmatpush1.msra.mxu0 1.0
    %1930 = vmatprep.subr.mxu0 0.0
    %1931 = vmatpush1.msra.mxu0 1.0
    %1932 = vmatprep.subr.mxu0 0.0
    %1933 = vmatpush1.msra.mxu0 1.0
    %1934 = vmatprep.subr.mxu0 0.0
    %1935 = vmatpush1.msra.mxu0 1.0
    %1936 = vmatprep.subr.mxu0 0.0
    %1937 = vmatpush1.msra.mxu0 1.0
    %1938 = vmatprep.subr.mxu0 0.0
    %1939 = vmatpush1.msra.mxu0 1.0
    %1940 = vmatprep.subr.mxu0 0.0
    %1941 = vmatpush1.msra.mxu0 1.0
    %1942 = vmatprep.subr.mxu0 0.0
    %1943 = vmatpush1.msra.mxu0 1.0
    %1944 = vmatprep.subr.mxu0 0.0
    %1945 = vmatpush1.msra.mxu0 1.0
    %1946 = vmatprep.subr.mxu0 0.0
    %1947 = vmatpush1.msra.mxu0 1.0
    %1948 = vmatprep.mubr.f32.mxu0 %v1813
    %1949 = vmatmul.mubr.f32.gmra.mrb[0].mxu0 %v1812
    %v1950 = vpop.f32.mrb[0].mxu0
    %v1951 = vadd.f32 %v1881, %v1950
    %v1952 = vpop.f32.mrb[0].mxu0
    %1953 = vdwg.mxu0
    %v1954 = vmul.f32 %v1951, 0.001953125
    %1956 = vset.pattern.permute.xlu0 0
    %1957 = vperm.xlu0 %1956, %v1954
    %v1958 = vpop.permute.xlu0 %1957
    %v1960 = vsub.f32 %v1810, %v1958
    %v1961 = vsub.f32 %v1811, %v1958
    %v1962 = vsub.f32 %v1812, %v1958
    %v1963 = vsub.f32 %v1813, %v1958
    %v1964 = vmul.f32 %v1960, %v1960
    %v1965 = vmul.f32 %v1961, %v1961
    %v1966 = vmul.f32 %v1962, %v1962
    %v1967 = vmul.f32 %v1963, %v1963
    %1968 = vmatprep.subr.mxu0 0.0
    %1969 = vmatpush1.msra.mxu0 1.0
    %1970 = vmatprep.subr.mxu0 0.0
    %1971 = vmatpush1.msra.mxu0 1.0
    %1972 = vmatprep.subr.mxu0 0.0
    %1973 = vmatpush1.msra.mxu0 1.0
    %1974 = vmatprep.subr.mxu0 0.0
    %1975 = vmatpush1.msra.mxu0 1.0
    %1976 = vmatprep.subr.mxu0 0.0
    %1977 = vmatpush1.msra.mxu0 1.0
    %1978 = vmatprep.subr.mxu0 0.0
    %1979 = vmatpush1.msra.mxu0 1.0
    %1980 = vmatprep.subr.mxu0 0.0
    %1981 = vmatpush1.msra.mxu0 1.0
    %1982 = vmatprep.subr.mxu0 0.0
    %1983 = vmatpush1.msra.mxu0 1.0
    %1984 = vmatprep.subr.mxu0 0.0
    %1985 = vmatpush1.msra.mxu0 1.0
    %1986 = vmatprep.subr.mxu0 0.0
    %1987 = vmatpush1.msra.mxu0 1.0
    %1988 = vmatprep.subr.mxu0 0.0
    %1989 = vmatpush1.msra.mxu0 1.0
    %1990 = vmatprep.subr.mxu0 0.0
    %1991 = vmatpush1.msra.mxu0 1.0
    %1992 = vmatprep.subr.mxu0 0.0
    %1993 = vmatpush1.msra.mxu0 1.0
    %1994 = vmatprep.subr.mxu0 0.0
    %1995 = vmatpush1.msra.mxu0 1.0
    %1996 = vmatprep.subr.mxu0 0.0
    %1997 = vmatpush1.msra.mxu0 1.0
    %1998 = vmatprep.subr.mxu0 0.0
    %1999 = vmatpush1.msra.mxu0 1.0
    %2000 = vmatprep.subr.mxu0 0.0
    %2001 = vmatpush1.msra.mxu0 1.0
    %2002 = vmatprep.subr.mxu0 0.0
    %2003 = vmatpush1.msra.mxu0 1.0
    %2004 = vmatprep.subr.mxu0 0.0
    %2005 = vmatpush1.msra.mxu0 1.0
    %2006 = vmatprep.subr.mxu0 0.0
    %2007 = vmatpush1.msra.mxu0 1.0
    %2008 = vmatprep.subr.mxu0 0.0
    %2009 = vmatpush1.msra.mxu0 1.0
    %2010 = vmatprep.subr.mxu0 0.0
    %2011 = vmatpush1.msra.mxu0 1.0
    %2012 = vmatprep.subr.mxu0 0.0
    %2013 = vmatpush1.msra.mxu0 1.0
    %2014 = vmatprep.subr.mxu0 0.0
    %2015 = vmatpush1.msra.mxu0 1.0
    %2016 = vmatprep.subr.mxu0 0.0
    %2017 = vmatpush1.msra.mxu0 1.0
    %2018 = vmatprep.subr.mxu0 0.0
    %2019 = vmatpush1.msra.mxu0 1.0
    %2020 = vmatprep.subr.mxu0 0.0
    %2021 = vmatpush1.msra.mxu0 1.0
    %2022 = vmatprep.subr.mxu0 0.0
    %2023 = vmatpush1.msra.mxu0 1.0
    %2024 = vmatprep.subr.mxu0 0.0
    %2025 = vmatpush1.msra.mxu0 1.0
    %2026 = vmatprep.subr.mxu0 0.0
    %2027 = vmatpush1.msra.mxu0 1.0
    %2028 = vmatprep.subr.mxu0 0.0
    %2029 = vmatpush1.msra.mxu0 1.0
    %2030 = vmatprep.subr.mxu0 0.0
    %2031 = vmatpush1.msra.mxu0 1.0
    %2032 = vmatprep.mubr.f32.mxu0 %v1965
    %2033 = vmatmul.mubr.f32.gmra.mrb[0].mxu0 %v1964
    %v2034 = vpop.f32.mrb[0].mxu0
    %v2035 = vadd.f32 0.0, %v2034
    %v2036 = vpop.f32.mrb[0].mxu0
    %2037 = vdwg.mxu0
    %2038 = vmatprep.subr.mxu0 0.0
    %2039 = vmatpush1.msra.mxu0 1.0
    %2040 = vmatprep.subr.mxu0 0.0
    %2041 = vmatpush1.msra.mxu0 1.0
    %2042 = vmatprep.subr.mxu0 0.0
    %2043 = vmatpush1.msra.mxu0 1.0
    %2044 = vmatprep.subr.mxu0 0.0
    %2045 = vmatpush1.msra.mxu0 1.0
    %2046 = vmatprep.subr.mxu0 0.0
    %2047 = vmatpush1.msra.mxu0 1.0
    %2048 = vmatprep.subr.mxu0 0.0
    %2049 = vmatpush1.msra.mxu0 1.0
    %2050 = vmatprep.subr.mxu0 0.0
    %2051 = vmatpush1.msra.mxu0 1.0
    %2052 = vmatprep.subr.mxu0 0.0
    %2053 = vmatpush1.msra.mxu0 1.0
    %2054 = vmatprep.subr.mxu0 0.0
    %2055 = vmatpush1.msra.mxu0 1.0
    %2056 = vmatprep.subr.mxu0 0.0
    %2057 = vmatpush1.msra.mxu0 1.0
    %2058 = vmatprep.subr.mxu0 0.0
    %2059 = vmatpush1.msra.mxu0 1.0
    %2060 = vmatprep.subr.mxu0 0.0
    %2061 = vmatpush1.msra.mxu0 1.0
    %2062 = vmatprep.subr.mxu0 0.0
    %2063 = vmatpush1.msra.mxu0 1.0
    %2064 = vmatprep.subr.mxu0 0.0
    %2065 = vmatpush1.msra.mxu0 1.0
    %2066 = vmatprep.subr.mxu0 0.0
    %2067 = vmatpush1.msra.mxu0 1.0
    %2068 = vmatprep.subr.mxu0 0.0
    %2069 = vmatpush1.msra.mxu0 1.0
    %2070 = vmatprep.subr.mxu0 0.0
    %2071 = vmatpush1.msra.mxu0 1.0
    %2072 = vmatprep.subr.mxu0 0.0
    %2073 = vmatpush1.msra.mxu0 1.0
    %2074 = vmatprep.subr.mxu0 0.0
    %2075 = vmatpush1.msra.mxu0 1.0
    %2076 = vmatprep.subr.mxu0 0.0
    %2077 = vmatpush1.msra.mxu0 1.0
    %2078 = vmatprep.subr.mxu0 0.0
    %2079 = vmatpush1.msra.mxu0 1.0
    %2080 = vmatprep.subr.mxu0 0.0
    %2081 = vmatpush1.msra.mxu0 1.0
    %2082 = vmatprep.subr.mxu0 0.0
    %2083 = vmatpush1.msra.mxu0 1.0
    %2084 = vmatprep.subr.mxu0 0.0
    %2085 = vmatpush1.msra.mxu0 1.0
    %2086 = vmatprep.subr.mxu0 0.0
    %2087 = vmatpush1.msra.mxu0 1.0
    %2088 = vmatprep.subr.mxu0 0.0
    %2089 = vmatpush1.msra.mxu0 1.0
    %2090 = vmatprep.subr.mxu0 0.0
    %2091 = vmatpush1.msra.mxu0 1.0
    %2092 = vmatprep.subr.mxu0 0.0
    %2093 = vmatpush1.msra.mxu0 1.0
    %2094 = vmatprep.subr.mxu0 0.0
    %2095 = vmatpush1.msra.mxu0 1.0
    %2096 = vmatprep.subr.mxu0 0.0
    %2097 = vmatpush1.msra.mxu0 1.0
    %2098 = vmatprep.subr.mxu0 0.0
    %2099 = vmatpush1.msra.mxu0 1.0
    %2100 = vmatprep.subr.mxu0 0.0
    %2101 = vmatpush1.msra.mxu0 1.0
    %2102 = vmatprep.mubr.f32.mxu0 %v1967
    %2103 = vmatmul.mubr.f32.gmra.mrb[0].mxu0 %v1966
    %v2104 = vpop.f32.mrb[0].mxu0
    %v2105 = vadd.f32 %v2035, %v2104
    %v2106 = vpop.f32.mrb[0].mxu0
    %2107 = vdwg.mxu0
    %v2108 = vmul.f32 %v2105, 0.001953125
    %v2109 = vadd.f32 %v2108, 1e-05
    %v2110 = vrsqrt.pop %v2109
    %v2111 = vmul.f32 %v149, %v2110
    %2113 = vset.pattern.permute.xlu0 0
    %2114 = vperm.xlu0 %2113, %v2111
    %v2115 = vpop.permute.xlu0 %2114
    %v2117 = vmul.f32 %v1960, %v2115
    %v2118 = vmul.f32 %v1961, %v2115
    %v2119 = vmul.f32 %v1962, %v2115
    %v2120 = vmul.f32 %v1963, %v2115
    %2122 = vset.pattern.permute.xlu0 0
    %2123 = vperm.xlu0 %2122, %v150
    %v2124 = vpop.permute.xlu0 %2123
    %v2126 = vadd.f32 %v2117, %v2124
    %v2127 = vadd.f32 %v2118, %v2124
    %v2128 = vadd.f32 %v2119, %v2124
    %v2129 = vadd.f32 %v2120, %v2124
    %vm2130 = vcmp.ge.f32.partialorder %v2126, 0.0
    %vm2131 = vcmp.ge.f32.partialorder %v2127, 0.0
    %vm2132 = vcmp.ge.f32.partialorder %v2128, 0.0
    %vm2133 = vcmp.ge.f32.partialorder %v2129, 0.0
    %v2134 = vmul.f32 %v2126, 0.2
    %v2135 = vmul.f32 %v2127, 0.2
    %v2136 = vmul.f32 %v2128, 0.2
    %v2137 = vmul.f32 %v2129, 0.2
    %v2138 = vsel %vm2130, %v2126, %v2134
    %v2139 = vsel %vm2131, %v2127, %v2135
    %v2140 = vsel %vm2132, %v2128, %v2136
    %v2141 = vsel %vm2133, %v2129, %v2137
    %s2142 = scalar_lea.vmem %s7, 32
    %v2143 = vld [vmem:[%s2142] sm:$0xff]
    %2144 = vrot.lane.b32.xlu0 %v2138, 17
    %v2145 = vpop.permute.xlu0 %2144
    %2146 = vrot.lane.b32.xlu0 %v2139, 17
    %v2147 = vpop.permute.xlu0 %2146
    %2148 = vrot.lane.b32.xlu0 %v2140, 17
    %v2149 = vpop.permute.xlu0 %2148
    %2150 = vrot.lane.b32.xlu0 %v2141, 17
    %v2151 = vpop.permute.xlu0 %2150
    %v2152 = vsel %vm328, %v2149, %v2151
    %v2153 = vsel %vm328, %v2147, %v2149
    %v2154 = vsel %vm328, %v2145, %v2147
    %v2155 = vsel %vm328, %v2151, %v2145
    %v2156 = vld [vmem:[%s7] sm:$0xff]
    %v2158 = vsel %vm334, %v2156, 0
    %2160 = vmatprep.subr.mxu0 %v2154
    %2161 = vmatpush1.msra.mxu0 %v2155
    %2162 = vmatprep.subr.mxu0 0.0
    %2163 = vmatpush1.msra.mxu0 0.0
    %2164 = vmatprep.subr.mxu0 0.0
    %2165 = vmatpush1.msra.mxu0 0.0
    %2166 = vmatprep.subr.mxu0 0.0
    %2167 = vmatpush1.msra.mxu0 0.0
    %2168 = vmatprep.subr.mxu0 0.0
    %2169 = vmatpush1.msra.mxu0 0.0
    %2170 = vmatprep.subr.mxu0 0.0
    %2171 = vmatpush1.msra.mxu0 0.0
    %2172 = vmatprep.subr.mxu0 0.0
    %2173 = vmatpush1.msra.mxu0 0.0
    %2174 = vmatprep.subr.mxu0 0.0
    %2175 = vmatpush1.msra.mxu0 0.0
    %2176 = vmatprep.subr.mxu0 0.0
    %2177 = vmatpush1.msra.mxu0 0.0
    %2178 = vmatprep.subr.mxu0 0.0
    %2179 = vmatpush1.msra.mxu0 0.0
    %2180 = vmatprep.subr.mxu0 0.0
    %2181 = vmatpush1.msra.mxu0 0.0
    %2182 = vmatprep.subr.mxu0 0.0
    %2183 = vmatpush1.msra.mxu0 0.0
    %2184 = vmatprep.subr.mxu0 0.0
    %2185 = vmatpush1.msra.mxu0 0.0
    %2186 = vmatprep.subr.mxu0 0.0
    %2187 = vmatpush1.msra.mxu0 0.0
    %2188 = vmatprep.subr.mxu0 0.0
    %2189 = vmatpush1.msra.mxu0 0.0
    %2190 = vmatprep.subr.mxu0 0.0
    %2191 = vmatpush1.msra.mxu0 0.0
    %2192 = vmatprep.subr.mxu0 0.0
    %2193 = vmatpush1.msra.mxu0 0.0
    %2194 = vmatprep.subr.mxu0 0.0
    %2195 = vmatpush1.msra.mxu0 0.0
    %2196 = vmatprep.subr.mxu0 0.0
    %2197 = vmatpush1.msra.mxu0 0.0
    %2198 = vmatprep.subr.mxu0 0.0
    %2199 = vmatpush1.msra.mxu0 0.0
    %2200 = vmatprep.subr.mxu0 0.0
    %2201 = vmatpush1.msra.mxu0 0.0
    %2202 = vmatprep.subr.mxu0 0.0
    %2203 = vmatpush1.msra.mxu0 0.0
    %2204 = vmatprep.subr.mxu0 0.0
    %2205 = vmatpush1.msra.mxu0 0.0
    %2206 = vmatprep.subr.mxu0 0.0
    %2207 = vmatpush1.msra.mxu0 0.0
    %2208 = vmatprep.subr.mxu0 0.0
    %2209 = vmatpush1.msra.mxu0 0.0
    %2210 = vmatprep.subr.mxu0 0.0
    %2211 = vmatpush1.msra.mxu0 0.0
    %2212 = vmatprep.subr.mxu0 0.0
    %2213 = vmatpush1.msra.mxu0 0.0
    %2214 = vmatprep.subr.mxu0 0.0
    %2215 = vmatpush1.msra.mxu0 0.0
    %2216 = vmatprep.subr.mxu0 0.0
    %2217 = vmatpush1.msra.mxu0 0.0
    %2218 = vmatprep.subr.mxu0 0.0
    %2219 = vmatpush1.msra.mxu0 0.0
    %2220 = vmatprep.subr.mxu0 0.0
    %2221 = vmatpush1.msra.mxu0 0.0
    %2222 = vmatprep.subr.mxu0 0.0
    %2223 = vmatpush1.msra.mxu0 0.0
    %2224 = vmatprep.mubr.f32.mxu0 0.0
    %2225 = vmatmul.mubr.f32.gmra.mrb[0].mxu0 %v2158
    %v2226 = vpop.f32.mrb[0].mxu0
    %v2227 = vadd.f32 0.0, %v2226
    %v2228 = vpop.f32.mrb[0].mxu0
    %v2229 = vadd.f32 0.0, %v2228
    %2230 = vdwg.mxu0
    %2231 = vmatprep.subr.mxu0 %v2152
    %2232 = vmatpush1.msra.mxu0 %v2153
    %2233 = vmatprep.subr.mxu0 0.0
    %2234 = vmatpush1.msra.mxu0 0.0
    %2235 = vmatprep.subr.mxu0 0.0
    %2236 = vmatpush1.msra.mxu0 0.0
    %2237 = vmatprep.subr.mxu0 0.0
    %2238 = vmatpush1.msra.mxu0 0.0
    %2239 = vmatprep.subr.mxu0 0.0
    %2240 = vmatpush1.msra.mxu0 0.0
    %2241 = vmatprep.subr.mxu0 0.0
    %2242 = vmatpush1.msra.mxu0 0.0
    %2243 = vmatprep.subr.mxu0 0.0
    %2244 = vmatpush1.msra.mxu0 0.0
    %2245 = vmatprep.subr.mxu0 0.0
    %2246 = vmatpush1.msra.mxu0 0.0
    %2247 = vmatprep.subr.mxu0 0.0
    %2248 = vmatpush1.msra.mxu0 0.0
    %2249 = vmatprep.subr.mxu0 0.0
    %2250 = vmatpush1.msra.mxu0 0.0
    %2251 = vmatprep.subr.mxu0 0.0
    %2252 = vmatpush1.msra.mxu0 0.0
    %2253 = vmatprep.subr.mxu0 0.0
    %2254 = vmatpush1.msra.mxu0 0.0
    %2255 = vmatprep.subr.mxu0 0.0
    %2256 = vmatpush1.msra.mxu0 0.0
    %2257 = vmatprep.subr.mxu0 0.0
    %2258 = vmatpush1.msra.mxu0 0.0
    %2259 = vmatprep.subr.mxu0 0.0
    %2260 = vmatpush1.msra.mxu0 0.0
    %2261 = vmatprep.subr.mxu0 0.0
    %2262 = vmatpush1.msra.mxu0 0.0
    %2263 = vmatprep.subr.mxu0 0.0
    %2264 = vmatpush1.msra.mxu0 0.0
    %2265 = vmatprep.subr.mxu0 0.0
    %2266 = vmatpush1.msra.mxu0 0.0
    %2267 = vmatprep.subr.mxu0 0.0
    %2268 = vmatpush1.msra.mxu0 0.0
    %2269 = vmatprep.subr.mxu0 0.0
    %2270 = vmatpush1.msra.mxu0 0.0
    %2271 = vmatprep.subr.mxu0 0.0
    %2272 = vmatpush1.msra.mxu0 0.0
    %2273 = vmatprep.subr.mxu0 0.0
    %2274 = vmatpush1.msra.mxu0 0.0
    %2275 = vmatprep.subr.mxu0 0.0
    %2276 = vmatpush1.msra.mxu0 0.0
    %2277 = vmatprep.subr.mxu0 0.0
    %2278 = vmatpush1.msra.mxu0 0.0
    %2279 = vmatprep.subr.mxu0 0.0
    %2280 = vmatpush1.msra.mxu0 0.0
    %2281 = vmatprep.subr.mxu0 0.0
    %2282 = vmatpush1.msra.mxu0 0.0
    %2283 = vmatprep.subr.mxu0 0.0
    %2284 = vmatpush1.msra.mxu0 0.0
    %2285 = vmatprep.subr.mxu0 0.0
    %2286 = vmatpush1.msra.mxu0 0.0
    %2287 = vmatprep.subr.mxu0 0.0
    %2288 = vmatpush1.msra.mxu0 0.0
    %2289 = vmatprep.subr.mxu0 0.0
    %2290 = vmatpush1.msra.mxu0 0.0
    %2291 = vmatprep.subr.mxu0 0.0
    %2292 = vmatpush1.msra.mxu0 0.0
    %2293 = vmatprep.subr.mxu0 0.0
    %2294 = vmatpush1.msra.mxu0 0.0
    %2295 = vmatprep.mubr.f32.mxu0 0.0
    %2296 = vmatmul.mubr.f32.gmra.mrb[0].mxu0 %v2158
    %v2297 = vpop.f32.mrb[0].mxu0
    %v2298 = vadd.f32 0.0, %v2297
    %v2299 = vpop.f32.mrb[0].mxu0
    %v2300 = vadd.f32 0.0, %v2299
    %2301 = vdwg.mxu0
    %v2302 = vmul.f32 %v66, %v2227
    %v2303 = vmul.f32 %v67, %v2229
    %v2304 = vmul.f32 %v68, %v2298
    %v2305 = vmul.f32 %v69, %v2300
    %v2307 = vsel %vm334, %v2143, 0
    %2309 = vmatprep.subr.mxu0 %v2139
    %2310 = vmatpush1.msra.mxu0 %v2138
    %2311 = vmatprep.subr.mxu0 0.0
    %2312 = vmatpush1.msra.mxu0 0.0
    %2313 = vmatprep.subr.mxu0 0.0
    %2314 = vmatpush1.msra.mxu0 0.0
    %2315 = vmatprep.subr.mxu0 0.0
    %2316 = vmatpush1.msra.mxu0 0.0
    %2317 = vmatprep.subr.mxu0 0.0
    %2318 = vmatpush1.msra.mxu0 0.0
    %2319 = vmatprep.subr.mxu0 0.0
    %2320 = vmatpush1.msra.mxu0 0.0
    %2321 = vmatprep.subr.mxu0 0.0
    %2322 = vmatpush1.msra.mxu0 0.0
    %2323 = vmatprep.subr.mxu0 0.0
    %2324 = vmatpush1.msra.mxu0 0.0
    %2325 = vmatprep.subr.mxu0 0.0
    %2326 = vmatpush1.msra.mxu0 0.0
    %2327 = vmatprep.subr.mxu0 0.0
    %2328 = vmatpush1.msra.mxu0 0.0
    %2329 = vmatprep.subr.mxu0 0.0
    %2330 = vmatpush1.msra.mxu0 0.0
    %2331 = vmatprep.subr.mxu0 0.0
    %2332 = vmatpush1.msra.mxu0 0.0
    %2333 = vmatprep.subr.mxu0 0.0
    %2334 = vmatpush1.msra.mxu0 0.0
    %2335 = vmatprep.subr.mxu0 0.0
    %2336 = vmatpush1.msra.mxu0 0.0
    %2337 = vmatprep.subr.mxu0 0.0
    %2338 = vmatpush1.msra.mxu0 0.0
    %2339 = vmatprep.subr.mxu0 0.0
    %2340 = vmatpush1.msra.mxu0 0.0
    %2341 = vmatprep.subr.mxu0 0.0
    %2342 = vmatpush1.msra.mxu0 0.0
    %2343 = vmatprep.subr.mxu0 0.0
    %2344 = vmatpush1.msra.mxu0 0.0
    %2345 = vmatprep.subr.mxu0 0.0
    %2346 = vmatpush1.msra.mxu0 0.0
    %2347 = vmatprep.subr.mxu0 0.0
    %2348 = vmatpush1.msra.mxu0 0.0
    %2349 = vmatprep.subr.mxu0 0.0
    %2350 = vmatpush1.msra.mxu0 0.0
    %2351 = vmatprep.subr.mxu0 0.0
    %2352 = vmatpush1.msra.mxu0 0.0
    %2353 = vmatprep.subr.mxu0 0.0
    %2354 = vmatpush1.msra.mxu0 0.0
    %2355 = vmatprep.subr.mxu0 0.0
    %2356 = vmatpush1.msra.mxu0 0.0
    %2357 = vmatprep.subr.mxu0 0.0
    %2358 = vmatpush1.msra.mxu0 0.0
    %2359 = vmatprep.subr.mxu0 0.0
    %2360 = vmatpush1.msra.mxu0 0.0
    %2361 = vmatprep.subr.mxu0 0.0
    %2362 = vmatpush1.msra.mxu0 0.0
    %2363 = vmatprep.subr.mxu0 0.0
    %2364 = vmatpush1.msra.mxu0 0.0
    %2365 = vmatprep.subr.mxu0 0.0
    %2366 = vmatpush1.msra.mxu0 0.0
    %2367 = vmatprep.subr.mxu0 0.0
    %2368 = vmatpush1.msra.mxu0 0.0
    %2369 = vmatprep.subr.mxu0 0.0
    %2370 = vmatpush1.msra.mxu0 0.0
    %2371 = vmatprep.subr.mxu0 0.0
    %2372 = vmatpush1.msra.mxu0 0.0
    %2373 = vmatprep.mubr.f32.mxu0 0.0
    %2374 = vmatmul.mubr.f32.gmra.mrb[0].mxu0 %v2307
    %v2375 = vpop.f32.mrb[0].mxu0
    %v2376 = vadd.f32 %v2302, %v2375
    %v2377 = vpop.f32.mrb[0].mxu0
    %v2378 = vadd.f32 %v2303, %v2377
    %2379 = vdwg.mxu0
    %2380 = vmatprep.subr.mxu0 %v2141
    %2381 = vmatpush1.msra.mxu0 %v2140
    %2382 = vmatprep.subr.mxu0 0.0
    %2383 = vmatpush1.msra.mxu0 0.0
    %2384 = vmatprep.subr.mxu0 0.0
    %2385 = vmatpush1.msra.mxu0 0.0
    %2386 = vmatprep.subr.mxu0 0.0
    %2387 = vmatpush1.msra.mxu0 0.0
    %2388 = vmatprep.subr.mxu0 0.0
    %2389 = vmatpush1.msra.mxu0 0.0
    %2390 = vmatprep.subr.mxu0 0.0
    %2391 = vmatpush1.msra.mxu0 0.0
    %2392 = vmatprep.subr.mxu0 0.0
    %2393 = vmatpush1.msra.mxu0 0.0
    %2394 = vmatprep.subr.mxu0 0.0
    %2395 = vmatpush1.msra.mxu0 0.0
    %2396 = vmatprep.subr.mxu0 0.0
    %2397 = vmatpush1.msra.mxu0 0.0
    %2398 = vmatprep.subr.mxu0 0.0
    %2399 = vmatpush1.msra.mxu0 0.0
    %2400 = vmatprep.subr.mxu0 0.0
    %2401 = vmatpush1.msra.mxu0 0.0
    %2402 = vmatprep.subr.mxu0 0.0
    %2403 = vmatpush1.msra.mxu0 0.0
    %2404 = vmatprep.subr.mxu0 0.0
    %2405 = vmatpush1.msra.mxu0 0.0
    %2406 = vmatprep.subr.mxu0 0.0
    %2407 = vmatpush1.msra.mxu0 0.0
    %2408 = vmatprep.subr.mxu0 0.0
    %2409 = vmatpush1.msra.mxu0 0.0
    %2410 = vmatprep.subr.mxu0 0.0
    %2411 = vmatpush1.msra.mxu0 0.0
    %2412 = vmatprep.subr.mxu0 0.0
    %2413 = vmatpush1.msra.mxu0 0.0
    %2414 = vmatprep.subr.mxu0 0.0
    %2415 = vmatpush1.msra.mxu0 0.0
    %2416 = vmatprep.subr.mxu0 0.0
    %2417 = vmatpush1.msra.mxu0 0.0
    %2418 = vmatprep.subr.mxu0 0.0
    %2419 = vmatpush1.msra.mxu0 0.0
    %2420 = vmatprep.subr.mxu0 0.0
    %2421 = vmatpush1.msra.mxu0 0.0
    %2422 = vmatprep.subr.mxu0 0.0
    %2423 = vmatpush1.msra.mxu0 0.0
    %2424 = vmatprep.subr.mxu0 0.0
    %2425 = vmatpush1.msra.mxu0 0.0
    %2426 = vmatprep.subr.mxu0 0.0
    %2427 = vmatpush1.msra.mxu0 0.0
    %2428 = vmatprep.subr.mxu0 0.0
    %2429 = vmatpush1.msra.mxu0 0.0
    %2430 = vmatprep.subr.mxu0 0.0
    %2431 = vmatpush1.msra.mxu0 0.0
    %2432 = vmatprep.subr.mxu0 0.0
    %2433 = vmatpush1.msra.mxu0 0.0
    %2434 = vmatprep.subr.mxu0 0.0
    %2435 = vmatpush1.msra.mxu0 0.0
    %2436 = vmatprep.subr.mxu0 0.0
    %2437 = vmatpush1.msra.mxu0 0.0
    %2438 = vmatprep.subr.mxu0 0.0
    %2439 = vmatpush1.msra.mxu0 0.0
    %2440 = vmatprep.subr.mxu0 0.0
    %2441 = vmatpush1.msra.mxu0 0.0
    %2442 = vmatprep.subr.mxu0 0.0
    %2443 = vmatpush1.msra.mxu0 0.0
    %2444 = vmatprep.mubr.f32.mxu0 0.0
    %2445 = vmatmul.mubr.f32.gmra.mrb[0].mxu0 %v2307
    %v2446 = vpop.f32.mrb[0].mxu0
    %v2447 = vadd.f32 %v2304, %v2446
    %v2448 = vpop.f32.mrb[0].mxu0
    %v2449 = vadd.f32 %v2305, %v2448
    %2450 = vdwg.mxu0
    %2451 = vrot.lane.b32.xlu0 %v2138, 16
    %v2452 = vpop.permute.xlu0 %2451
    %2453 = vrot.lane.b32.xlu0 %v2139, 16
    %v2454 = vpop.permute.xlu0 %2453
    %2455 = vrot.lane.b32.xlu0 %v2140, 16
    %v2456 = vpop.permute.xlu0 %2455
    %2457 = vrot.lane.b32.xlu0 %v2141, 16
    %v2458 = vpop.permute.xlu0 %2457
    %v2459 = vsel %vm637, %v2456, %v2458
    %v2460 = vsel %vm637, %v2454, %v2456
    %v2461 = vsel %vm637, %v2452, %v2454
    %v2462 = vsel %vm637, %v2458, %v2452
    %s2463 = scalar_lea.vmem %s7, 8
    %v2464 = vld [vmem:[%s2463] sm:$0xff]
    %v2466 = vsel %vm334, %v2464, 0
    %2468 = vmatprep.subr.mxu0 %v2461
    %2469 = vmatpush1.msra.mxu0 %v2462
    %2470 = vmatprep.subr.mxu0 0.0
    %2471 = vmatpush1.msra.mxu0 0.0
    %2472 = vmatprep.subr.mxu0 0.0
    %2473 = vmatpush1.msra.mxu0 0.0
    %2474 = vmatprep.subr.mxu0 0.0
    %2475 = vmatpush1.msra.mxu0 0.0
    %2476 = vmatprep.subr.mxu0 0.0
    %2477 = vmatpush1.msra.mxu0 0.0
    %2478 = vmatprep.subr.mxu0 0.0
    %2479 = vmatpush1.msra.mxu0 0.0
    %2480 = vmatprep.subr.mxu0 0.0
    %2481 = vmatpush1.msra.mxu0 0.0
    %2482 = vmatprep.subr.mxu0 0.0
    %2483 = vmatpush1.msra.mxu0 0.0
    %2484 = vmatprep.subr.mxu0 0.0
    %2485 = vmatpush1.msra.mxu0 0.0
    %2486 = vmatprep.subr.mxu0 0.0
    %2487 = vmatpush1.msra.mxu0 0.0
    %2488 = vmatprep.subr.mxu0 0.0
    %2489 = vmatpush1.msra.mxu0 0.0
    %2490 = vmatprep.subr.mxu0 0.0
    %2491 = vmatpush1.msra.mxu0 0.0
    %2492 = vmatprep.subr.mxu0 0.0
    %2493 = vmatpush1.msra.mxu0 0.0
    %2494 = vmatprep.subr.mxu0 0.0
    %2495 = vmatpush1.msra.mxu0 0.0
    %2496 = vmatprep.subr.mxu0 0.0
    %2497 = vmatpush1.msra.mxu0 0.0
    %2498 = vmatprep.subr.mxu0 0.0
    %2499 = vmatpush1.msra.mxu0 0.0
    %2500 = vmatprep.subr.mxu0 0.0
    %2501 = vmatpush1.msra.mxu0 0.0
    %2502 = vmatprep.subr.mxu0 0.0
    %2503 = vmatpush1.msra.mxu0 0.0
    %2504 = vmatprep.subr.mxu0 0.0
    %2505 = vmatpush1.msra.mxu0 0.0
    %2506 = vmatprep.subr.mxu0 0.0
    %2507 = vmatpush1.msra.mxu0 0.0
    %2508 = vmatprep.subr.mxu0 0.0
    %2509 = vmatpush1.msra.mxu0 0.0
    %2510 = vmatprep.subr.mxu0 0.0
    %2511 = vmatpush1.msra.mxu0 0.0
    %2512 = vmatprep.subr.mxu0 0.0
    %2513 = vmatpush1.msra.mxu0 0.0
    %2514 = vmatprep.subr.mxu0 0.0
    %2515 = vmatpush1.msra.mxu0 0.0
    %2516 = vmatprep.subr.mxu0 0.0
    %2517 = vmatpush1.msra.mxu0 0.0
    %2518 = vmatprep.subr.mxu0 0.0
    %2519 = vmatpush1.msra.mxu0 0.0
    %2520 = vmatprep.subr.mxu0 0.0
    %2521 = vmatpush1.msra.mxu0 0.0
    %2522 = vmatprep.subr.mxu0 0.0
    %2523 = vmatpush1.msra.mxu0 0.0
    %2524 = vmatprep.subr.mxu0 0.0
    %2525 = vmatpush1.msra.mxu0 0.0
    %2526 = vmatprep.subr.mxu0 0.0
    %2527 = vmatpush1.msra.mxu0 0.0
    %2528 = vmatprep.subr.mxu0 0.0
    %2529 = vmatpush1.msra.mxu0 0.0
    %2530 = vmatprep.subr.mxu0 0.0
    %2531 = vmatpush1.msra.mxu0 0.0
    %2532 = vmatprep.mubr.f32.mxu0 0.0
    %2533 = vmatmul.mubr.f32.gmra.mrb[0].mxu0 %v2466
    %v2534 = vpop.f32.mrb[0].mxu0
    %v2535 = vadd.f32 0.0, %v2534
    %v2536 = vpop.f32.mrb[0].mxu0
    %v2537 = vadd.f32 0.0, %v2536
    %2538 = vdwg.mxu0
    %2539 = vmatprep.subr.mxu0 %v2459
    %2540 = vmatpush1.msra.mxu0 %v2460
    %2541 = vmatprep.subr.mxu0 0.0
    %2542 = vmatpush1.msra.mxu0 0.0
    %2543 = vmatprep.subr.mxu0 0.0
    %2544 = vmatpush1.msra.mxu0 0.0
    %2545 = vmatprep.subr.mxu0 0.0
    %2546 = vmatpush1.msra.mxu0 0.0
    %2547 = vmatprep.subr.mxu0 0.0
    %2548 = vmatpush1.msra.mxu0 0.0
    %2549 = vmatprep.subr.mxu0 0.0
    %2550 = vmatpush1.msra.mxu0 0.0
    %2551 = vmatprep.subr.mxu0 0.0
    %2552 = vmatpush1.msra.mxu0 0.0
    %2553 = vmatprep.subr.mxu0 0.0
    %2554 = vmatpush1.msra.mxu0 0.0
    %2555 = vmatprep.subr.mxu0 0.0
    %2556 = vmatpush1.msra.mxu0 0.0
    %2557 = vmatprep.subr.mxu0 0.0
    %2558 = vmatpush1.msra.mxu0 0.0
    %2559 = vmatprep.subr.mxu0 0.0
    %2560 = vmatpush1.msra.mxu0 0.0
    %2561 = vmatprep.subr.mxu0 0.0
    %2562 = vmatpush1.msra.mxu0 0.0
    %2563 = vmatprep.subr.mxu0 0.0
    %2564 = vmatpush1.msra.mxu0 0.0
    %2565 = vmatprep.subr.mxu0 0.0
    %2566 = vmatpush1.msra.mxu0 0.0
    %2567 = vmatprep.subr.mxu0 0.0
    %2568 = vmatpush1.msra.mxu0 0.0
    %2569 = vmatprep.subr.mxu0 0.0
    %2570 = vmatpush1.msra.mxu0 0.0
    %2571 = vmatprep.subr.mxu0 0.0
    %2572 = vmatpush1.msra.mxu0 0.0
    %2573 = vmatprep.subr.mxu0 0.0
    %2574 = vmatpush1.msra.mxu0 0.0
    %2575 = vmatprep.subr.mxu0 0.0
    %2576 = vmatpush1.msra.mxu0 0.0
    %2577 = vmatprep.subr.mxu0 0.0
    %2578 = vmatpush1.msra.mxu0 0.0
    %2579 = vmatprep.subr.mxu0 0.0
    %2580 = vmatpush1.msra.mxu0 0.0
    %2581 = vmatprep.subr.mxu0 0.0
    %2582 = vmatpush1.msra.mxu0 0.0
    %2583 = vmatprep.subr.mxu0 0.0
    %2584 = vmatpush1.msra.mxu0 0.0
    %2585 = vmatprep.subr.mxu0 0.0
    %2586 = vmatpush1.msra.mxu0 0.0
    %2587 = vmatprep.subr.mxu0 0.0
    %2588 = vmatpush1.msra.mxu0 0.0
    %2589 = vmatprep.subr.mxu0 0.0
    %2590 = vmatpush1.msra.mxu0 0.0
    %2591 = vmatprep.subr.mxu0 0.0
    %2592 = vmatpush1.msra.mxu0 0.0
    %2593 = vmatprep.subr.mxu0 0.0
    %2594 = vmatpush1.msra.mxu0 0.0
    %2595 = vmatprep.subr.mxu0 0.0
    %2596 = vmatpush1.msra.mxu0 0.0
    %2597 = vmatprep.subr.mxu0 0.0
    %2598 = vmatpush1.msra.mxu0 0.0
    %2599 = vmatprep.subr.mxu0 0.0
    %2600 = vmatpush1.msra.mxu0 0.0
    %2601 = vmatprep.subr.mxu0 0.0
    %2602 = vmatpush1.msra.mxu0 0.0
    %2603 = vmatprep.mubr.f32.mxu0 0.0
    %2604 = vmatmul.mubr.f32.gmra.mrb[0].mxu0 %v2466
    %v2605 = vpop.f32.mrb[0].mxu0
    %v2606 = vadd.f32 0.0, %v2605
    %v2607 = vpop.f32.mrb[0].mxu0
    %v2608 = vadd.f32 0.0, %v2607
    %2609 = vdwg.mxu0
    %v2610 = vmul.f32 %v74, %v2535
    %v2611 = vmul.f32 %v75, %v2537
    %v2612 = vmul.f32 %v76, %v2606
    %v2613 = vmul.f32 %v77, %v2608
    %v2614 = vadd.f32 %v2376, %v2610
    %v2615 = vadd.f32 %v2378, %v2611
    %v2616 = vadd.f32 %v2447, %v2612
    %v2617 = vadd.f32 %v2449, %v2613
    %2618 = vrot.lane.b32.xlu0 %v2138, 15
    %v2619 = vpop.permute.xlu0 %2618
    %2620 = vrot.lane.b32.xlu0 %v2139, 15
    %v2621 = vpop.permute.xlu0 %2620
    %2622 = vrot.lane.b32.xlu0 %v2140, 15
    %v2623 = vpop.permute.xlu0 %2622
    %2624 = vrot.lane.b32.xlu0 %v2141, 15
    %v2625 = vpop.permute.xlu0 %2624
    %v2626 = vsel %vm805, %v2623, %v2625
    %v2627 = vsel %vm805, %v2621, %v2623
    %v2628 = vsel %vm805, %v2619, %v2621
    %v2629 = vsel %vm805, %v2625, %v2619
    %s2630 = scalar_lea.vmem %s7, 16
    %v2631 = vld [vmem:[%s2630] sm:$0xff]
    %v2633 = vsel %vm334, %v2631, 0
    %2635 = vmatprep.subr.mxu0 %v2628
    %2636 = vmatpush1.msra.mxu0 %v2629
    %2637 = vmatprep.subr.mxu0 0.0
    %2638 = vmatpush1.msra.mxu0 0.0
    %2639 = vmatprep.subr.mxu0 0.0
    %2640 = vmatpush1.msra.mxu0 0.0
    %2641 = vmatprep.subr.mxu0 0.0
    %2642 = vmatpush1.msra.mxu0 0.0
    %2643 = vmatprep.subr.mxu0 0.0
    %2644 = vmatpush1.msra.mxu0 0.0
    %2645 = vmatprep.subr.mxu0 0.0
    %2646 = vmatpush1.msra.mxu0 0.0
    %2647 = vmatprep.subr.mxu0 0.0
    %2648 = vmatpush1.msra.mxu0 0.0
    %2649 = vmatprep.subr.mxu0 0.0
    %2650 = vmatpush1.msra.mxu0 0.0
    %2651 = vmatprep.subr.mxu0 0.0
    %2652 = vmatpush1.msra.mxu0 0.0
    %2653 = vmatprep.subr.mxu0 0.0
    %2654 = vmatpush1.msra.mxu0 0.0
    %2655 = vmatprep.subr.mxu0 0.0
    %2656 = vmatpush1.msra.mxu0 0.0
    %2657 = vmatprep.subr.mxu0 0.0
    %2658 = vmatpush1.msra.mxu0 0.0
    %2659 = vmatprep.subr.mxu0 0.0
    %2660 = vmatpush1.msra.mxu0 0.0
    %2661 = vmatprep.subr.mxu0 0.0
    %2662 = vmatpush1.msra.mxu0 0.0
    %2663 = vmatprep.subr.mxu0 0.0
    %2664 = vmatpush1.msra.mxu0 0.0
    %2665 = vmatprep.subr.mxu0 0.0
    %2666 = vmatpush1.msra.mxu0 0.0
    %2667 = vmatprep.subr.mxu0 0.0
    %2668 = vmatpush1.msra.mxu0 0.0
    %2669 = vmatprep.subr.mxu0 0.0
    %2670 = vmatpush1.msra.mxu0 0.0
    %2671 = vmatprep.subr.mxu0 0.0
    %2672 = vmatpush1.msra.mxu0 0.0
    %2673 = vmatprep.subr.mxu0 0.0
    %2674 = vmatpush1.msra.mxu0 0.0
    %2675 = vmatprep.subr.mxu0 0.0
    %2676 = vmatpush1.msra.mxu0 0.0
    %2677 = vmatprep.subr.mxu0 0.0
    %2678 = vmatpush1.msra.mxu0 0.0
    %2679 = vmatprep.subr.mxu0 0.0
    %2680 = vmatpush1.msra.mxu0 0.0
    %2681 = vmatprep.subr.mxu0 0.0
    %2682 = vmatpush1.msra.mxu0 0.0
    %2683 = vmatprep.subr.mxu0 0.0
    %2684 = vmatpush1.msra.mxu0 0.0
    %2685 = vmatprep.subr.mxu0 0.0
    %2686 = vmatpush1.msra.mxu0 0.0
    %2687 = vmatprep.subr.mxu0 0.0
    %2688 = vmatpush1.msra.mxu0 0.0
    %2689 = vmatprep.subr.mxu0 0.0
    %2690 = vmatpush1.msra.mxu0 0.0
    %2691 = vmatprep.subr.mxu0 0.0
    %2692 = vmatpush1.msra.mxu0 0.0
    %2693 = vmatprep.subr.mxu0 0.0
    %2694 = vmatpush1.msra.mxu0 0.0
    %2695 = vmatprep.subr.mxu0 0.0
    %2696 = vmatpush1.msra.mxu0 0.0
    %2697 = vmatprep.subr.mxu0 0.0
    %2698 = vmatpush1.msra.mxu0 0.0
    %2699 = vmatprep.mubr.f32.mxu0 0.0
    %2700 = vmatmul.mubr.f32.gmra.mrb[0].mxu0 %v2633
    %v2701 = vpop.f32.mrb[0].mxu0
    %v2702 = vadd.f32 0.0, %v2701
    %v2703 = vpop.f32.mrb[0].mxu0
    %v2704 = vadd.f32 0.0, %v2703
    %2705 = vdwg.mxu0
    %2706 = vmatprep.subr.mxu0 %v2626
    %2707 = vmatpush1.msra.mxu0 %v2627
    %2708 = vmatprep.subr.mxu0 0.0
    %2709 = vmatpush1.msra.mxu0 0.0
    %2710 = vmatprep.subr.mxu0 0.0
    %2711 = vmatpush1.msra.mxu0 0.0
    %2712 = vmatprep.subr.mxu0 0.0
    %2713 = vmatpush1.msra.mxu0 0.0
    %2714 = vmatprep.subr.mxu0 0.0
    %2715 = vmatpush1.msra.mxu0 0.0
    %2716 = vmatprep.subr.mxu0 0.0
    %2717 = vmatpush1.msra.mxu0 0.0
    %2718 = vmatprep.subr.mxu0 0.0
    %2719 = vmatpush1.msra.mxu0 0.0
    %2720 = vmatprep.subr.mxu0 0.0
    %2721 = vmatpush1.msra.mxu0 0.0
    %2722 = vmatprep.subr.mxu0 0.0
    %2723 = vmatpush1.msra.mxu0 0.0
    %2724 = vmatprep.subr.mxu0 0.0
    %2725 = vmatpush1.msra.mxu0 0.0
    %2726 = vmatprep.subr.mxu0 0.0
    %2727 = vmatpush1.msra.mxu0 0.0
    %2728 = vmatprep.subr.mxu0 0.0
    %2729 = vmatpush1.msra.mxu0 0.0
    %2730 = vmatprep.subr.mxu0 0.0
    %2731 = vmatpush1.msra.mxu0 0.0
    %2732 = vmatprep.subr.mxu0 0.0
    %2733 = vmatpush1.msra.mxu0 0.0
    %2734 = vmatprep.subr.mxu0 0.0
    %2735 = vmatpush1.msra.mxu0 0.0
    %2736 = vmatprep.subr.mxu0 0.0
    %2737 = vmatpush1.msra.mxu0 0.0
    %2738 = vmatprep.subr.mxu0 0.0
    %2739 = vmatpush1.msra.mxu0 0.0
    %2740 = vmatprep.subr.mxu0 0.0
    %2741 = vmatpush1.msra.mxu0 0.0
    %2742 = vmatprep.subr.mxu0 0.0
    %2743 = vmatpush1.msra.mxu0 0.0
    %2744 = vmatprep.subr.mxu0 0.0
    %2745 = vmatpush1.msra.mxu0 0.0
    %2746 = vmatprep.subr.mxu0 0.0
    %2747 = vmatpush1.msra.mxu0 0.0
    %2748 = vmatprep.subr.mxu0 0.0
    %2749 = vmatpush1.msra.mxu0 0.0
    %2750 = vmatprep.subr.mxu0 0.0
    %2751 = vmatpush1.msra.mxu0 0.0
    %2752 = vmatprep.subr.mxu0 0.0
    %2753 = vmatpush1.msra.mxu0 0.0
    %2754 = vmatprep.subr.mxu0 0.0
    %2755 = vmatpush1.msra.mxu0 0.0
    %2756 = vmatprep.subr.mxu0 0.0
    %2757 = vmatpush1.msra.mxu0 0.0
    %2758 = vmatprep.subr.mxu0 0.0
    %2759 = vmatpush1.msra.mxu0 0.0
    %2760 = vmatprep.subr.mxu0 0.0
    %2761 = vmatpush1.msra.mxu0 0.0
    %2762 = vmatprep.subr.mxu0 0.0
    %2763 = vmatpush1.msra.mxu0 0.0
    %2764 = vmatprep.subr.mxu0 0.0
    %2765 = vmatpush1.msra.mxu0 0.0
    %2766 = vmatprep.subr.mxu0 0.0
    %2767 = vmatpush1.msra.mxu0 0.0
    %2768 = vmatprep.subr.mxu0 0.0
    %2769 = vmatpush1.msra.mxu0 0.0
    %2770 = vmatprep.mubr.f32.mxu0 0.0
    %2771 = vmatmul.mubr.f32.gmra.mrb[0].mxu0 %v2633
    %v2772 = vpop.f32.mrb[0].mxu0
    %v2773 = vadd.f32 0.0, %v2772
    %v2774 = vpop.f32.mrb[0].mxu0
    %v2775 = vadd.f32 0.0, %v2774
    %2776 = vdwg.mxu0
    %v2777 = vmul.f32 %v90, %v2702
    %v2778 = vmul.f32 %v91, %v2704
    %v2779 = vmul.f32 %v92, %v2773
    %v2780 = vmul.f32 %v93, %v2775
    %v2781 = vadd.f32 %v2614, %v2777
    %v2782 = vadd.f32 %v2615, %v2778
    %v2783 = vadd.f32 %v2616, %v2779
    %v2784 = vadd.f32 %v2617, %v2780
    %2785 = vrot.lane.b32.xlu0 %v2138, 1
    %v2786 = vpop.permute.xlu0 %2785
    %2787 = vrot.lane.b32.xlu0 %v2139, 1
    %v2788 = vpop.permute.xlu0 %2787
    %2789 = vrot.lane.b32.xlu0 %v2140, 1
    %v2790 = vpop.permute.xlu0 %2789
    %2791 = vrot.lane.b32.xlu0 %v2141, 1
    %v2792 = vpop.permute.xlu0 %2791
    %v2793 = vsel %vm973, %v2790, %v2792
    %v2794 = vsel %vm973, %v2788, %v2790
    %v2795 = vsel %vm973, %v2786, %v2788
    %v2796 = vsel %vm973, %v2792, %v2786
    %s2797 = scalar_lea.vmem %s7, 24
    %v2798 = vld [vmem:[%s2797] sm:$0xff]
    %v2800 = vsel %vm334, %v2798, 0
    %2802 = vmatprep.subr.mxu0 %v2795
    %2803 = vmatpush1.msra.mxu0 %v2796
    %2804 = vmatprep.subr.mxu0 0.0
    %2805 = vmatpush1.msra.mxu0 0.0
    %2806 = vmatprep.subr.mxu0 0.0
    %2807 = vmatpush1.msra.mxu0 0.0
    %2808 = vmatprep.subr.mxu0 0.0
    %2809 = vmatpush1.msra.mxu0 0.0
    %2810 = vmatprep.subr.mxu0 0.0
    %2811 = vmatpush1.msra.mxu0 0.0
    %2812 = vmatprep.subr.mxu0 0.0
    %2813 = vmatpush1.msra.mxu0 0.0
    %2814 = vmatprep.subr.mxu0 0.0
    %2815 = vmatpush1.msra.mxu0 0.0
    %2816 = vmatprep.subr.mxu0 0.0
    %2817 = vmatpush1.msra.mxu0 0.0
    %2818 = vmatprep.subr.mxu0 0.0
    %2819 = vmatpush1.msra.mxu0 0.0
    %2820 = vmatprep.subr.mxu0 0.0
    %2821 = vmatpush1.msra.mxu0 0.0
    %2822 = vmatprep.subr.mxu0 0.0
    %2823 = vmatpush1.msra.mxu0 0.0
    %2824 = vmatprep.subr.mxu0 0.0
    %2825 = vmatpush1.msra.mxu0 0.0
    %2826 = vmatprep.subr.mxu0 0.0
    %2827 = vmatpush1.msra.mxu0 0.0
    %2828 = vmatprep.subr.mxu0 0.0
    %2829 = vmatpush1.msra.mxu0 0.0
    %2830 = vmatprep.subr.mxu0 0.0
    %2831 = vmatpush1.msra.mxu0 0.0
    %2832 = vmatprep.subr.mxu0 0.0
    %2833 = vmatpush1.msra.mxu0 0.0
    %2834 = vmatprep.subr.mxu0 0.0
    %2835 = vmatpush1.msra.mxu0 0.0
    %2836 = vmatprep.subr.mxu0 0.0
    %2837 = vmatpush1.msra.mxu0 0.0
    %2838 = vmatprep.subr.mxu0 0.0
    %2839 = vmatpush1.msra.mxu0 0.0
    %2840 = vmatprep.subr.mxu0 0.0
    %2841 = vmatpush1.msra.mxu0 0.0
    %2842 = vmatprep.subr.mxu0 0.0
    %2843 = vmatpush1.msra.mxu0 0.0
    %2844 = vmatprep.subr.mxu0 0.0
    %2845 = vmatpush1.msra.mxu0 0.0
    %2846 = vmatprep.subr.mxu0 0.0
    %2847 = vmatpush1.msra.mxu0 0.0
    %2848 = vmatprep.subr.mxu0 0.0
    %2849 = vmatpush1.msra.mxu0 0.0
    %2850 = vmatprep.subr.mxu0 0.0
    %2851 = vmatpush1.msra.mxu0 0.0
    %2852 = vmatprep.subr.mxu0 0.0
    %2853 = vmatpush1.msra.mxu0 0.0
    %2854 = vmatprep.subr.mxu0 0.0
    %2855 = vmatpush1.msra.mxu0 0.0
    %2856 = vmatprep.subr.mxu0 0.0
    %2857 = vmatpush1.msra.mxu0 0.0
    %2858 = vmatprep.subr.mxu0 0.0
    %2859 = vmatpush1.msra.mxu0 0.0
    %2860 = vmatprep.subr.mxu0 0.0
    %2861 = vmatpush1.msra.mxu0 0.0
    %2862 = vmatprep.subr.mxu0 0.0
    %2863 = vmatpush1.msra.mxu0 0.0
    %2864 = vmatprep.subr.mxu0 0.0
    %2865 = vmatpush1.msra.mxu0 0.0
    %2866 = vmatprep.mubr.f32.mxu0 0.0
    %2867 = vmatmul.mubr.f32.gmra.mrb[0].mxu0 %v2800
    %v2868 = vpop.f32.mrb[0].mxu0
    %v2869 = vadd.f32 0.0, %v2868
    %v2870 = vpop.f32.mrb[0].mxu0
    %v2871 = vadd.f32 0.0, %v2870
    %2872 = vdwg.mxu0
    %2873 = vmatprep.subr.mxu0 %v2793
    %2874 = vmatpush1.msra.mxu0 %v2794
    %2875 = vmatprep.subr.mxu0 0.0
    %2876 = vmatpush1.msra.mxu0 0.0
    %2877 = vmatprep.subr.mxu0 0.0
    %2878 = vmatpush1.msra.mxu0 0.0
    %2879 = vmatprep.subr.mxu0 0.0
    %2880 = vmatpush1.msra.mxu0 0.0
    %2881 = vmatprep.subr.mxu0 0.0
    %2882 = vmatpush1.msra.mxu0 0.0
    %2883 = vmatprep.subr.mxu0 0.0
    %2884 = vmatpush1.msra.mxu0 0.0
    %2885 = vmatprep.subr.mxu0 0.0
    %2886 = vmatpush1.msra.mxu0 0.0
    %2887 = vmatprep.subr.mxu0 0.0
    %2888 = vmatpush1.msra.mxu0 0.0
    %2889 = vmatprep.subr.mxu0 0.0
    %2890 = vmatpush1.msra.mxu0 0.0
    %2891 = vmatprep.subr.mxu0 0.0
    %2892 = vmatpush1.msra.mxu0 0.0
    %2893 = vmatprep.subr.mxu0 0.0
    %2894 = vmatpush1.msra.mxu0 0.0
    %2895 = vmatprep.subr.mxu0 0.0
    %2896 = vmatpush1.msra.mxu0 0.0
    %2897 = vmatprep.subr.mxu0 0.0
    %2898 = vmatpush1.msra.mxu0 0.0
    %2899 = vmatprep.subr.mxu0 0.0
    %2900 = vmatpush1.msra.mxu0 0.0
    %2901 = vmatprep.subr.mxu0 0.0
    %2902 = vmatpush1.msra.mxu0 0.0
    %2903 = vmatprep.subr.mxu0 0.0
    %2904 = vmatpush1.msra.mxu0 0.0
    %2905 = vmatprep.subr.mxu0 0.0
    %2906 = vmatpush1.msra.mxu0 0.0
    %2907 = vmatprep.subr.mxu0 0.0
    %2908 = vmatpush1.msra.mxu0 0.0
    %2909 = vmatprep.subr.mxu0 0.0
    %2910 = vmatpush1.msra.mxu0 0.0
    %2911 = vmatprep.subr.mxu0 0.0
    %2912 = vmatpush1.msra.mxu0 0.0
    %2913 = vmatprep.subr.mxu0 0.0
    %2914 = vmatpush1.msra.mxu0 0.0
    %2915 = vmatprep.subr.mxu0 0.0
    %2916 = vmatpush1.msra.mxu0 0.0
    %2917 = vmatprep.subr.mxu0 0.0
    %2918 = vmatpush1.msra.mxu0 0.0
    %2919 = vmatprep.subr.mxu0 0.0
    %2920 = vmatpush1.msra.mxu0 0.0
    %2921 = vmatprep.subr.mxu0 0.0
    %2922 = vmatpush1.msra.mxu0 0.0
    %2923 = vmatprep.subr.mxu0 0.0
    %2924 = vmatpush1.msra.mxu0 0.0
    %2925 = vmatprep.subr.mxu0 0.0
    %2926 = vmatpush1.msra.mxu0 0.0
    %2927 = vmatprep.subr.mxu0 0.0
    %2928 = vmatpush1.msra.mxu0 0.0
    %2929 = vmatprep.subr.mxu0 0.0
    %2930 = vmatpush1.msra.mxu0 0.0
    %2931 = vmatprep.subr.mxu0 0.0
    %2932 = vmatpush1.msra.mxu0 0.0
    %2933 = vmatprep.subr.mxu0 0.0
    %2934 = vmatpush1.msra.mxu0 0.0
    %2935 = vmatprep.subr.mxu0 0.0
    %2936 = vmatpush1.msra.mxu0 0.0
    %2937 = vmatprep.mubr.f32.mxu0 0.0
    %2938 = vmatmul.mubr.f32.gmra.mrb[0].mxu0 %v2800
    %v2939 = vpop.f32.mrb[0].mxu0
    %v2940 = vadd.f32 0.0, %v2939
    %v2941 = vpop.f32.mrb[0].mxu0
    %v2942 = vadd.f32 0.0, %v2941
    %2943 = vdwg.mxu0
    %v2944 = vmul.f32 %v98, %v2869
    %v2945 = vmul.f32 %v99, %v2871
    %v2946 = vmul.f32 %v100, %v2940
    %v2947 = vmul.f32 %v101, %v2942
    %v2948 = vadd.f32 %v2781, %v2944
    %v2949 = vadd.f32 %v2782, %v2945
    %v2950 = vadd.f32 %v2783, %v2946
    %v2951 = vadd.f32 %v2784, %v2947
    %2952 = vrot.lane.b32.xlu0 %v2138, 127
    %v2953 = vpop.permute.xlu0 %2952
    %2954 = vrot.lane.b32.xlu0 %v2139, 127
    %v2955 = vpop.permute.xlu0 %2954
    %2956 = vrot.lane.b32.xlu0 %v2140, 127
    %v2957 = vpop.permute.xlu0 %2956
    %2958 = vrot.lane.b32.xlu0 %v2141, 127
    %v2959 = vpop.permute.xlu0 %2958
    %v2960 = vsel %vm1141, %v2957, %v2959
    %v2961 = vsel %vm1141, %v2955, %v2957
    %v2962 = vsel %vm1141, %v2953, %v2955
    %v2963 = vsel %vm1141, %v2959, %v2953
    %s2964 = scalar_lea.vmem %s7, 40
    %v2965 = vld [vmem:[%s2964] sm:$0xff]
    %v2967 = vsel %vm334, %v2965, 0
    %2969 = vmatprep.subr.mxu0 %v2961
    %2970 = vmatpush1.msra.mxu0 %v2962
    %2971 = vmatprep.subr.mxu0 0.0
    %2972 = vmatpush1.msra.mxu0 0.0
    %2973 = vmatprep.subr.mxu0 0.0
    %2974 = vmatpush1.msra.mxu0 0.0
    %2975 = vmatprep.subr.mxu0 0.0
    %2976 = vmatpush1.msra.mxu0 0.0
    %2977 = vmatprep.subr.mxu0 0.0
    %2978 = vmatpush1.msra.mxu0 0.0
    %2979 = vmatprep.subr.mxu0 0.0
    %2980 = vmatpush1.msra.mxu0 0.0
    %2981 = vmatprep.subr.mxu0 0.0
    %2982 = vmatpush1.msra.mxu0 0.0
    %2983 = vmatprep.subr.mxu0 0.0
    %2984 = vmatpush1.msra.mxu0 0.0
    %2985 = vmatprep.subr.mxu0 0.0
    %2986 = vmatpush1.msra.mxu0 0.0
    %2987 = vmatprep.subr.mxu0 0.0
    %2988 = vmatpush1.msra.mxu0 0.0
    %2989 = vmatprep.subr.mxu0 0.0
    %2990 = vmatpush1.msra.mxu0 0.0
    %2991 = vmatprep.subr.mxu0 0.0
    %2992 = vmatpush1.msra.mxu0 0.0
    %2993 = vmatprep.subr.mxu0 0.0
    %2994 = vmatpush1.msra.mxu0 0.0
    %2995 = vmatprep.subr.mxu0 0.0
    %2996 = vmatpush1.msra.mxu0 0.0
    %2997 = vmatprep.subr.mxu0 0.0
    %2998 = vmatpush1.msra.mxu0 0.0
    %2999 = vmatprep.subr.mxu0 0.0
    %3000 = vmatpush1.msra.mxu0 0.0
    %3001 = vmatprep.subr.mxu0 0.0
    %3002 = vmatpush1.msra.mxu0 0.0
    %3003 = vmatprep.subr.mxu0 0.0
    %3004 = vmatpush1.msra.mxu0 0.0
    %3005 = vmatprep.subr.mxu0 0.0
    %3006 = vmatpush1.msra.mxu0 0.0
    %3007 = vmatprep.subr.mxu0 0.0
    %3008 = vmatpush1.msra.mxu0 0.0
    %3009 = vmatprep.subr.mxu0 0.0
    %3010 = vmatpush1.msra.mxu0 0.0
    %3011 = vmatprep.subr.mxu0 0.0
    %3012 = vmatpush1.msra.mxu0 0.0
    %3013 = vmatprep.subr.mxu0 0.0
    %3014 = vmatpush1.msra.mxu0 0.0
    %3015 = vmatprep.subr.mxu0 0.0
    %3016 = vmatpush1.msra.mxu0 0.0
    %3017 = vmatprep.subr.mxu0 0.0
    %3018 = vmatpush1.msra.mxu0 0.0
    %3019 = vmatprep.subr.mxu0 0.0
    %3020 = vmatpush1.msra.mxu0 0.0
    %3021 = vmatprep.subr.mxu0 0.0
    %3022 = vmatpush1.msra.mxu0 0.0
    %3023 = vmatprep.subr.mxu0 0.0
    %3024 = vmatpush1.msra.mxu0 0.0
    %3025 = vmatprep.subr.mxu0 0.0
    %3026 = vmatpush1.msra.mxu0 0.0
    %3027 = vmatprep.subr.mxu0 0.0
    %3028 = vmatpush1.msra.mxu0 0.0
    %3029 = vmatprep.subr.mxu0 0.0
    %3030 = vmatpush1.msra.mxu0 0.0
    %3031 = vmatprep.subr.mxu0 0.0
    %3032 = vmatpush1.msra.mxu0 0.0
    %3033 = vmatprep.mubr.f32.mxu0 0.0
    %3034 = vmatmul.mubr.f32.gmra.mrb[0].mxu0 %v2967
    %v3035 = vpop.f32.mrb[0].mxu0
    %v3036 = vadd.f32 0.0, %v3035
    %v3037 = vpop.f32.mrb[0].mxu0
    %v3038 = vadd.f32 0.0, %v3037
    %3039 = vdwg.mxu0
    %3040 = vmatprep.subr.mxu0 %v2963
    %3041 = vmatpush1.msra.mxu0 %v2960
    %3042 = vmatprep.subr.mxu0 0.0
    %3043 = vmatpush1.msra.mxu0 0.0
    %3044 = vmatprep.subr.mxu0 0.0
    %3045 = vmatpush1.msra.mxu0 0.0
    %3046 = vmatprep.subr.mxu0 0.0
    %3047 = vmatpush1.msra.mxu0 0.0
    %3048 = vmatprep.subr.mxu0 0.0
    %3049 = vmatpush1.msra.mxu0 0.0
    %3050 = vmatprep.subr.mxu0 0.0
    %3051 = vmatpush1.msra.mxu0 0.0
    %3052 = vmatprep.subr.mxu0 0.0
    %3053 = vmatpush1.msra.mxu0 0.0
    %3054 = vmatprep.subr.mxu0 0.0
    %3055 = vmatpush1.msra.mxu0 0.0
    %3056 = vmatprep.subr.mxu0 0.0
    %3057 = vmatpush1.msra.mxu0 0.0
    %3058 = vmatprep.subr.mxu0 0.0
    %3059 = vmatpush1.msra.mxu0 0.0
    %3060 = vmatprep.subr.mxu0 0.0
    %3061 = vmatpush1.msra.mxu0 0.0
    %3062 = vmatprep.subr.mxu0 0.0
    %3063 = vmatpush1.msra.mxu0 0.0
    %3064 = vmatprep.subr.mxu0 0.0
    %3065 = vmatpush1.msra.mxu0 0.0
    %3066 = vmatprep.subr.mxu0 0.0
    %3067 = vmatpush1.msra.mxu0 0.0
    %3068 = vmatprep.subr.mxu0 0.0
    %3069 = vmatpush1.msra.mxu0 0.0
    %3070 = vmatprep.subr.mxu0 0.0
    %3071 = vmatpush1.msra.mxu0 0.0
    %3072 = vmatprep.subr.mxu0 0.0
    %3073 = vmatpush1.msra.mxu0 0.0
    %3074 = vmatprep.subr.mxu0 0.0
    %3075 = vmatpush1.msra.mxu0 0.0
    %3076 = vmatprep.subr.mxu0 0.0
    %3077 = vmatpush1.msra.mxu0 0.0
    %3078 = vmatprep.subr.mxu0 0.0
    %3079 = vmatpush1.msra.mxu0 0.0
    %3080 = vmatprep.subr.mxu0 0.0
    %3081 = vmatpush1.msra.mxu0 0.0
    %3082 = vmatprep.subr.mxu0 0.0
    %3083 = vmatpush1.msra.mxu0 0.0
    %3084 = vmatprep.subr.mxu0 0.0
    %3085 = vmatpush1.msra.mxu0 0.0
    %3086 = vmatprep.subr.mxu0 0.0
    %3087 = vmatpush1.msra.mxu0 0.0
    %3088 = vmatprep.subr.mxu0 0.0
    %3089 = vmatpush1.msra.mxu0 0.0
    %3090 = vmatprep.subr.mxu0 0.0
    %3091 = vmatpush1.msra.mxu0 0.0
    %3092 = vmatprep.subr.mxu0 0.0
    %3093 = vmatpush1.msra.mxu0 0.0
    %3094 = vmatprep.subr.mxu0 0.0
    %3095 = vmatpush1.msra.mxu0 0.0
    %3096 = vmatprep.subr.mxu0 0.0
    %3097 = vmatpush1.msra.mxu0 0.0
    %3098 = vmatprep.subr.mxu0 0.0
    %3099 = vmatpush1.msra.mxu0 0.0
    %3100 = vmatprep.subr.mxu0 0.0
    %3101 = vmatpush1.msra.mxu0 0.0
    %3102 = vmatprep.subr.mxu0 0.0
    %3103 = vmatpush1.msra.mxu0 0.0
    %3104 = vmatprep.mubr.f32.mxu0 0.0
    %3105 = vmatmul.mubr.f32.gmra.mrb[0].mxu0 %v2967
    %v3106 = vpop.f32.mrb[0].mxu0
    %v3107 = vadd.f32 0.0, %v3106
    %v3108 = vpop.f32.mrb[0].mxu0
    %v3109 = vadd.f32 0.0, %v3108
    %3110 = vdwg.mxu0
    %v3111 = vmul.f32 %v106, %v3036
    %v3112 = vmul.f32 %v107, %v3038
    %v3113 = vmul.f32 %v108, %v3107
    %v3114 = vmul.f32 %v109, %v3109
    %v3115 = vadd.f32 %v2948, %v3111
    %v3116 = vadd.f32 %v2949, %v3112
    %v3117 = vadd.f32 %v2950, %v3113
    %v3118 = vadd.f32 %v2951, %v3114
    %3119 = vrot.lane.b32.xlu0 %v2138, 113
    %v3120 = vpop.permute.xlu0 %3119
    %3121 = vrot.lane.b32.xlu0 %v2139, 113
    %v3122 = vpop.permute.xlu0 %3121
    %3123 = vrot.lane.b32.xlu0 %v2140, 113
    %v3124 = vpop.permute.xlu0 %3123
    %3125 = vrot.lane.b32.xlu0 %v2141, 113
    %v3126 = vpop.permute.xlu0 %3125
    %v3127 = vsel %vm1309, %v3124, %v3126
    %v3128 = vsel %vm1309, %v3122, %v3124
    %v3129 = vsel %vm1309, %v3120, %v3122
    %v3130 = vsel %vm1309, %v3126, %v3120
    %s3131 = scalar_lea.vmem %s7, 48
    %v3132 = vld [vmem:[%s3131] sm:$0xff]
    %v3134 = vsel %vm334, %v3132, 0
    %3136 = vmatprep.subr.mxu0 %v3128
    %3137 = vmatpush1.msra.mxu0 %v3129
    %3138 = vmatprep.subr.mxu0 0.0
    %3139 = vmatpush1.msra.mxu0 0.0
    %3140 = vmatprep.subr.mxu0 0.0
    %3141 = vmatpush1.msra.mxu0 0.0
    %3142 = vmatprep.subr.mxu0 0.0
    %3143 = vmatpush1.msra.mxu0 0.0
    %3144 = vmatprep.subr.mxu0 0.0
    %3145 = vmatpush1.msra.mxu0 0.0
    %3146 = vmatprep.subr.mxu0 0.0
    %3147 = vmatpush1.msra.mxu0 0.0
    %3148 = vmatprep.subr.mxu0 0.0
    %3149 = vmatpush1.msra.mxu0 0.0
    %3150 = vmatprep.subr.mxu0 0.0
    %3151 = vmatpush1.msra.mxu0 0.0
    %3152 = vmatprep.subr.mxu0 0.0
    %3153 = vmatpush1.msra.mxu0 0.0
    %3154 = vmatprep.subr.mxu0 0.0
    %3155 = vmatpush1.msra.mxu0 0.0
    %3156 = vmatprep.subr.mxu0 0.0
    %3157 = vmatpush1.msra.mxu0 0.0
    %3158 = vmatprep.subr.mxu0 0.0
    %3159 = vmatpush1.msra.mxu0 0.0
    %3160 = vmatprep.subr.mxu0 0.0
    %3161 = vmatpush1.msra.mxu0 0.0
    %3162 = vmatprep.subr.mxu0 0.0
    %3163 = vmatpush1.msra.mxu0 0.0
    %3164 = vmatprep.subr.mxu0 0.0
    %3165 = vmatpush1.msra.mxu0 0.0
    %3166 = vmatprep.subr.mxu0 0.0
    %3167 = vmatpush1.msra.mxu0 0.0
    %3168 = vmatprep.subr.mxu0 0.0
    %3169 = vmatpush1.msra.mxu0 0.0
    %3170 = vmatprep.subr.mxu0 0.0
    %3171 = vmatpush1.msra.mxu0 0.0
    %3172 = vmatprep.subr.mxu0 0.0
    %3173 = vmatpush1.msra.mxu0 0.0
    %3174 = vmatprep.subr.mxu0 0.0
    %3175 = vmatpush1.msra.mxu0 0.0
    %3176 = vmatprep.subr.mxu0 0.0
    %3177 = vmatpush1.msra.mxu0 0.0
    %3178 = vmatprep.subr.mxu0 0.0
    %3179 = vmatpush1.msra.mxu0 0.0
    %3180 = vmatprep.subr.mxu0 0.0
    %3181 = vmatpush1.msra.mxu0 0.0
    %3182 = vmatprep.subr.mxu0 0.0
    %3183 = vmatpush1.msra.mxu0 0.0
    %3184 = vmatprep.subr.mxu0 0.0
    %3185 = vmatpush1.msra.mxu0 0.0
    %3186 = vmatprep.subr.mxu0 0.0
    %3187 = vmatpush1.msra.mxu0 0.0
    %3188 = vmatprep.subr.mxu0 0.0
    %3189 = vmatpush1.msra.mxu0 0.0
    %3190 = vmatprep.subr.mxu0 0.0
    %3191 = vmatpush1.msra.mxu0 0.0
    %3192 = vmatprep.subr.mxu0 0.0
    %3193 = vmatpush1.msra.mxu0 0.0
    %3194 = vmatprep.subr.mxu0 0.0
    %3195 = vmatpush1.msra.mxu0 0.0
    %3196 = vmatprep.subr.mxu0 0.0
    %3197 = vmatpush1.msra.mxu0 0.0
    %3198 = vmatprep.subr.mxu0 0.0
    %3199 = vmatpush1.msra.mxu0 0.0
    %3200 = vmatprep.mubr.f32.mxu0 0.0
    %3201 = vmatmul.mubr.f32.gmra.mrb[0].mxu0 %v3134
    %v3202 = vpop.f32.mrb[0].mxu0
    %v3203 = vadd.f32 0.0, %v3202
    %v3204 = vpop.f32.mrb[0].mxu0
    %v3205 = vadd.f32 0.0, %v3204
    %3206 = vdwg.mxu0
    %3207 = vmatprep.subr.mxu0 %v3130
    %3208 = vmatpush1.msra.mxu0 %v3127
    %3209 = vmatprep.subr.mxu0 0.0
    %3210 = vmatpush1.msra.mxu0 0.0
    %3211 = vmatprep.subr.mxu0 0.0
    %3212 = vmatpush1.msra.mxu0 0.0
    %3213 = vmatprep.subr.mxu0 0.0
    %3214 = vmatpush1.msra.mxu0 0.0
    %3215 = vmatprep.subr.mxu0 0.0
    %3216 = vmatpush1.msra.mxu0 0.0
    %3217 = vmatprep.subr.mxu0 0.0
    %3218 = vmatpush1.msra.mxu0 0.0
    %3219 = vmatprep.subr.mxu0 0.0
    %3220 = vmatpush1.msra.mxu0 0.0
    %3221 = vmatprep.subr.mxu0 0.0
    %3222 = vmatpush1.msra.mxu0 0.0
    %3223 = vmatprep.subr.mxu0 0.0
    %3224 = vmatpush1.msra.mxu0 0.0
    %3225 = vmatprep.subr.mxu0 0.0
    %3226 = vmatpush1.msra.mxu0 0.0
    %3227 = vmatprep.subr.mxu0 0.0
    %3228 = vmatpush1.msra.mxu0 0.0
    %3229 = vmatprep.subr.mxu0 0.0
    %3230 = vmatpush1.msra.mxu0 0.0
    %3231 = vmatprep.subr.mxu0 0.0
    %3232 = vmatpush1.msra.mxu0 0.0
    %3233 = vmatprep.subr.mxu0 0.0
    %3234 = vmatpush1.msra.mxu0 0.0
    %3235 = vmatprep.subr.mxu0 0.0
    %3236 = vmatpush1.msra.mxu0 0.0
    %3237 = vmatprep.subr.mxu0 0.0
    %3238 = vmatpush1.msra.mxu0 0.0
    %3239 = vmatprep.subr.mxu0 0.0
    %3240 = vmatpush1.msra.mxu0 0.0
    %3241 = vmatprep.subr.mxu0 0.0
    %3242 = vmatpush1.msra.mxu0 0.0
    %3243 = vmatprep.subr.mxu0 0.0
    %3244 = vmatpush1.msra.mxu0 0.0
    %3245 = vmatprep.subr.mxu0 0.0
    %3246 = vmatpush1.msra.mxu0 0.0
    %3247 = vmatprep.subr.mxu0 0.0
    %3248 = vmatpush1.msra.mxu0 0.0
    %3249 = vmatprep.subr.mxu0 0.0
    %3250 = vmatpush1.msra.mxu0 0.0
    %3251 = vmatprep.subr.mxu0 0.0
    %3252 = vmatpush1.msra.mxu0 0.0
    %3253 = vmatprep.subr.mxu0 0.0
    %3254 = vmatpush1.msra.mxu0 0.0
    %3255 = vmatprep.subr.mxu0 0.0
    %3256 = vmatpush1.msra.mxu0 0.0
    %3257 = vmatprep.subr.mxu0 0.0
    %3258 = vmatpush1.msra.mxu0 0.0
    %3259 = vmatprep.subr.mxu0 0.0
    %3260 = vmatpush1.msra.mxu0 0.0
    %3261 = vmatprep.subr.mxu0 0.0
    %3262 = vmatpush1.msra.mxu0 0.0
    %3263 = vmatprep.subr.mxu0 0.0
    %3264 = vmatpush1.msra.mxu0 0.0
    %3265 = vmatprep.subr.mxu0 0.0
    %3266 = vmatpush1.msra.mxu0 0.0
    %3267 = vmatprep.subr.mxu0 0.0
    %3268 = vmatpush1.msra.mxu0 0.0
    %3269 = vmatprep.subr.mxu0 0.0
    %3270 = vmatpush1.msra.mxu0 0.0
    %3271 = vmatprep.mubr.f32.mxu0 0.0
    %3272 = vmatmul.mubr.f32.gmra.mrb[0].mxu0 %v3134
    %v3273 = vpop.f32.mrb[0].mxu0
    %v3274 = vadd.f32 0.0, %v3273
    %v3275 = vpop.f32.mrb[0].mxu0
    %v3276 = vadd.f32 0.0, %v3275
    %3277 = vdwg.mxu0
    %v3278 = vmul.f32 %v122, %v3203
    %v3279 = vmul.f32 %v123, %v3205
    %v3280 = vmul.f32 %v124, %v3274
    %v3281 = vmul.f32 %v125, %v3276
    %v3282 = vadd.f32 %v3115, %v3278
    %v3283 = vadd.f32 %v3116, %v3279
    %v3284 = vadd.f32 %v3117, %v3280
    %v3285 = vadd.f32 %v3118, %v3281
    %3286 = vrot.lane.b32.xlu0 %v2138, 112
    %v3287 = vpop.permute.xlu0 %3286
    %3288 = vrot.lane.b32.xlu0 %v2139, 112
    %v3289 = vpop.permute.xlu0 %3288
    %3290 = vrot.lane.b32.xlu0 %v2140, 112
    %v3291 = vpop.permute.xlu0 %3290
    %3292 = vrot.lane.b32.xlu0 %v2141, 112
    %v3293 = vpop.permute.xlu0 %3292
    %v3294 = vsel %vm1477, %v3291, %v3293
    %v3295 = vsel %vm1477, %v3289, %v3291
    %v3296 = vsel %vm1477, %v3287, %v3289
    %v3297 = vsel %vm1477, %v3293, %v3287
    %s3298 = scalar_lea.vmem %s7, 56
    %v3299 = vld [vmem:[%s3298] sm:$0xff]
    %v3301 = vsel %vm334, %v3299, 0
    %3303 = vmatprep.subr.mxu0 %v3295
    %3304 = vmatpush1.msra.mxu0 %v3296
    %3305 = vmatprep.subr.mxu0 0.0
    %3306 = vmatpush1.msra.mxu0 0.0
    %3307 = vmatprep.subr.mxu0 0.0
    %3308 = vmatpush1.msra.mxu0 0.0
    %3309 = vmatprep.subr.mxu0 0.0
    %3310 = vmatpush1.msra.mxu0 0.0
    %3311 = vmatprep.subr.mxu0 0.0
    %3312 = vmatpush1.msra.mxu0 0.0
    %3313 = vmatprep.subr.mxu0 0.0
    %3314 = vmatpush1.msra.mxu0 0.0
    %3315 = vmatprep.subr.mxu0 0.0
    %3316 = vmatpush1.msra.mxu0 0.0
    %3317 = vmatprep.subr.mxu0 0.0
    %3318 = vmatpush1.msra.mxu0 0.0
    %3319 = vmatprep.subr.mxu0 0.0
    %3320 = vmatpush1.msra.mxu0 0.0
    %3321 = vmatprep.subr.mxu0 0.0
    %3322 = vmatpush1.msra.mxu0 0.0
    %3323 = vmatprep.subr.mxu0 0.0
    %3324 = vmatpush1.msra.mxu0 0.0
    %3325 = vmatprep.subr.mxu0 0.0
    %3326 = vmatpush1.msra.mxu0 0.0
    %3327 = vmatprep.subr.mxu0 0.0
    %3328 = vmatpush1.msra.mxu0 0.0
    %3329 = vmatprep.subr.mxu0 0.0
    %3330 = vmatpush1.msra.mxu0 0.0
    %3331 = vmatprep.subr.mxu0 0.0
    %3332 = vmatpush1.msra.mxu0 0.0
    %3333 = vmatprep.subr.mxu0 0.0
    %3334 = vmatpush1.msra.mxu0 0.0
    %3335 = vmatprep.subr.mxu0 0.0
    %3336 = vmatpush1.msra.mxu0 0.0
    %3337 = vmatprep.subr.mxu0 0.0
    %3338 = vmatpush1.msra.mxu0 0.0
    %3339 = vmatprep.subr.mxu0 0.0
    %3340 = vmatpush1.msra.mxu0 0.0
    %3341 = vmatprep.subr.mxu0 0.0
    %3342 = vmatpush1.msra.mxu0 0.0
    %3343 = vmatprep.subr.mxu0 0.0
    %3344 = vmatpush1.msra.mxu0 0.0
    %3345 = vmatprep.subr.mxu0 0.0
    %3346 = vmatpush1.msra.mxu0 0.0
    %3347 = vmatprep.subr.mxu0 0.0
    %3348 = vmatpush1.msra.mxu0 0.0
    %3349 = vmatprep.subr.mxu0 0.0
    %3350 = vmatpush1.msra.mxu0 0.0
    %3351 = vmatprep.subr.mxu0 0.0
    %3352 = vmatpush1.msra.mxu0 0.0
    %3353 = vmatprep.subr.mxu0 0.0
    %3354 = vmatpush1.msra.mxu0 0.0
    %3355 = vmatprep.subr.mxu0 0.0
    %3356 = vmatpush1.msra.mxu0 0.0
    %3357 = vmatprep.subr.mxu0 0.0
    %3358 = vmatpush1.msra.mxu0 0.0
    %3359 = vmatprep.subr.mxu0 0.0
    %3360 = vmatpush1.msra.mxu0 0.0
    %3361 = vmatprep.subr.mxu0 0.0
    %3362 = vmatpush1.msra.mxu0 0.0
    %3363 = vmatprep.subr.mxu0 0.0
    %3364 = vmatpush1.msra.mxu0 0.0
    %3365 = vmatprep.subr.mxu0 0.0
    %3366 = vmatpush1.msra.mxu0 0.0
    %3367 = vmatprep.mubr.f32.mxu0 0.0
    %3368 = vmatmul.mubr.f32.gmra.mrb[0].mxu0 %v3301
    %v3369 = vpop.f32.mrb[0].mxu0
    %v3370 = vadd.f32 0.0, %v3369
    %v3371 = vpop.f32.mrb[0].mxu0
    %v3372 = vadd.f32 0.0, %v3371
    %3373 = vdwg.mxu0
    %3374 = vmatprep.subr.mxu0 %v3297
    %3375 = vmatpush1.msra.mxu0 %v3294
    %3376 = vmatprep.subr.mxu0 0.0
    %3377 = vmatpush1.msra.mxu0 0.0
    %3378 = vmatprep.subr.mxu0 0.0
    %3379 = vmatpush1.msra.mxu0 0.0
    %3380 = vmatprep.subr.mxu0 0.0
    %3381 = vmatpush1.msra.mxu0 0.0
    %3382 = vmatprep.subr.mxu0 0.0
    %3383 = vmatpush1.msra.mxu0 0.0
    %3384 = vmatprep.subr.mxu0 0.0
    %3385 = vmatpush1.msra.mxu0 0.0
    %3386 = vmatprep.subr.mxu0 0.0
    %3387 = vmatpush1.msra.mxu0 0.0
    %3388 = vmatprep.subr.mxu0 0.0
    %3389 = vmatpush1.msra.mxu0 0.0
    %3390 = vmatprep.subr.mxu0 0.0
    %3391 = vmatpush1.msra.mxu0 0.0
    %3392 = vmatprep.subr.mxu0 0.0
    %3393 = vmatpush1.msra.mxu0 0.0
    %3394 = vmatprep.subr.mxu0 0.0
    %3395 = vmatpush1.msra.mxu0 0.0
    %3396 = vmatprep.subr.mxu0 0.0
    %3397 = vmatpush1.msra.mxu0 0.0
    %3398 = vmatprep.subr.mxu0 0.0
    %3399 = vmatpush1.msra.mxu0 0.0
    %3400 = vmatprep.subr.mxu0 0.0
    %3401 = vmatpush1.msra.mxu0 0.0
    %3402 = vmatprep.subr.mxu0 0.0
    %3403 = vmatpush1.msra.mxu0 0.0
    %3404 = vmatprep.subr.mxu0 0.0
    %3405 = vmatpush1.msra.mxu0 0.0
    %3406 = vmatprep.subr.mxu0 0.0
    %3407 = vmatpush1.msra.mxu0 0.0
    %3408 = vmatprep.subr.mxu0 0.0
    %3409 = vmatpush1.msra.mxu0 0.0
    %3410 = vmatprep.subr.mxu0 0.0
    %3411 = vmatpush1.msra.mxu0 0.0
    %3412 = vmatprep.subr.mxu0 0.0
    %3413 = vmatpush1.msra.mxu0 0.0
    %3414 = vmatprep.subr.mxu0 0.0
    %3415 = vmatpush1.msra.mxu0 0.0
    %3416 = vmatprep.subr.mxu0 0.0
    %3417 = vmatpush1.msra.mxu0 0.0
    %3418 = vmatprep.subr.mxu0 0.0
    %3419 = vmatpush1.msra.mxu0 0.0
    %3420 = vmatprep.subr.mxu0 0.0
    %3421 = vmatpush1.msra.mxu0 0.0
    %3422 = vmatprep.subr.mxu0 0.0
    %3423 = vmatpush1.msra.mxu0 0.0
    %3424 = vmatprep.subr.mxu0 0.0
    %3425 = vmatpush1.msra.mxu0 0.0
    %3426 = vmatprep.subr.mxu0 0.0
    %3427 = vmatpush1.msra.mxu0 0.0
    %3428 = vmatprep.subr.mxu0 0.0
    %3429 = vmatpush1.msra.mxu0 0.0
    %3430 = vmatprep.subr.mxu0 0.0
    %3431 = vmatpush1.msra.mxu0 0.0
    %3432 = vmatprep.subr.mxu0 0.0
    %3433 = vmatpush1.msra.mxu0 0.0
    %3434 = vmatprep.subr.mxu0 0.0
    %3435 = vmatpush1.msra.mxu0 0.0
    %3436 = vmatprep.subr.mxu0 0.0
    %3437 = vmatpush1.msra.mxu0 0.0
    %3438 = vmatprep.mubr.f32.mxu0 0.0
    %3439 = vmatmul.mubr.f32.gmra.mrb[0].mxu0 %v3301
    %v3440 = vpop.f32.mrb[0].mxu0
    %v3441 = vadd.f32 0.0, %v3440
    %v3442 = vpop.f32.mrb[0].mxu0
    %v3443 = vadd.f32 0.0, %v3442
    %3444 = vdwg.mxu0
    %v3445 = vmul.f32 %v130, %v3370
    %v3446 = vmul.f32 %v131, %v3372
    %v3447 = vmul.f32 %v132, %v3441
    %v3448 = vmul.f32 %v133, %v3443
    %v3449 = vadd.f32 %v3282, %v3445
    %v3450 = vadd.f32 %v3283, %v3446
    %v3451 = vadd.f32 %v3284, %v3447
    %v3452 = vadd.f32 %v3285, %v3448
    %3453 = vrot.lane.b32.xlu0 %v2138, 111
    %v3454 = vpop.permute.xlu0 %3453
    %3455 = vrot.lane.b32.xlu0 %v2139, 111
    %v3456 = vpop.permute.xlu0 %3455
    %3457 = vrot.lane.b32.xlu0 %v2140, 111
    %v3458 = vpop.permute.xlu0 %3457
    %3459 = vrot.lane.b32.xlu0 %v2141, 111
    %v3460 = vpop.permute.xlu0 %3459
    %v3461 = vsel %vm1645, %v3458, %v3460
    %v3462 = vsel %vm1645, %v3456, %v3458
    %v3463 = vsel %vm1645, %v3454, %v3456
    %v3464 = vsel %vm1645, %v3460, %v3454
    %s3465 = scalar_lea.vmem %s7, 64
    %v3466 = vld [vmem:[%s3465] sm:$0xff]
    %v3468 = vsel %vm334, %v3466, 0
    %3470 = vmatprep.subr.mxu0 %v3462
    %3471 = vmatpush1.msra.mxu0 %v3463
    %3472 = vmatprep.subr.mxu0 0.0
    %3473 = vmatpush1.msra.mxu0 0.0
    %3474 = vmatprep.subr.mxu0 0.0
    %3475 = vmatpush1.msra.mxu0 0.0
    %3476 = vmatprep.subr.mxu0 0.0
    %3477 = vmatpush1.msra.mxu0 0.0
    %3478 = vmatprep.subr.mxu0 0.0
    %3479 = vmatpush1.msra.mxu0 0.0
    %3480 = vmatprep.subr.mxu0 0.0
    %3481 = vmatpush1.msra.mxu0 0.0
    %3482 = vmatprep.subr.mxu0 0.0
    %3483 = vmatpush1.msra.mxu0 0.0
    %3484 = vmatprep.subr.mxu0 0.0
    %3485 = vmatpush1.msra.mxu0 0.0
    %3486 = vmatprep.subr.mxu0 0.0
    %3487 = vmatpush1.msra.mxu0 0.0
    %3488 = vmatprep.subr.mxu0 0.0
    %3489 = vmatpush1.msra.mxu0 0.0
    %3490 = vmatprep.subr.mxu0 0.0
    %3491 = vmatpush1.msra.mxu0 0.0
    %3492 = vmatprep.subr.mxu0 0.0
    %3493 = vmatpush1.msra.mxu0 0.0
    %3494 = vmatprep.subr.mxu0 0.0
    %3495 = vmatpush1.msra.mxu0 0.0
    %3496 = vmatprep.subr.mxu0 0.0
    %3497 = vmatpush1.msra.mxu0 0.0
    %3498 = vmatprep.subr.mxu0 0.0
    %3499 = vmatpush1.msra.mxu0 0.0
    %3500 = vmatprep.subr.mxu0 0.0
    %3501 = vmatpush1.msra.mxu0 0.0
    %3502 = vmatprep.subr.mxu0 0.0
    %3503 = vmatpush1.msra.mxu0 0.0
    %3504 = vmatprep.subr.mxu0 0.0
    %3505 = vmatpush1.msra.mxu0 0.0
    %3506 = vmatprep.subr.mxu0 0.0
    %3507 = vmatpush1.msra.mxu0 0.0
    %3508 = vmatprep.subr.mxu0 0.0
    %3509 = vmatpush1.msra.mxu0 0.0
    %3510 = vmatprep.subr.mxu0 0.0
    %3511 = vmatpush1.msra.mxu0 0.0
    %3512 = vmatprep.subr.mxu0 0.0
    %3513 = vmatpush1.msra.mxu0 0.0
    %3514 = vmatprep.subr.mxu0 0.0
    %3515 = vmatpush1.msra.mxu0 0.0
    %3516 = vmatprep.subr.mxu0 0.0
    %3517 = vmatpush1.msra.mxu0 0.0
    %3518 = vmatprep.subr.mxu0 0.0
    %3519 = vmatpush1.msra.mxu0 0.0
    %3520 = vmatprep.subr.mxu0 0.0
    %3521 = vmatpush1.msra.mxu0 0.0
    %3522 = vmatprep.subr.mxu0 0.0
    %3523 = vmatpush1.msra.mxu0 0.0
    %3524 = vmatprep.subr.mxu0 0.0
    %3525 = vmatpush1.msra.mxu0 0.0
    %3526 = vmatprep.subr.mxu0 0.0
    %3527 = vmatpush1.msra.mxu0 0.0
    %3528 = vmatprep.subr.mxu0 0.0
    %3529 = vmatpush1.msra.mxu0 0.0
    %3530 = vmatprep.subr.mxu0 0.0
    %3531 = vmatpush1.msra.mxu0 0.0
    %3532 = vmatprep.subr.mxu0 0.0
    %3533 = vmatpush1.msra.mxu0 0.0
    %3534 = vmatprep.mubr.f32.mxu0 0.0
    %3535 = vmatmul.mubr.f32.gmra.mrb[0].mxu0 %v3468
    %v3536 = vpop.f32.mrb[0].mxu0
    %v3537 = vadd.f32 0.0, %v3536
    %v3538 = vpop.f32.mrb[0].mxu0
    %v3539 = vadd.f32 0.0, %v3538
    %3540 = vdwg.mxu0
    %3541 = vmatprep.subr.mxu0 %v3464
    %3542 = vmatpush1.msra.mxu0 %v3461
    %3543 = vmatprep.subr.mxu0 0.0
    %3544 = vmatpush1.msra.mxu0 0.0
    %3545 = vmatprep.subr.mxu0 0.0
    %3546 = vmatpush1.msra.mxu0 0.0
    %3547 = vmatprep.subr.mxu0 0.0
    %3548 = vmatpush1.msra.mxu0 0.0
    %3549 = vmatprep.subr.mxu0 0.0
    %3550 = vmatpush1.msra.mxu0 0.0
    %3551 = vmatprep.subr.mxu0 0.0
    %3552 = vmatpush1.msra.mxu0 0.0
    %3553 = vmatprep.subr.mxu0 0.0
    %3554 = vmatpush1.msra.mxu0 0.0
    %3555 = vmatprep.subr.mxu0 0.0
    %3556 = vmatpush1.msra.mxu0 0.0
    %3557 = vmatprep.subr.mxu0 0.0
    %3558 = vmatpush1.msra.mxu0 0.0
    %3559 = vmatprep.subr.mxu0 0.0
    %3560 = vmatpush1.msra.mxu0 0.0
    %3561 = vmatprep.subr.mxu0 0.0
    %3562 = vmatpush1.msra.mxu0 0.0
    %3563 = vmatprep.subr.mxu0 0.0
    %3564 = vmatpush1.msra.mxu0 0.0
    %3565 = vmatprep.subr.mxu0 0.0
    %3566 = vmatpush1.msra.mxu0 0.0
    %3567 = vmatprep.subr.mxu0 0.0
    %3568 = vmatpush1.msra.mxu0 0.0
    %3569 = vmatprep.subr.mxu0 0.0
    %3570 = vmatpush1.msra.mxu0 0.0
    %3571 = vmatprep.subr.mxu0 0.0
    %3572 = vmatpush1.msra.mxu0 0.0
    %3573 = vmatprep.subr.mxu0 0.0
    %3574 = vmatpush1.msra.mxu0 0.0
    %3575 = vmatprep.subr.mxu0 0.0
    %3576 = vmatpush1.msra.mxu0 0.0
    %3577 = vmatprep.subr.mxu0 0.0
    %3578 = vmatpush1.msra.mxu0 0.0
    %3579 = vmatprep.subr.mxu0 0.0
    %3580 = vmatpush1.msra.mxu0 0.0
    %3581 = vmatprep.subr.mxu0 0.0
    %3582 = vmatpush1.msra.mxu0 0.0
    %3583 = vmatprep.subr.mxu0 0.0
    %3584 = vmatpush1.msra.mxu0 0.0
    %3585 = vmatprep.subr.mxu0 0.0
    %3586 = vmatpush1.msra.mxu0 0.0
    %3587 = vmatprep.subr.mxu0 0.0
    %3588 = vmatpush1.msra.mxu0 0.0
    %3589 = vmatprep.subr.mxu0 0.0
    %3590 = vmatpush1.msra.mxu0 0.0
    %3591 = vmatprep.subr.mxu0 0.0
    %3592 = vmatpush1.msra.mxu0 0.0
    %3593 = vmatprep.subr.mxu0 0.0
    %3594 = vmatpush1.msra.mxu0 0.0
    %3595 = vmatprep.subr.mxu0 0.0
    %3596 = vmatpush1.msra.mxu0 0.0
    %3597 = vmatprep.subr.mxu0 0.0
    %3598 = vmatpush1.msra.mxu0 0.0
    %3599 = vmatprep.subr.mxu0 0.0
    %3600 = vmatpush1.msra.mxu0 0.0
    %3601 = vmatprep.subr.mxu0 0.0
    %3602 = vmatpush1.msra.mxu0 0.0
    %3603 = vmatprep.subr.mxu0 0.0
    %3604 = vmatpush1.msra.mxu0 0.0
    %3605 = vmatprep.mubr.f32.mxu0 0.0
    %3606 = vmatmul.mubr.f32.gmra.mrb[0].mxu0 %v3468
    %v3607 = vpop.f32.mrb[0].mxu0
    %v3608 = vadd.f32 0.0, %v3607
    %v3609 = vpop.f32.mrb[0].mxu0
    %v3610 = vadd.f32 0.0, %v3609
    %3611 = vdwg.mxu0
    %v3612 = vmul.f32 %v142, %v3537
    %v3613 = vmul.f32 %v143, %v3539
    %v3614 = vmul.f32 %v144, %v3608
    %v3615 = vmul.f32 %v145, %v3610
    %v3616 = vadd.f32 %v3449, %v3612
    %v3617 = vadd.f32 %v3450, %v3613
    %v3618 = vadd.f32 %v3451, %v3614
    %v3619 = vadd.f32 %v3452, %v3615
    %3621 = vset.pattern.permute.xlu0 0
    %3622 = vperm.xlu0 %3621, %v148
    %v3623 = vpop.permute.xlu0 %3622
    %v3625 = vadd.f32 %v3616, %v3623
    %v3626 = vadd.f32 %v3617, %v3623
    %v3627 = vadd.f32 %v3618, %v3623
    %v3628 = vadd.f32 %v3619, %v3623
    %v3629 = vadd.f32 %v3625, %v243
    %v3630 = vadd.f32 %v3626, %v245
    %v3631 = vadd.f32 %v3627, %v314
    %v3632 = vadd.f32 %v3628, %v316
    %v3633 = vmul.f32 %v3629, 0.70710677
    %v3634 = vmul.f32 %v3630, 0.70710677
    %v3635 = vmul.f32 %v3631, 0.70710677
    %v3636 = vmul.f32 %v3632, 0.70710677
    %3637 = vst [vmem:[#allocation2] sm:$0xff] %v3633
    %3638 = vst [vmem:[#allocation2 + $0x8] sm:$0xff] %v3634
    %3639 = vst [vmem:[#allocation2 + $0x10] sm:$0xff] %v3635
    %3640 = vst [vmem:[#allocation2 + $0x18] sm:$0xff] %v3636
    // Predicated region
    $region38: #{tpu_custom_call.1} parent=1 // pred_check
      _
    $region39: #{tpu_custom_call.1} parent=1 // pred_check_branch
      %3642 = sbr.rel (0) target = $region41
    $region40: #{tpu_custom_call.1} parent=1 // pred_region
      %s3644 = ssub.s32 512, 512
      %3645 = vsyncadd [#allocation3], %s3644
      %s3647 = sshll.u32 [#allocation2], 4
      %s3648 = int_to_ptr.vmem [resolvable:$true] %s3647
      %3650 = dma.vmem_to_hbm [thread:$0]  %s3648, 512, %s9, [#allocation3]
    $region41: #{tpu_custom_call.1} parent=1 // pred_fallthru
      _
    // Predicated region
    $region42: #{tpu_custom_call.1} parent=1 // pred_check
      _
    $region43: #{tpu_custom_call.1} parent=1 // pred_check_branch
      %3652 = sbr.rel (0) target = $region45
    $region44: #{tpu_custom_call.1} parent=1 // pred_region
      %3653 = dma.done [#allocation3], 512
    $region45: #{tpu_custom_call.1} parent=1 // pred_fallthru
      _
    %3654 = vsyncpa [#allocation3], 1

</llo_original>
